<compile_context>
chip_gen: v7x
topology: tpu7x:2x2x1
jax: 0.10.0
libtpu: 0.0.40
codegen_flags: <defaults>
</compile_context>

<pallas_src>
import jax
import jax.numpy as jnp
from jax.experimental import pallas as pl
from jax.experimental.pallas import tpu as pltpu

LEAKY_SLOPE = 0.01   # PyTorch nn.LeakyReLU default negative_slope
TB = 128             # batch-tile rows per grid step (>=128 feeds the MXU)
LANE = 128


def _round_up(x, m):
    return ((x + m - 1) // m) * m


def bow_mlp_kernel(feats_ref, w1_ref, b1_ref, w2_ref, b2_ref, w3_ref, b3_ref, o_ref):
    # feats_ref: (TB, Dp) f32 bag-of-words features for this batch tile.
    x = feats_ref[...].astype(jnp.bfloat16)

    # Layer 1: Dp -> 768 (bf16 MXU inputs, f32 accumulate / bias / LeakyReLU).
    h1 = jnp.dot(x, w1_ref[...], preferred_element_type=jnp.float32) + b1_ref[...]
    h1 = jnp.where(h1 > 0, h1, LEAKY_SLOPE * h1)

    # Layer 2: 768 -> 512.
    h2 = jnp.dot(h1.astype(jnp.bfloat16), w2_ref[...],
                 preferred_element_type=jnp.float32) + b2_ref[...]
    h2 = jnp.where(h2 > 0, h2, LEAKY_SLOPE * h2)

    # Layer 3: 512 -> 128 (lane-padded classes), lane-dense store.
    o_ref[...] = (jnp.dot(h2.astype(jnp.bfloat16), w3_ref[...],
                          preferred_element_type=jnp.float32)
                  + b3_ref[...]).astype(o_ref.dtype)


def bow_model_forward(word_ids, embedding_matrix, params):
    """word_ids: (B, L) int32 token ids. Returns (B, num_classes) float32 logits."""
    w1, b1, w2, b2, w3, b3 = params
    B, L = word_ids.shape
    D = embedding_matrix.shape[1]
    C = w3.shape[1]

    # Glue in plain JAX: embedding gather + bag-of-words mean.
    # The kernel sees only (B, D) — avoids L x inflated input DMA.
    emb = jnp.take(embedding_matrix, word_ids, axis=0)      # (B, L, D)
    feats = jnp.mean(emb, axis=1)                           # (B, D) f32

    # Lane/sublane-aligned padding (zero-pad; LeakyReLU(0)=0 so padded
    # columns/rows carry zeros through and do not perturb real outputs).
    Dp = _round_up(D, LANE)
    H1p = _round_up(w1.shape[1], LANE)    # 750 -> 768
    H2p = _round_up(w2.shape[1], LANE)    # 420 -> 512
    Cp = _round_up(C, LANE)               # 6   -> 128
    Bp = _round_up(B, TB)

    feats_p = jnp.zeros((Bp, Dp), jnp.float32).at[:B, :D].set(feats)

    def pad2(a, r, c):
        return jnp.zeros((r, c), a.dtype).at[:a.shape[0], :a.shape[1]].set(a)

    w1p = pad2(w1, Dp, H1p).astype(jnp.bfloat16)
    w2p = pad2(w2, H1p, H2p).astype(jnp.bfloat16)
    w3p = pad2(w3, H2p, Cp).astype(jnp.bfloat16)
    b1p = pad2(b1, 1, H1p)                                   # biases stay f32
    b2p = pad2(b2, 1, H2p)
    b3p = pad2(b3, 1, Cp)

    n_tiles = Bp // TB
    const2 = lambda shape: pl.BlockSpec(shape, lambda i: (0, 0))  # VMEM-resident

    out = pl.pallas_call(
        bow_mlp_kernel,
        out_shape=jax.ShapeDtypeStruct((Bp, Cp), jnp.float32),
        grid=(n_tiles,),
        in_specs=[
            pl.BlockSpec((TB, Dp), lambda i: (i, 0)),        # batch-tiled features
            const2(w1p.shape), const2(b1p.shape),
            const2(w2p.shape), const2(b2p.shape),
            const2(w3p.shape), const2(b3p.shape),
        ],
        out_specs=pl.BlockSpec((TB, Cp), lambda i: (i, 0)),
        compiler_params=pltpu.CompilerParams(
            dimension_semantics=("parallel",),               # megacore on v7x
            vmem_limit_bytes=32 << 20,                       # safe on v7x's 64 MiB
        ),
    )(feats_p, w1p, b1p, w2p, b2p, w3p, b3p)

    return out[:B, :C]


def make_params(key, emd_dim, num_classes, vocab_size):
    ks = jax.random.split(key, 7)
    embedding_matrix = jax.random.normal(ks[0], (vocab_size, emd_dim), jnp.float32) * 0.1
    # Linear weights stored (in, out); biases (1, out) for broadcast.
    w1 = jax.random.normal(ks[1], (emd_dim, 750), jnp.float32) * 0.05
    b1 = jax.random.normal(ks[2], (1, 750), jnp.float32) * 0.01
    w2 = jax.random.normal(ks[3], (750, 420), jnp.float32) * 0.05
    b2 = jax.random.normal(ks[4], (1, 420), jnp.float32) * 0.01
    w3 = jax.random.normal(ks[5], (420, num_classes), jnp.float32) * 0.05
    b3 = jax.random.normal(ks[6], (1, num_classes), jnp.float32) * 0.01
    return embedding_matrix, (w1, b1, w2, b2, w3, b3)


def reference_forward(word_ids, embedding_matrix, params):
    w1, b1, w2, b2, w3, b3 = params
    emb = jnp.take(embedding_matrix, word_ids, axis=0)
    feats = jnp.mean(emb, axis=1)
    leaky = lambda x: jnp.where(x > 0, x, LEAKY_SLOPE * x)
    h1 = leaky(feats @ w1 + b1)
    h2 = leaky(h1 @ w2 + b2)
    return h2 @ w3 + b3


if __name__ == "__main__":
    B, L = 2, 8           # batch of 2 sentences, 8 words each
    emd_dim = 32
    vocab_size = 64
    num_classes = 6

    key = jax.random.PRNGKey(0)
    k_params, k_ids = jax.random.split(key)
    embedding_matrix, params = make_params(k_params, emd_dim, num_classes, vocab_size)
    word_ids = jax.random.randint(k_ids, (B, L), 0, vocab_size, dtype=jnp.int32)

    out = bow_model_forward(word_ids, embedding_matrix, params)
    out = jax.block_until_ready(out)

    ref = reference_forward(word_ids, embedding_matrix, params)
    assert out.shape == (B, num_classes)
    # bf16 matmul inputs (f32 accumulate) -> compare against f32 reference
    # with a tolerance that covers the bf16 input rounding.
    assert jnp.allclose(out, ref, atol=2e-3, rtol=2e-2), "mismatch vs reference"

    print("KERNEL_OK")
</pallas_src>

<mosaic_0001>
module attributes {stable_mosaic.version = 11 : i64} {
  func.func @bow_mlp_kernel(%arg0: i32, %arg1: memref<128x128xf32, #tpu.memory_space<vmem>>, %arg2: memref<128x768xbf16, #tpu.memory_space<vmem>>, %arg3: memref<1x768xf32, #tpu.memory_space<vmem>>, %arg4: memref<768x512xbf16, #tpu.memory_space<vmem>>, %arg5: memref<1x512xf32, #tpu.memory_space<vmem>>, %arg6: memref<512x128xbf16, #tpu.memory_space<vmem>>, %arg7: memref<1x128xf32, #tpu.memory_space<vmem>>, %arg8: memref<128x128xf32, #tpu.memory_space<vmem>>) attributes {dimension_semantics = [#tpu.dimension_semantics<parallel>], iteration_bounds = array<i64: 1>, scalar_prefetch = 0 : i64, scratch_operands = 0 : i64, tpu.core_type = #tpu.core_type<tc>, window_params = [{transform_indices = @transform_0, window_bounds = array<i64: 128, 128>}, {pipeline_mode = #tpu.pipeline_mode<synchronous>, transform_indices = @transform_1, window_bounds = array<i64: 128, 768>}, {pipeline_mode = #tpu.pipeline_mode<synchronous>, transform_indices = @transform_2, window_bounds = array<i64: 1, 768>}, {pipeline_mode = #tpu.pipeline_mode<synchronous>, transform_indices = @transform_3, window_bounds = array<i64: 768, 512>}, {pipeline_mode = #tpu.pipeline_mode<synchronous>, transform_indices = @transform_4, window_bounds = array<i64: 1, 512>}, {pipeline_mode = #tpu.pipeline_mode<synchronous>, transform_indices = @transform_5, window_bounds = array<i64: 512, 128>}, {pipeline_mode = #tpu.pipeline_mode<synchronous>, transform_indices = @transform_6, window_bounds = array<i64: 1, 128>}, {transform_indices = @transform_7, window_bounds = array<i64: 128, 128>}]} {
    %c0 = arith.constant 0 : index
    %c0_0 = arith.constant 0 : index
    %0 = vector.load %arg1[%c0, %c0_0] : memref<128x128xf32, #tpu.memory_space<vmem>>, vector<128x128xf32>
    %1 = arith.truncf %0 : vector<128x128xf32> to vector<128x128xbf16>
    %c0_1 = arith.constant 0 : index
    %c0_2 = arith.constant 0 : index
    %2 = vector.load %arg2[%c0_1, %c0_2] : memref<128x768xbf16, #tpu.memory_space<vmem>>, vector<128x768xbf16>
    %cst = arith.constant dense<0.000000e+00> : vector<128x768xf32>
    %3 = tpu.matmul %1, %2, %cst {dimension_numbers = #tpu.dot_dimension_numbers<[1], [0], [0], [1], [0, 0, 1, 1], [], []>} : vector<128x128xbf16>, vector<128x768xbf16>, vector<128x768xf32> -> vector<128x768xf32>
    %c0_3 = arith.constant 0 : index
    %c0_4 = arith.constant 0 : index
    %4 = vector.load %arg3[%c0_3, %c0_4] : memref<1x768xf32, #tpu.memory_space<vmem>>, vector<1x768xf32>
    %5 = vector.broadcast %4 : vector<1x768xf32> to vector<128x768xf32>
    %6 = arith.addf %3, %5 : vector<128x768xf32>
    %cst_5 = arith.constant 0.000000e+00 : f32
    %7 = vector.broadcast %cst_5 : f32 to vector<128x768xf32>
    %8 = arith.cmpf ogt, %6, %7 : vector<128x768xf32>
    %cst_6 = arith.constant 0.00999999977 : f32
    %9 = vector.broadcast %cst_6 : f32 to vector<128x768xf32>
    %10 = arith.mulf %9, %6 : vector<128x768xf32>
    %11 = arith.select %8, %6, %10 : vector<128x768xi1>, vector<128x768xf32>
    %12 = arith.truncf %11 : vector<128x768xf32> to vector<128x768xbf16>
    %c0_7 = arith.constant 0 : index
    %c0_8 = arith.constant 0 : index
    %13 = vector.load %arg4[%c0_7, %c0_8] : memref<768x512xbf16, #tpu.memory_space<vmem>>, vector<768x512xbf16>
    %cst_9 = arith.constant dense<0.000000e+00> : vector<128x512xf32>
    %14 = tpu.matmul %12, %13, %cst_9 {dimension_numbers = #tpu.dot_dimension_numbers<[1], [0], [0], [1], [0, 0, 1, 1], [], []>} : vector<128x768xbf16>, vector<768x512xbf16>, vector<128x512xf32> -> vector<128x512xf32>
    %c0_10 = arith.constant 0 : index
    %c0_11 = arith.constant 0 : index
    %15 = vector.load %arg5[%c0_10, %c0_11] : memref<1x512xf32, #tpu.memory_space<vmem>>, vector<1x512xf32>
    %16 = vector.broadcast %15 : vector<1x512xf32> to vector<128x512xf32>
    %17 = arith.addf %14, %16 : vector<128x512xf32>
    %cst_12 = arith.constant 0.000000e+00 : f32
    %18 = vector.broadcast %cst_12 : f32 to vector<128x512xf32>
    %19 = arith.cmpf ogt, %17, %18 : vector<128x512xf32>
    %cst_13 = arith.constant 0.00999999977 : f32
    %20 = vector.broadcast %cst_13 : f32 to vector<128x512xf32>
    %21 = arith.mulf %20, %17 : vector<128x512xf32>
    %22 = arith.select %19, %17, %21 : vector<128x512xi1>, vector<128x512xf32>
    %23 = arith.truncf %22 : vector<128x512xf32> to vector<128x512xbf16>
    %c0_14 = arith.constant 0 : index
    %c0_15 = arith.constant 0 : index
    %24 = vector.load %arg6[%c0_14, %c0_15] : memref<512x128xbf16, #tpu.memory_space<vmem>>, vector<512x128xbf16>
    %cst_16 = arith.constant dense<0.000000e+00> : vector<128x128xf32>
    %25 = tpu.matmul %23, %24, %cst_16 {dimension_numbers = #tpu.dot_dimension_numbers<[1], [0], [0], [1], [0, 0, 1, 1], [], []>} : vector<128x512xbf16>, vector<512x128xbf16>, vector<128x128xf32> -> vector<128x128xf32>
    %c0_17 = arith.constant 0 : index
    %c0_18 = arith.constant 0 : index
    %26 = vector.load %arg7[%c0_17, %c0_18] : memref<1x128xf32, #tpu.memory_space<vmem>>, vector<1x128xf32>
    %27 = vector.broadcast %26 : vector<1x128xf32> to vector<128x128xf32>
    %28 = arith.addf %25, %27 : vector<128x128xf32>
    %c0_19 = arith.constant 0 : index
    %c0_20 = arith.constant 0 : index
    %29 = vector.load %arg8[%c0_19, %c0_20] : memref<128x128xf32, #tpu.memory_space<vmem>>, vector<128x128xf32>
    tpu.vector_store %arg8[%c0_19, %c0_20], %28 {strides = array<i32>} : memref<128x128xf32, #tpu.memory_space<vmem>>, vector<128x128xf32>,
    return
  }
  func.func @transform_0(%arg0: i32) -> (i32, i32) {
    %c0_i32 = arith.constant 0 : i32
    %c0_i32_0 = arith.constant 0 : i32
    return %arg0, %c0_i32 : i32, i32
  }
  func.func @transform_1(%arg0: i32) -> (i32, i32) {
    %c0_i32 = arith.constant 0 : i32
    %c0_i32_0 = arith.constant 0 : i32
    %c0_i32_1 = arith.constant 0 : i32
    return %c0_i32, %c0_i32_0 : i32, i32
  }
  func.func @transform_2(%arg0: i32) -> (i32, i32) {
    %c0_i32 = arith.constant 0 : i32
    %c0_i32_0 = arith.constant 0 : i32
    %c0_i32_1 = arith.constant 0 : i32
    return %c0_i32, %c0_i32_0 : i32, i32
  }
  func.func @transform_3(%arg0: i32) -> (i32, i32) {
    %c0_i32 = arith.constant 0 : i32
    %c0_i32_0 = arith.constant 0 : i32
    %c0_i32_1 = arith.constant 0 : i32
    return %c0_i32, %c0_i32_0 : i32, i32
  }
  func.func @transform_4(%arg0: i32) -> (i32, i32) {
    %c0_i32 = arith.constant 0 : i32
    %c0_i32_0 = arith.constant 0 : i32
    %c0_i32_1 = arith.constant 0 : i32
    return %c0_i32, %c0_i32_0 : i32, i32
  }
  func.func @transform_5(%arg0: i32) -> (i32, i32) {
    %c0_i32 = arith.constant 0 : i32
    %c0_i32_0 = arith.constant 0 : i32
    %c0_i32_1 = arith.constant 0 : i32
    return %c0_i32, %c0_i32_0 : i32, i32
  }
  func.func @transform_6(%arg0: i32) -> (i32, i32) {
    %c0_i32 = arith.constant 0 : i32
    %c0_i32_0 = arith.constant 0 : i32
    %c0_i32_1 = arith.constant 0 : i32
    return %c0_i32, %c0_i32_0 : i32, i32
  }
  func.func @transform_7(%arg0: i32) -> (i32, i32) {
    %c0_i32 = arith.constant 0 : i32
    %c0_i32_0 = arith.constant 0 : i32
    return %arg0, %c0_i32 : i32, i32
  }
}

</mosaic_0001>

<llo_original>
// kernel: tpu_custom_call.1
$region0: #{tpu_custom_call.1}
  #allocation0 [shape = 'u32[]', space=smem, size = 0x4, offset = 0x4, fixed_abs, tag = 'smem constant byte address 0x4 - core index']
  #allocation1 [shape = 'u32[144,128]{1,0:T(1,128)}', space=vmem, size = 0x12000, scoped, tag = 'internal scratch']
  %s0 = inlined_call_operand.hbm [shape: f32[128,128], index: 0, kind: input, shape index: {}]
  %s1 = inlined_call_operand.hbm [shape: bf16[128,768], index: 1, kind: input, shape index: {}]
  %s2 = inlined_call_operand.vmem [shape: f32[1,768], index: 2, kind: input, shape index: {}]
  %s3 = inlined_call_operand.hbm [shape: bf16[768,512], index: 3, kind: input, shape index: {}]
  %s4 = inlined_call_operand.vmem [shape: f32[1,512], index: 4, kind: input, shape index: {}]
  %s5 = inlined_call_operand.hbm [shape: bf16[512,128], index: 5, kind: input, shape index: {}]
  %s6 = inlined_call_operand.vmem [shape: f32[1,128], index: 6, kind: input, shape index: {}]
  %s7 = inlined_call_operand.hbm [shape: f32[128,128], index: 7, kind: output, shape index: {}]
  %s8 = sld [smem:[#allocation0]]
  $region54: #{tpu_custom_call.1} parent=0
    _
  %s10 = ssub.s32 1, %s8
  %s11 = scalar_select 0, %s10, %s8
  $region1: #{tpu_custom_call.1} parent=0
    #allocation2 [shape = 'u8[65536]{0}', space=vmem, size = 0x10000, scoped, tag = 'input window, operand 0, single buffered']
    #allocation3 [shape = 's32[1]{0}', space=sflag, size = 0x4, scoped, tag = 'scoped memory for tpu_custom_call.1']
    #allocation4 [shape = 's32[1]{0}', space=sflag, size = 0x4, scoped, tag = 'scoped memory for tpu_custom_call.1']
    #allocation5 [shape = 'u8[196608]{0}', space=vmem, size = 0x30000, scoped, tag = 'input window, operand 1, single buffered']
    #allocation6 [shape = 's32[1]{0}', space=sflag, size = 0x4, scoped, tag = 'scoped memory for tpu_custom_call.1']
    #allocation7 [shape = 'u8[786432]{0}', space=vmem, size = 0xc0000, scoped, tag = 'input window, operand 3, single buffered']
    #allocation8 [shape = 'u8[131072]{0}', space=vmem, size = 0x20000, scoped, tag = 'input window, operand 5, single buffered']
    #allocation9 [shape = 's32[1]{0}', space=sflag, size = 0x4, scoped, tag = 'scoped memory for tpu_custom_call.1']
    #allocation10 [shape = 'u8[65536]{0}', space=vmem, size = 0x10000, scoped, tag = 'output window, operand 0, single buffered']
    %12 = vsyncpa [#allocation3], 0
    %13 = vsyncpa [#allocation6], 0
    %14 = vsyncpa [#allocation9], 0
    %15 = vsyncpa [#allocation4], 0
    // Predicated region
    $region2: #{tpu_custom_call.1} parent=1 // pred_check
      _
    $region3: #{tpu_custom_call.1} parent=1 // pred_check_branch
      %17 = sbr.rel (0) target = $region5
    $region4: #{tpu_custom_call.1} parent=1 // pred_region
      %s19 = ssub.s32 2048, 2048
      %20 = vsyncadd [#allocation3], %s19
      %s21 = sshll.u32 [#allocation2], 4
      %s22 = int_to_ptr.vmem [resolvable:$true] %s21
      %27 = dma.hbm_to_vmem [thread:$0]  %s0, 2048, %s22, [#allocation3], 128, 128, 8
    $region5: #{tpu_custom_call.1} parent=1 // pred_fallthru
      _
    // Predicated region
    $region6: #{tpu_custom_call.1} parent=1 // pred_check
      _
    $region7: #{tpu_custom_call.1} parent=1 // pred_check_branch
      %29 = sbr.rel (0) target = $region9
    $region8: #{tpu_custom_call.1} parent=1 // pred_region
      %s31 = ssub.s32 6144, 6144
      %32 = vsyncadd [#allocation6], %s31
      %s33 = sshll.u32 [#allocation5], 4
      %s34 = int_to_ptr.vmem [resolvable:$true] %s33
      %39 = dma.hbm_to_vmem [thread:$0]  %s1, 6144, %s34, [#allocation6], 384, 384, 24
    $region9: #{tpu_custom_call.1} parent=1 // pred_fallthru
      _
    // Predicated region
    $region10: #{tpu_custom_call.1} parent=1 // pred_check
      _
    $region11: #{tpu_custom_call.1} parent=1 // pred_check_branch
      %41 = sbr.rel (0) target = $region13
    $region12: #{tpu_custom_call.1} parent=1 // pred_region
      _
    $region13: #{tpu_custom_call.1} parent=1 // pred_fallthru
      _
    // Predicated region
    $region14: #{tpu_custom_call.1} parent=1 // pred_check
      _
    $region15: #{tpu_custom_call.1} parent=1 // pred_check_branch
      %43 = sbr.rel (0) target = $region17
    $region16: #{tpu_custom_call.1} parent=1 // pred_region
      %s45 = ssub.s32 24576, 24576
      %46 = vsyncadd [#allocation6], %s45
      %s47 = sshll.u32 [#allocation7], 4
      %s48 = int_to_ptr.vmem [resolvable:$true] %s47
      %53 = dma.hbm_to_vmem [thread:$0]  %s3, 24576, %s48, [#allocation6], 256, 256, 16
    $region17: #{tpu_custom_call.1} parent=1 // pred_fallthru
      _
    // Predicated region
    $region18: #{tpu_custom_call.1} parent=1 // pred_check
      _
    $region19: #{tpu_custom_call.1} parent=1 // pred_check_branch
      %55 = sbr.rel (0) target = $region21
    $region20: #{tpu_custom_call.1} parent=1 // pred_region
      _
    $region21: #{tpu_custom_call.1} parent=1 // pred_fallthru
      _
    // Predicated region
    $region22: #{tpu_custom_call.1} parent=1 // pred_check
      _
    $region23: #{tpu_custom_call.1} parent=1 // pred_check_branch
      %57 = sbr.rel (0) target = $region25
    $region24: #{tpu_custom_call.1} parent=1 // pred_region
      %s59 = ssub.s32 4096, 4096
      %60 = vsyncadd [#allocation9], %s59
      %s61 = sshll.u32 [#allocation8], 4
      %s62 = int_to_ptr.vmem [resolvable:$true] %s61
      %67 = dma.hbm_to_vmem [thread:$0]  %s5, 4096, %s62, [#allocation9], 64, 64, 4
    $region25: #{tpu_custom_call.1} parent=1 // pred_fallthru
      _
    // Predicated region
    $region26: #{tpu_custom_call.1} parent=1 // pred_check
      _
    $region27: #{tpu_custom_call.1} parent=1 // pred_check_branch
      %69 = sbr.rel (0) target = $region29
    $region28: #{tpu_custom_call.1} parent=1 // pred_region
      _
    $region29: #{tpu_custom_call.1} parent=1 // pred_fallthru
      _
    // Predicated region
    $region30: #{tpu_custom_call.1} parent=1 // pred_check
      _
    $region31: #{tpu_custom_call.1} parent=1 // pred_check_branch
      %71 = sbr.rel (0) target = $region33
    $region32: #{tpu_custom_call.1} parent=1 // pred_region
      %72 = dma.done [#allocation3], 2048
    $region33: #{tpu_custom_call.1} parent=1 // pred_fallthru
      _
    // Predicated region
    $region34: #{tpu_custom_call.1} parent=1 // pred_check
      _
    $region35: #{tpu_custom_call.1} parent=1 // pred_check_branch
      %74 = sbr.rel (0) target = $region37
    $region36: #{tpu_custom_call.1} parent=1 // pred_region
      %75 = dma.done [#allocation6], 6144
    $region37: #{tpu_custom_call.1} parent=1 // pred_fallthru
      _
    // Predicated region
    $region38: #{tpu_custom_call.1} parent=1 // pred_check
      _
    $region39: #{tpu_custom_call.1} parent=1 // pred_check_branch
      %77 = sbr.rel (0) target = $region41
    $region40: #{tpu_custom_call.1} parent=1 // pred_region
      %78 = dma.done [#allocation6], 24576
    $region41: #{tpu_custom_call.1} parent=1 // pred_fallthru
      _
    // Predicated region
    $region42: #{tpu_custom_call.1} parent=1 // pred_check
      _
    $region43: #{tpu_custom_call.1} parent=1 // pred_check_branch
      %80 = sbr.rel (0) target = $region45
    $region44: #{tpu_custom_call.1} parent=1 // pred_region
      %81 = dma.done [#allocation9], 4096
    $region45: #{tpu_custom_call.1} parent=1 // pred_fallthru
      _
    %v83 = vld [vmem:[#allocation2] sm:$0xff]
    %v84 = vld [vmem:[#allocation2 + $0x8] sm:$0xff]
    %v85 = vld [vmem:[#allocation2 + $0x10] sm:$0xff]
    %v86 = vld [vmem:[#allocation2 + $0x18] sm:$0xff]
    %v87 = vld [vmem:[#allocation2 + $0x20] sm:$0xff]
    %v88 = vld [vmem:[#allocation2 + $0x28] sm:$0xff]
    %v89 = vld [vmem:[#allocation2 + $0x30] sm:$0xff]
    %v90 = vld [vmem:[#allocation2 + $0x38] sm:$0xff]
    %v91 = vld [vmem:[#allocation2 + $0x40] sm:$0xff]
    %v92 = vld [vmem:[#allocation2 + $0x48] sm:$0xff]
    %v93 = vld [vmem:[#allocation2 + $0x50] sm:$0xff]
    %v94 = vld [vmem:[#allocation2 + $0x58] sm:$0xff]
    %v95 = vld [vmem:[#allocation2 + $0x60] sm:$0xff]
    %v96 = vld [vmem:[#allocation2 + $0x68] sm:$0xff]
    %v97 = vld [vmem:[#allocation2 + $0x70] sm:$0xff]
    %v98 = vld [vmem:[#allocation2 + $0x78] sm:$0xff]
    %v99 = vpack.c.bf16 %v84, %v83
    %v100 = vpack.c.bf16 %v86, %v85
    %v101 = vpack.c.bf16 %v88, %v87
    %v102 = vpack.c.bf16 %v90, %v89
    %v103 = vpack.c.bf16 %v92, %v91
    %v104 = vpack.c.bf16 %v94, %v93
    %v105 = vpack.c.bf16 %v96, %v95
    %v106 = vpack.c.bf16 %v98, %v97
    %v107 = vld [vmem:[#allocation5] sm:$0xff]
    %v108 = vld [vmem:[#allocation5 + $0x8] sm:$0xff]
    %v109 = vld [vmem:[#allocation5 + $0x10] sm:$0xff]
    %v110 = vld [vmem:[#allocation5 + $0x18] sm:$0xff]
    %v111 = vld [vmem:[#allocation5 + $0x20] sm:$0xff]
    %v112 = vld [vmem:[#allocation5 + $0x28] sm:$0xff]
    %v113 = vld [vmem:[#allocation5 + $0x30] sm:$0xff]
    %v114 = vld [vmem:[#allocation5 + $0x38] sm:$0xff]
    %v115 = vld [vmem:[#allocation5 + $0x40] sm:$0xff]
    %v116 = vld [vmem:[#allocation5 + $0x48] sm:$0xff]
    %v117 = vld [vmem:[#allocation5 + $0x50] sm:$0xff]
    %v118 = vld [vmem:[#allocation5 + $0x58] sm:$0xff]
    %v119 = vld [vmem:[#allocation5 + $0x60] sm:$0xff]
    %v120 = vld [vmem:[#allocation5 + $0x68] sm:$0xff]
    %v121 = vld [vmem:[#allocation5 + $0x70] sm:$0xff]
    %v122 = vld [vmem:[#allocation5 + $0x78] sm:$0xff]
    %v123 = vld [vmem:[#allocation5 + $0x80] sm:$0xff]
    %v124 = vld [vmem:[#allocation5 + $0x88] sm:$0xff]
    %v125 = vld [vmem:[#allocation5 + $0x90] sm:$0xff]
    %v126 = vld [vmem:[#allocation5 + $0x98] sm:$0xff]
    %v127 = vld [vmem:[#allocation5 + $0xa0] sm:$0xff]
    %v128 = vld [vmem:[#allocation5 + $0xa8] sm:$0xff]
    %v129 = vld [vmem:[#allocation5 + $0xb0] sm:$0xff]
    %v130 = vld [vmem:[#allocation5 + $0xb8] sm:$0xff]
    %v131 = vld [vmem:[#allocation5 + $0xc0] sm:$0xff]
    %v132 = vld [vmem:[#allocation5 + $0xc8] sm:$0xff]
    %v133 = vld [vmem:[#allocation5 + $0xd0] sm:$0xff]
    %v134 = vld [vmem:[#allocation5 + $0xd8] sm:$0xff]
    %v135 = vld [vmem:[#allocation5 + $0xe0] sm:$0xff]
    %v136 = vld [vmem:[#allocation5 + $0xe8] sm:$0xff]
    %v137 = vld [vmem:[#allocation5 + $0xf0] sm:$0xff]
    %v138 = vld [vmem:[#allocation5 + $0xf8] sm:$0xff]
    %v139 = vld [vmem:[#allocation5 + $0x100] sm:$0xff]
    %v140 = vld [vmem:[#allocation5 + $0x108] sm:$0xff]
    %v141 = vld [vmem:[#allocation5 + $0x110] sm:$0xff]
    %v142 = vld [vmem:[#allocation5 + $0x118] sm:$0xff]
    %v143 = vld [vmem:[#allocation5 + $0x120] sm:$0xff]
    %v144 = vld [vmem:[#allocation5 + $0x128] sm:$0xff]
    %v145 = vld [vmem:[#allocation5 + $0x130] sm:$0xff]
    %v146 = vld [vmem:[#allocation5 + $0x138] sm:$0xff]
    %v147 = vld [vmem:[#allocation5 + $0x140] sm:$0xff]
    %v148 = vld [vmem:[#allocation5 + $0x148] sm:$0xff]
    %v149 = vld [vmem:[#allocation5 + $0x150] sm:$0xff]
    %v150 = vld [vmem:[#allocation5 + $0x158] sm:$0xff]
    %v151 = vld [vmem:[#allocation5 + $0x160] sm:$0xff]
    %v152 = vld [vmem:[#allocation5 + $0x168] sm:$0xff]
    %v153 = vld [vmem:[#allocation5 + $0x170] sm:$0xff]
    %v154 = vld [vmem:[#allocation5 + $0x178] sm:$0xff]
    %v155 = vld [vmem:[%s2] sm:$0x3f]
    %v157 = vlaneseq
    %v158 = vshrl.u32 %v157, 7
    %v159 = vsub.s32 0, %v158
    %v160 = vrot.slane %v155, %v159
    %v161 = vlaneseq
    %v162 = vshrl.u32 %v161, 7
    %v163 = vsub.s32 1, %v162
    %v164 = vrot.slane %v155, %v163
    %v165 = vlaneseq
    %v166 = vshrl.u32 %v165, 7
    %v167 = vsub.s32 2, %v166
    %v168 = vrot.slane %v155, %v167
    %v169 = vlaneseq
    %v170 = vshrl.u32 %v169, 7
    %v171 = vsub.s32 3, %v170
    %v172 = vrot.slane %v155, %v171
    %v173 = vlaneseq
    %v174 = vshrl.u32 %v173, 7
    %v175 = vsub.s32 4, %v174
    %v176 = vrot.slane %v155, %v175
    %v177 = vlaneseq
    %v178 = vshrl.u32 %v177, 7
    %v179 = vsub.s32 5, %v178
    %v180 = vrot.slane %v155, %v179
    %v235 = vunpack.c.l.b16 %v107
    %v236 = vunpack.c.h.b16 %v107
    %v237 = vunpack.c.l.b16 %v108
    %v238 = vunpack.c.h.b16 %v108
    %v239 = vunpack.c.l.b16 %v109
    %v240 = vunpack.c.h.b16 %v109
    %v241 = vunpack.c.l.b16 %v110
    %v242 = vunpack.c.h.b16 %v110
    %v243 = vunpack.c.l.b16 %v111
    %v244 = vunpack.c.h.b16 %v111
    %v245 = vunpack.c.l.b16 %v112
    %v246 = vunpack.c.h.b16 %v112
    %v247 = vunpack.c.l.b16 %v113
    %v248 = vunpack.c.h.b16 %v113
    %v249 = vunpack.c.l.b16 %v114
    %v250 = vunpack.c.h.b16 %v114
    %v251 = vunpack.c.l.b16 %v115
    %v252 = vunpack.c.h.b16 %v115
    %v253 = vunpack.c.l.b16 %v116
    %v254 = vunpack.c.h.b16 %v116
    %v255 = vunpack.c.l.b16 %v117
    %v256 = vunpack.c.h.b16 %v117
    %v257 = vunpack.c.l.b16 %v118
    %v258 = vunpack.c.h.b16 %v118
    %v259 = vunpack.c.l.b16 %v119
    %v260 = vunpack.c.h.b16 %v119
    %v261 = vunpack.c.l.b16 %v120
    %v262 = vunpack.c.h.b16 %v120
    %v263 = vunpack.c.l.b16 %v121
    %v264 = vunpack.c.h.b16 %v121
    %v265 = vunpack.c.l.b16 %v122
    %v266 = vunpack.c.h.b16 %v122
    %v267 = vunpack.c.l.b16 %v123
    %v268 = vunpack.c.h.b16 %v123
    %v269 = vunpack.c.l.b16 %v124
    %v270 = vunpack.c.h.b16 %v124
    %v271 = vunpack.c.l.b16 %v125
    %v272 = vunpack.c.h.b16 %v125
    %v273 = vunpack.c.l.b16 %v126
    %v274 = vunpack.c.h.b16 %v126
    %v275 = vunpack.c.l.b16 %v127
    %v276 = vunpack.c.h.b16 %v127
    %v277 = vunpack.c.l.b16 %v128
    %v278 = vunpack.c.h.b16 %v128
    %v279 = vunpack.c.l.b16 %v129
    %v280 = vunpack.c.h.b16 %v129
    %v281 = vunpack.c.l.b16 %v130
    %v282 = vunpack.c.h.b16 %v130
    %v283 = vunpack.c.l.b16 %v131
    %v284 = vunpack.c.h.b16 %v131
    %v285 = vunpack.c.l.b16 %v132
    %v286 = vunpack.c.h.b16 %v132
    %v287 = vunpack.c.l.b16 %v133
    %v288 = vunpack.c.h.b16 %v133
    %v289 = vunpack.c.l.b16 %v134
    %v290 = vunpack.c.h.b16 %v134
    %v291 = vunpack.c.l.b16 %v135
    %v292 = vunpack.c.h.b16 %v135
    %v293 = vunpack.c.l.b16 %v136
    %v294 = vunpack.c.h.b16 %v136
    %v295 = vunpack.c.l.b16 %v137
    %v296 = vunpack.c.h.b16 %v137
    %v297 = vunpack.c.l.b16 %v138
    %v298 = vunpack.c.h.b16 %v138
    %v299 = vunpack.c.l.b16 %v139
    %v300 = vunpack.c.h.b16 %v139
    %v301 = vunpack.c.l.b16 %v140
    %v302 = vunpack.c.h.b16 %v140
    %v303 = vunpack.c.l.b16 %v141
    %v304 = vunpack.c.h.b16 %v141
    %v305 = vunpack.c.l.b16 %v142
    %v306 = vunpack.c.h.b16 %v142
    %v307 = vunpack.c.l.b16 %v143
    %v308 = vunpack.c.h.b16 %v143
    %v309 = vunpack.c.l.b16 %v144
    %v310 = vunpack.c.h.b16 %v144
    %v311 = vunpack.c.l.b16 %v145
    %v312 = vunpack.c.h.b16 %v145
    %v313 = vunpack.c.l.b16 %v146
    %v314 = vunpack.c.h.b16 %v146
    %v315 = vunpack.c.l.b16 %v147
    %v316 = vunpack.c.h.b16 %v147
    %v317 = vunpack.c.l.b16 %v148
    %v318 = vunpack.c.h.b16 %v148
    %v319 = vunpack.c.l.b16 %v149
    %v320 = vunpack.c.h.b16 %v149
    %v321 = vunpack.c.l.b16 %v150
    %v322 = vunpack.c.h.b16 %v150
    %v323 = vunpack.c.l.b16 %v151
    %v324 = vunpack.c.h.b16 %v151
    %v325 = vunpack.c.l.b16 %v152
    %v326 = vunpack.c.h.b16 %v152
    %v327 = vunpack.c.l.b16 %v153
    %v328 = vunpack.c.h.b16 %v153
    %v329 = vunpack.c.l.b16 %v154
    %v330 = vunpack.c.h.b16 %v154
    %v331 = vpack.c.b16 %v241, %v235
    %v332 = vpack.c.b16 %v242, %v236
    %v333 = vpack.c.b16 %v243, %v237
    %v334 = vpack.c.b16 %v244, %v238
    %v335 = vpack.c.b16 %v245, %v239
    %v336 = vpack.c.b16 %v246, %v240
    %v337 = vpack.c.b16 %v253, %v247
    %v338 = vpack.c.b16 %v254, %v248
    %v339 = vpack.c.b16 %v255, %v249
    %v340 = vpack.c.b16 %v256, %v250
    %v341 = vpack.c.b16 %v257, %v251
    %v342 = vpack.c.b16 %v258, %v252
    %v343 = vpack.c.b16 %v265, %v259
    %v344 = vpack.c.b16 %v266, %v260
    %v345 = vpack.c.b16 %v267, %v261
    %v346 = vpack.c.b16 %v268, %v262
    %v347 = vpack.c.b16 %v269, %v263
    %v348 = vpack.c.b16 %v270, %v264
    %v349 = vpack.c.b16 %v277, %v271
    %v350 = vpack.c.b16 %v278, %v272
    %v351 = vpack.c.b16 %v279, %v273
    %v352 = vpack.c.b16 %v280, %v274
    %v353 = vpack.c.b16 %v281, %v275
    %v354 = vpack.c.b16 %v282, %v276
    %v355 = vpack.c.b16 %v289, %v283
    %v356 = vpack.c.b16 %v290, %v284
    %v357 = vpack.c.b16 %v291, %v285
    %v358 = vpack.c.b16 %v292, %v286
    %v359 = vpack.c.b16 %v293, %v287
    %v360 = vpack.c.b16 %v294, %v288
    %v361 = vpack.c.b16 %v301, %v295
    %v362 = vpack.c.b16 %v302, %v296
    %v363 = vpack.c.b16 %v303, %v297
    %v364 = vpack.c.b16 %v304, %v298
    %v365 = vpack.c.b16 %v305, %v299
    %v366 = vpack.c.b16 %v306, %v300
    %v367 = vpack.c.b16 %v313, %v307
    %v368 = vpack.c.b16 %v314, %v308
    %v369 = vpack.c.b16 %v315, %v309
    %v370 = vpack.c.b16 %v316, %v310
    %v371 = vpack.c.b16 %v317, %v311
    %v372 = vpack.c.b16 %v318, %v312
    %v373 = vpack.c.b16 %v325, %v319
    %v374 = vpack.c.b16 %v326, %v320
    %v375 = vpack.c.b16 %v327, %v321
    %v376 = vpack.c.b16 %v328, %v322
    %v377 = vpack.c.b16 %v329, %v323
    %v378 = vpack.c.b16 %v330, %v324
    %427 = vmatprep.subr.bf16.mxu0 %v332
    %428 = vmatpush1.bf16.msra.mxu0 %v331
    %429 = vmatprep.subr.bf16.mxu0 %v338
    %430 = vmatpush1.bf16.msra.mxu0 %v337
    %431 = vmatprep.subr.bf16.mxu0 %v344
    %432 = vmatpush1.bf16.msra.mxu0 %v343
    %433 = vmatprep.subr.bf16.mxu0 %v350
    %434 = vmatpush1.bf16.msra.mxu0 %v349
    %435 = vmatprep.subr.bf16.mxu0 %v356
    %436 = vmatpush1.bf16.msra.mxu0 %v355
    %437 = vmatprep.subr.bf16.mxu0 %v362
    %438 = vmatpush1.bf16.msra.mxu0 %v361
    %439 = vmatprep.subr.bf16.mxu0 %v368
    %440 = vmatpush1.bf16.msra.mxu0 %v367
    %441 = vmatprep.subr.bf16.mxu0 %v374
    %442 = vmatpush1.bf16.msra.mxu0 %v373
    %443 = vmatprep.subr.bf16.mxu0 0
    %444 = vmatpush1.bf16.msra.mxu0 0
    %445 = vmatprep.subr.bf16.mxu0 0
    %446 = vmatpush1.bf16.msra.mxu0 0
    %447 = vmatprep.subr.bf16.mxu0 0
    %448 = vmatpush1.bf16.msra.mxu0 0
    %449 = vmatprep.subr.bf16.mxu0 0
    %450 = vmatpush1.bf16.msra.mxu0 0
    %451 = vmatprep.subr.bf16.mxu0 0
    %452 = vmatpush1.bf16.msra.mxu0 0
    %453 = vmatprep.subr.bf16.mxu0 0
    %454 = vmatpush1.bf16.msra.mxu0 0
    %455 = vmatprep.subr.bf16.mxu0 0
    %456 = vmatpush1.bf16.msra.mxu0 0
    %457 = vmatprep.subr.bf16.mxu0 0
    %458 = vmatpush1.bf16.msra.mxu0 0
    %459 = vmatprep.mubr.bf16.mxu0 0
    %460 = vmatmul.mubr.bf16.gmra.mrb[0].mxu0 %v99
    %v461 = vpop.f32.mrb[0].mxu0
    %v462 = vadd.f32 %v160, %v461
    %v463 = vpop.f32.mrb[0].mxu0
    %v464 = vadd.f32 %v164, %v463
    %v465 = vpop.f32.mrb[0].mxu0
    %v466 = vadd.f32 %v160, %v465
    %v467 = vpop.f32.mrb[0].mxu0
    %v468 = vadd.f32 %v164, %v467
    %469 = vmatprep.mubr.bf16.mxu0 0
    %470 = vmatmul.mubr.bf16.gmra.mrb[0].mxu0 %v100
    %v471 = vpop.f32.mrb[0].mxu0
    %v472 = vadd.f32 %v160, %v471
    %v473 = vpop.f32.mrb[0].mxu0
    %v474 = vadd.f32 %v164, %v473
    %v475 = vpop.f32.mrb[0].mxu0
    %v476 = vadd.f32 %v160, %v475
    %v477 = vpop.f32.mrb[0].mxu0
    %v478 = vadd.f32 %v164, %v477
    %479 = vmatprep.mubr.bf16.mxu0 0
    %480 = vmatmul.mubr.bf16.gmra.mrb[0].mxu0 %v101
    %v481 = vpop.f32.mrb[0].mxu0
    %v482 = vadd.f32 %v160, %v481
    %v483 = vpop.f32.mrb[0].mxu0
    %v484 = vadd.f32 %v164, %v483
    %v485 = vpop.f32.mrb[0].mxu0
    %v486 = vadd.f32 %v160, %v485
    %v487 = vpop.f32.mrb[0].mxu0
    %v488 = vadd.f32 %v164, %v487
    %489 = vmatprep.mubr.bf16.mxu0 0
    %490 = vmatmul.mubr.bf16.gmra.mrb[0].mxu0 %v102
    %v491 = vpop.f32.mrb[0].mxu0
    %v492 = vadd.f32 %v160, %v491
    %v493 = vpop.f32.mrb[0].mxu0
    %v494 = vadd.f32 %v164, %v493
    %v495 = vpop.f32.mrb[0].mxu0
    %v496 = vadd.f32 %v160, %v495
    %v497 = vpop.f32.mrb[0].mxu0
    %v498 = vadd.f32 %v164, %v497
    %499 = vmatprep.mubr.bf16.mxu0 0
    %500 = vmatmul.mubr.bf16.gmra.mrb[0].mxu0 %v103
    %v501 = vpop.f32.mrb[0].mxu0
    %v502 = vadd.f32 %v160, %v501
    %v503 = vpop.f32.mrb[0].mxu0
    %v504 = vadd.f32 %v164, %v503
    %v505 = vpop.f32.mrb[0].mxu0
    %v506 = vadd.f32 %v160, %v505
    %v507 = vpop.f32.mrb[0].mxu0
    %v508 = vadd.f32 %v164, %v507
    %509 = vmatprep.mubr.bf16.mxu0 0
    %510 = vmatmul.mubr.bf16.gmra.mrb[0].mxu0 %v104
    %v511 = vpop.f32.mrb[0].mxu0
    %v512 = vadd.f32 %v160, %v511
    %v513 = vpop.f32.mrb[0].mxu0
    %v514 = vadd.f32 %v164, %v513
    %v515 = vpop.f32.mrb[0].mxu0
    %v516 = vadd.f32 %v160, %v515
    %v517 = vpop.f32.mrb[0].mxu0
    %v518 = vadd.f32 %v164, %v517
    %519 = vmatprep.mubr.bf16.mxu0 0
    %520 = vmatmul.mubr.bf16.gmra.mrb[0].mxu0 %v105
    %v521 = vpop.f32.mrb[0].mxu0
    %v522 = vadd.f32 %v160, %v521
    %v523 = vpop.f32.mrb[0].mxu0
    %v524 = vadd.f32 %v164, %v523
    %v525 = vpop.f32.mrb[0].mxu0
    %v526 = vadd.f32 %v160, %v525
    %v527 = vpop.f32.mrb[0].mxu0
    %v528 = vadd.f32 %v164, %v527
    %529 = vmatprep.mubr.bf16.mxu0 0
    %530 = vmatmul.mubr.bf16.gmra.mrb[0].mxu0 %v106
    %v531 = vpop.f32.mrb[0].mxu0
    %v532 = vadd.f32 %v160, %v531
    %v533 = vpop.f32.mrb[0].mxu0
    %v534 = vadd.f32 %v164, %v533
    %v535 = vpop.f32.mrb[0].mxu0
    %v536 = vadd.f32 %v160, %v535
    %v537 = vpop.f32.mrb[0].mxu0
    %v538 = vadd.f32 %v164, %v537
    %539 = vdwg.mxu0
    %540 = vmatprep.subr.bf16.mxu0 %v334
    %541 = vmatpush1.bf16.msra.mxu0 %v333
    %542 = vmatprep.subr.bf16.mxu0 %v340
    %543 = vmatpush1.bf16.msra.mxu0 %v339
    %544 = vmatprep.subr.bf16.mxu0 %v346
    %545 = vmatpush1.bf16.msra.mxu0 %v345
    %546 = vmatprep.subr.bf16.mxu0 %v352
    %547 = vmatpush1.bf16.msra.mxu0 %v351
    %548 = vmatprep.subr.bf16.mxu0 %v358
    %549 = vmatpush1.bf16.msra.mxu0 %v357
    %550 = vmatprep.subr.bf16.mxu0 %v364
    %551 = vmatpush1.bf16.msra.mxu0 %v363
    %552 = vmatprep.subr.bf16.mxu0 %v370
    %553 = vmatpush1.bf16.msra.mxu0 %v369
    %554 = vmatprep.subr.bf16.mxu0 %v376
    %555 = vmatpush1.bf16.msra.mxu0 %v375
    %556 = vmatprep.subr.bf16.mxu0 0
    %557 = vmatpush1.bf16.msra.mxu0 0
    %558 = vmatprep.subr.bf16.mxu0 0
    %559 = vmatpush1.bf16.msra.mxu0 0
    %560 = vmatprep.subr.bf16.mxu0 0
    %561 = vmatpush1.bf16.msra.mxu0 0
    %562 = vmatprep.subr.bf16.mxu0 0
    %563 = vmatpush1.bf16.msra.mxu0 0
    %564 = vmatprep.subr.bf16.mxu0 0
    %565 = vmatpush1.bf16.msra.mxu0 0
    %566 = vmatprep.subr.bf16.mxu0 0
    %567 = vmatpush1.bf16.msra.mxu0 0
    %568 = vmatprep.subr.bf16.mxu0 0
    %569 = vmatpush1.bf16.msra.mxu0 0
    %570 = vmatprep.subr.bf16.mxu0 0
    %571 = vmatpush1.bf16.msra.mxu0 0
    %572 = vmatprep.mubr.bf16.mxu0 0
    %573 = vmatmul.mubr.bf16.gmra.mrb[0].mxu0 %v99
    %v574 = vpop.f32.mrb[0].mxu0
    %v575 = vadd.f32 %v168, %v574
    %v576 = vpop.f32.mrb[0].mxu0
    %v577 = vadd.f32 %v172, %v576
    %v578 = vpop.f32.mrb[0].mxu0
    %v579 = vadd.f32 %v168, %v578
    %v580 = vpop.f32.mrb[0].mxu0
    %v581 = vadd.f32 %v172, %v580
    %582 = vmatprep.mubr.bf16.mxu0 0
    %583 = vmatmul.mubr.bf16.gmra.mrb[0].mxu0 %v100
    %v584 = vpop.f32.mrb[0].mxu0
    %v585 = vadd.f32 %v168, %v584
    %v586 = vpop.f32.mrb[0].mxu0
    %v587 = vadd.f32 %v172, %v586
    %v588 = vpop.f32.mrb[0].mxu0
    %v589 = vadd.f32 %v168, %v588
    %v590 = vpop.f32.mrb[0].mxu0
    %v591 = vadd.f32 %v172, %v590
    %592 = vmatprep.mubr.bf16.mxu0 0
    %593 = vmatmul.mubr.bf16.gmra.mrb[0].mxu0 %v101
    %v594 = vpop.f32.mrb[0].mxu0
    %v595 = vadd.f32 %v168, %v594
    %v596 = vpop.f32.mrb[0].mxu0
    %v597 = vadd.f32 %v172, %v596
    %v598 = vpop.f32.mrb[0].mxu0
    %v599 = vadd.f32 %v168, %v598
    %v600 = vpop.f32.mrb[0].mxu0
    %v601 = vadd.f32 %v172, %v600
    %602 = vmatprep.mubr.bf16.mxu0 0
    %603 = vmatmul.mubr.bf16.gmra.mrb[0].mxu0 %v102
    %v604 = vpop.f32.mrb[0].mxu0
    %v605 = vadd.f32 %v168, %v604
    %v606 = vpop.f32.mrb[0].mxu0
    %v607 = vadd.f32 %v172, %v606
    %v608 = vpop.f32.mrb[0].mxu0
    %v609 = vadd.f32 %v168, %v608
    %v610 = vpop.f32.mrb[0].mxu0
    %v611 = vadd.f32 %v172, %v610
    %612 = vmatprep.mubr.bf16.mxu0 0
    %613 = vmatmul.mubr.bf16.gmra.mrb[0].mxu0 %v103
    %v614 = vpop.f32.mrb[0].mxu0
    %v615 = vadd.f32 %v168, %v614
    %v616 = vpop.f32.mrb[0].mxu0
    %v617 = vadd.f32 %v172, %v616
    %v618 = vpop.f32.mrb[0].mxu0
    %v619 = vadd.f32 %v168, %v618
    %v620 = vpop.f32.mrb[0].mxu0
    %v621 = vadd.f32 %v172, %v620
    %622 = vmatprep.mubr.bf16.mxu0 0
    %623 = vmatmul.mubr.bf16.gmra.mrb[0].mxu0 %v104
    %v624 = vpop.f32.mrb[0].mxu0
    %v625 = vadd.f32 %v168, %v624
    %v626 = vpop.f32.mrb[0].mxu0
    %v627 = vadd.f32 %v172, %v626
    %v628 = vpop.f32.mrb[0].mxu0
    %v629 = vadd.f32 %v168, %v628
    %v630 = vpop.f32.mrb[0].mxu0
    %v631 = vadd.f32 %v172, %v630
    %632 = vmatprep.mubr.bf16.mxu0 0
    %633 = vmatmul.mubr.bf16.gmra.mrb[0].mxu0 %v105
    %v634 = vpop.f32.mrb[0].mxu0
    %v635 = vadd.f32 %v168, %v634
    %v636 = vpop.f32.mrb[0].mxu0
    %v637 = vadd.f32 %v172, %v636
    %v638 = vpop.f32.mrb[0].mxu0
    %v639 = vadd.f32 %v168, %v638
    %v640 = vpop.f32.mrb[0].mxu0
    %v641 = vadd.f32 %v172, %v640
    %642 = vmatprep.mubr.bf16.mxu0 0
    %643 = vmatmul.mubr.bf16.gmra.mrb[0].mxu0 %v106
    %v644 = vpop.f32.mrb[0].mxu0
    %v645 = vadd.f32 %v168, %v644
    %v646 = vpop.f32.mrb[0].mxu0
    %v647 = vadd.f32 %v172, %v646
    %v648 = vpop.f32.mrb[0].mxu0
    %v649 = vadd.f32 %v168, %v648
    %v650 = vpop.f32.mrb[0].mxu0
    %v651 = vadd.f32 %v172, %v650
    %652 = vdwg.mxu0
    %653 = vmatprep.subr.bf16.mxu0 %v336
    %654 = vmatpush1.bf16.msra.mxu0 %v335
    %655 = vmatprep.subr.bf16.mxu0 %v342
    %656 = vmatpush1.bf16.msra.mxu0 %v341
    %657 = vmatprep.subr.bf16.mxu0 %v348
    %658 = vmatpush1.bf16.msra.mxu0 %v347
    %659 = vmatprep.subr.bf16.mxu0 %v354
    %660 = vmatpush1.bf16.msra.mxu0 %v353
    %661 = vmatprep.subr.bf16.mxu0 %v360
    %662 = vmatpush1.bf16.msra.mxu0 %v359
    %663 = vmatprep.subr.bf16.mxu0 %v366
    %664 = vmatpush1.bf16.msra.mxu0 %v365
    %665 = vmatprep.subr.bf16.mxu0 %v372
    %666 = vmatpush1.bf16.msra.mxu0 %v371
    %667 = vmatprep.subr.bf16.mxu0 %v378
    %668 = vmatpush1.bf16.msra.mxu0 %v377
    %669 = vmatprep.subr.bf16.mxu0 0
    %670 = vmatpush1.bf16.msra.mxu0 0
    %671 = vmatprep.subr.bf16.mxu0 0
    %672 = vmatpush1.bf16.msra.mxu0 0
    %673 = vmatprep.subr.bf16.mxu0 0
    %674 = vmatpush1.bf16.msra.mxu0 0
    %675 = vmatprep.subr.bf16.mxu0 0
    %676 = vmatpush1.bf16.msra.mxu0 0
    %677 = vmatprep.subr.bf16.mxu0 0
    %678 = vmatpush1.bf16.msra.mxu0 0
    %679 = vmatprep.subr.bf16.mxu0 0
    %680 = vmatpush1.bf16.msra.mxu0 0
    %681 = vmatprep.subr.bf16.mxu0 0
    %682 = vmatpush1.bf16.msra.mxu0 0
    %683 = vmatprep.subr.bf16.mxu0 0
    %684 = vmatpush1.bf16.msra.mxu0 0
    %685 = vmatprep.mubr.bf16.mxu0 0
    %686 = vmatmul.mubr.bf16.gmra.mrb[0].mxu0 %v99
    %v687 = vpop.f32.mrb[0].mxu0
    %v688 = vadd.f32 %v176, %v687
    %v689 = vpop.f32.mrb[0].mxu0
    %v690 = vadd.f32 %v180, %v689
    %v691 = vpop.f32.mrb[0].mxu0
    %v692 = vadd.f32 %v176, %v691
    %v693 = vpop.f32.mrb[0].mxu0
    %v694 = vadd.f32 %v180, %v693
    %695 = vmatprep.mubr.bf16.mxu0 0
    %696 = vmatmul.mubr.bf16.gmra.mrb[0].mxu0 %v100
    %v697 = vpop.f32.mrb[0].mxu0
    %v698 = vadd.f32 %v176, %v697
    %v699 = vpop.f32.mrb[0].mxu0
    %v700 = vadd.f32 %v180, %v699
    %v701 = vpop.f32.mrb[0].mxu0
    %v702 = vadd.f32 %v176, %v701
    %v703 = vpop.f32.mrb[0].mxu0
    %v704 = vadd.f32 %v180, %v703
    %705 = vmatprep.mubr.bf16.mxu0 0
    %706 = vmatmul.mubr.bf16.gmra.mrb[0].mxu0 %v101
    %v707 = vpop.f32.mrb[0].mxu0
    %v708 = vadd.f32 %v176, %v707
    %v709 = vpop.f32.mrb[0].mxu0
    %v710 = vadd.f32 %v180, %v709
    %v711 = vpop.f32.mrb[0].mxu0
    %v712 = vadd.f32 %v176, %v711
    %v713 = vpop.f32.mrb[0].mxu0
    %v714 = vadd.f32 %v180, %v713
    %715 = vmatprep.mubr.bf16.mxu0 0
    %716 = vmatmul.mubr.bf16.gmra.mrb[0].mxu0 %v102
    %v717 = vpop.f32.mrb[0].mxu0
    %v718 = vadd.f32 %v176, %v717
    %v719 = vpop.f32.mrb[0].mxu0
    %v720 = vadd.f32 %v180, %v719
    %v721 = vpop.f32.mrb[0].mxu0
    %v722 = vadd.f32 %v176, %v721
    %v723 = vpop.f32.mrb[0].mxu0
    %v724 = vadd.f32 %v180, %v723
    %725 = vmatprep.mubr.bf16.mxu0 0
    %726 = vmatmul.mubr.bf16.gmra.mrb[0].mxu0 %v103
    %v727 = vpop.f32.mrb[0].mxu0
    %v728 = vadd.f32 %v176, %v727
    %v729 = vpop.f32.mrb[0].mxu0
    %v730 = vadd.f32 %v180, %v729
    %v731 = vpop.f32.mrb[0].mxu0
    %v732 = vadd.f32 %v176, %v731
    %v733 = vpop.f32.mrb[0].mxu0
    %v734 = vadd.f32 %v180, %v733
    %735 = vmatprep.mubr.bf16.mxu0 0
    %736 = vmatmul.mubr.bf16.gmra.mrb[0].mxu0 %v104
    %v737 = vpop.f32.mrb[0].mxu0
    %v738 = vadd.f32 %v176, %v737
    %v739 = vpop.f32.mrb[0].mxu0
    %v740 = vadd.f32 %v180, %v739
    %v741 = vpop.f32.mrb[0].mxu0
    %v742 = vadd.f32 %v176, %v741
    %v743 = vpop.f32.mrb[0].mxu0
    %v744 = vadd.f32 %v180, %v743
    %745 = vmatprep.mubr.bf16.mxu0 0
    %746 = vmatmul.mubr.bf16.gmra.mrb[0].mxu0 %v105
    %v747 = vpop.f32.mrb[0].mxu0
    %v748 = vadd.f32 %v176, %v747
    %v749 = vpop.f32.mrb[0].mxu0
    %v750 = vadd.f32 %v180, %v749
    %v751 = vpop.f32.mrb[0].mxu0
    %v752 = vadd.f32 %v176, %v751
    %v753 = vpop.f32.mrb[0].mxu0
    %v754 = vadd.f32 %v180, %v753
    %755 = vmatprep.mubr.bf16.mxu0 0
    %756 = vmatmul.mubr.bf16.gmra.mrb[0].mxu0 %v106
    %v757 = vpop.f32.mrb[0].mxu0
    %v758 = vadd.f32 %v176, %v757
    %v759 = vpop.f32.mrb[0].mxu0
    %v760 = vadd.f32 %v180, %v759
    %v761 = vpop.f32.mrb[0].mxu0
    %v762 = vadd.f32 %v176, %v761
    %v763 = vpop.f32.mrb[0].mxu0
    %v764 = vadd.f32 %v180, %v763
    %765 = vdwg.mxu0
    %vm766 = vcmp.gt.f32.partialorder %v462, 0.0
    %vm767 = vcmp.gt.f32.partialorder %v464, 0.0
    %vm768 = vcmp.gt.f32.partialorder %v575, 0.0
    %vm769 = vcmp.gt.f32.partialorder %v577, 0.0
    %vm770 = vcmp.gt.f32.partialorder %v688, 0.0
    %vm771 = vcmp.gt.f32.partialorder %v690, 0.0
    %vm772 = vcmp.gt.f32.partialorder %v466, 0.0
    %vm773 = vcmp.gt.f32.partialorder %v468, 0.0
    %vm774 = vcmp.gt.f32.partialorder %v579, 0.0
    %vm775 = vcmp.gt.f32.partialorder %v581, 0.0
    %vm776 = vcmp.gt.f32.partialorder %v692, 0.0
    %vm777 = vcmp.gt.f32.partialorder %v694, 0.0
    %vm778 = vcmp.gt.f32.partialorder %v472, 0.0
    %vm779 = vcmp.gt.f32.partialorder %v474, 0.0
    %vm780 = vcmp.gt.f32.partialorder %v585, 0.0
    %vm781 = vcmp.gt.f32.partialorder %v587, 0.0
    %vm782 = vcmp.gt.f32.partialorder %v698, 0.0
    %vm783 = vcmp.gt.f32.partialorder %v700, 0.0
    %vm784 = vcmp.gt.f32.partialorder %v476, 0.0
    %vm785 = vcmp.gt.f32.partialorder %v478, 0.0
    %vm786 = vcmp.gt.f32.partialorder %v589, 0.0
    %vm787 = vcmp.gt.f32.partialorder %v591, 0.0
    %vm788 = vcmp.gt.f32.partialorder %v702, 0.0
    %vm789 = vcmp.gt.f32.partialorder %v704, 0.0
    %vm790 = vcmp.gt.f32.partialorder %v482, 0.0
    %vm791 = vcmp.gt.f32.partialorder %v484, 0.0
    %vm792 = vcmp.gt.f32.partialorder %v595, 0.0
    %vm793 = vcmp.gt.f32.partialorder %v597, 0.0
    %vm794 = vcmp.gt.f32.partialorder %v708, 0.0
    %vm795 = vcmp.gt.f32.partialorder %v710, 0.0
    %vm796 = vcmp.gt.f32.partialorder %v486, 0.0
    %vm797 = vcmp.gt.f32.partialorder %v488, 0.0
    %vm798 = vcmp.gt.f32.partialorder %v599, 0.0
    %vm799 = vcmp.gt.f32.partialorder %v601, 0.0
    %vm800 = vcmp.gt.f32.partialorder %v712, 0.0
    %vm801 = vcmp.gt.f32.partialorder %v714, 0.0
    %vm802 = vcmp.gt.f32.partialorder %v492, 0.0
    %vm803 = vcmp.gt.f32.partialorder %v494, 0.0
    %vm804 = vcmp.gt.f32.partialorder %v605, 0.0
    %vm805 = vcmp.gt.f32.partialorder %v607, 0.0
    %vm806 = vcmp.gt.f32.partialorder %v718, 0.0
    %vm807 = vcmp.gt.f32.partialorder %v720, 0.0
    %vm808 = vcmp.gt.f32.partialorder %v496, 0.0
    %vm809 = vcmp.gt.f32.partialorder %v498, 0.0
    %vm810 = vcmp.gt.f32.partialorder %v609, 0.0
    %vm811 = vcmp.gt.f32.partialorder %v611, 0.0
    %vm812 = vcmp.gt.f32.partialorder %v722, 0.0
    %vm813 = vcmp.gt.f32.partialorder %v724, 0.0
    %vm814 = vcmp.gt.f32.partialorder %v502, 0.0
    %vm815 = vcmp.gt.f32.partialorder %v504, 0.0
    %vm816 = vcmp.gt.f32.partialorder %v615, 0.0
    %vm817 = vcmp.gt.f32.partialorder %v617, 0.0
    %vm818 = vcmp.gt.f32.partialorder %v728, 0.0
    %vm819 = vcmp.gt.f32.partialorder %v730, 0.0
    %vm820 = vcmp.gt.f32.partialorder %v506, 0.0
    %vm821 = vcmp.gt.f32.partialorder %v508, 0.0
    %vm822 = vcmp.gt.f32.partialorder %v619, 0.0
    %vm823 = vcmp.gt.f32.partialorder %v621, 0.0
    %vm824 = vcmp.gt.f32.partialorder %v732, 0.0
    %vm825 = vcmp.gt.f32.partialorder %v734, 0.0
    %vm826 = vcmp.gt.f32.partialorder %v512, 0.0
    %vm827 = vcmp.gt.f32.partialorder %v514, 0.0
    %vm828 = vcmp.gt.f32.partialorder %v625, 0.0
    %vm829 = vcmp.gt.f32.partialorder %v627, 0.0
    %vm830 = vcmp.gt.f32.partialorder %v738, 0.0
    %vm831 = vcmp.gt.f32.partialorder %v740, 0.0
    %vm832 = vcmp.gt.f32.partialorder %v516, 0.0
    %vm833 = vcmp.gt.f32.partialorder %v518, 0.0
    %vm834 = vcmp.gt.f32.partialorder %v629, 0.0
    %vm835 = vcmp.gt.f32.partialorder %v631, 0.0
    %vm836 = vcmp.gt.f32.partialorder %v742, 0.0
    %vm837 = vcmp.gt.f32.partialorder %v744, 0.0
    %vm838 = vcmp.gt.f32.partialorder %v522, 0.0
    %vm839 = vcmp.gt.f32.partialorder %v524, 0.0
    %vm840 = vcmp.gt.f32.partialorder %v635, 0.0
    %vm841 = vcmp.gt.f32.partialorder %v637, 0.0
    %vm842 = vcmp.gt.f32.partialorder %v748, 0.0
    %vm843 = vcmp.gt.f32.partialorder %v750, 0.0
    %vm844 = vcmp.gt.f32.partialorder %v526, 0.0
    %vm845 = vcmp.gt.f32.partialorder %v528, 0.0
    %vm846 = vcmp.gt.f32.partialorder %v639, 0.0
    %vm847 = vcmp.gt.f32.partialorder %v641, 0.0
    %vm848 = vcmp.gt.f32.partialorder %v752, 0.0
    %vm849 = vcmp.gt.f32.partialorder %v754, 0.0
    %vm850 = vcmp.gt.f32.partialorder %v532, 0.0
    %vm851 = vcmp.gt.f32.partialorder %v534, 0.0
    %vm852 = vcmp.gt.f32.partialorder %v645, 0.0
    %vm853 = vcmp.gt.f32.partialorder %v647, 0.0
    %vm854 = vcmp.gt.f32.partialorder %v758, 0.0
    %vm855 = vcmp.gt.f32.partialorder %v760, 0.0
    %vm856 = vcmp.gt.f32.partialorder %v536, 0.0
    %vm857 = vcmp.gt.f32.partialorder %v538, 0.0
    %vm858 = vcmp.gt.f32.partialorder %v649, 0.0
    %vm859 = vcmp.gt.f32.partialorder %v651, 0.0
    %vm860 = vcmp.gt.f32.partialorder %v762, 0.0
    %vm861 = vcmp.gt.f32.partialorder %v764, 0.0
    %v862 = vmul.f32 %v462, 0.01
    %v863 = vmul.f32 %v464, 0.01
    %v864 = vmul.f32 %v575, 0.01
    %v865 = vmul.f32 %v577, 0.01
    %v866 = vmul.f32 %v688, 0.01
    %v867 = vmul.f32 %v690, 0.01
    %v868 = vmul.f32 %v466, 0.01
    %v869 = vmul.f32 %v468, 0.01
    %v870 = vmul.f32 %v579, 0.01
    %v871 = vmul.f32 %v581, 0.01
    %v872 = vmul.f32 %v692, 0.01
    %v873 = vmul.f32 %v694, 0.01
    %v874 = vmul.f32 %v472, 0.01
    %v875 = vmul.f32 %v474, 0.01
    %v876 = vmul.f32 %v585, 0.01
    %v877 = vmul.f32 %v587, 0.01
    %v878 = vmul.f32 %v698, 0.01
    %v879 = vmul.f32 %v700, 0.01
    %v880 = vmul.f32 %v476, 0.01
    %v881 = vmul.f32 %v478, 0.01
    %v882 = vmul.f32 %v589, 0.01
    %v883 = vmul.f32 %v591, 0.01
    %v884 = vmul.f32 %v702, 0.01
    %v885 = vmul.f32 %v704, 0.01
    %v886 = vmul.f32 %v482, 0.01
    %v887 = vmul.f32 %v484, 0.01
    %v888 = vmul.f32 %v595, 0.01
    %v889 = vmul.f32 %v597, 0.01
    %v890 = vmul.f32 %v708, 0.01
    %v891 = vmul.f32 %v710, 0.01
    %v892 = vmul.f32 %v486, 0.01
    %v893 = vmul.f32 %v488, 0.01
    %v894 = vmul.f32 %v599, 0.01
    %v895 = vmul.f32 %v601, 0.01
    %v896 = vmul.f32 %v712, 0.01
    %v897 = vmul.f32 %v714, 0.01
    %v898 = vmul.f32 %v492, 0.01
    %v899 = vmul.f32 %v494, 0.01
    %v900 = vmul.f32 %v605, 0.01
    %v901 = vmul.f32 %v607, 0.01
    %v902 = vmul.f32 %v718, 0.01
    %v903 = vmul.f32 %v720, 0.01
    %v904 = vmul.f32 %v496, 0.01
    %v905 = vmul.f32 %v498, 0.01
    %v906 = vmul.f32 %v609, 0.01
    %v907 = vmul.f32 %v611, 0.01
    %v908 = vmul.f32 %v722, 0.01
    %v909 = vmul.f32 %v724, 0.01
    %v910 = vmul.f32 %v502, 0.01
    %v911 = vmul.f32 %v504, 0.01
    %v912 = vmul.f32 %v615, 0.01
    %v913 = vmul.f32 %v617, 0.01
    %v914 = vmul.f32 %v728, 0.01
    %v915 = vmul.f32 %v730, 0.01
    %v916 = vmul.f32 %v506, 0.01
    %v917 = vmul.f32 %v508, 0.01
    %v918 = vmul.f32 %v619, 0.01
    %v919 = vmul.f32 %v621, 0.01
    %v920 = vmul.f32 %v732, 0.01
    %v921 = vmul.f32 %v734, 0.01
    %v922 = vmul.f32 %v512, 0.01
    %v923 = vmul.f32 %v514, 0.01
    %v924 = vmul.f32 %v625, 0.01
    %v925 = vmul.f32 %v627, 0.01
    %v926 = vmul.f32 %v738, 0.01
    %v927 = vmul.f32 %v740, 0.01
    %v928 = vmul.f32 %v516, 0.01
    %v929 = vmul.f32 %v518, 0.01
    %v930 = vmul.f32 %v629, 0.01
    %v931 = vmul.f32 %v631, 0.01
    %v932 = vmul.f32 %v742, 0.01
    %v933 = vmul.f32 %v744, 0.01
    %v934 = vmul.f32 %v522, 0.01
    %v935 = vmul.f32 %v524, 0.01
    %v936 = vmul.f32 %v635, 0.01
    %v937 = vmul.f32 %v637, 0.01
    %v938 = vmul.f32 %v748, 0.01
    %v939 = vmul.f32 %v750, 0.01
    %v940 = vmul.f32 %v526, 0.01
    %v941 = vmul.f32 %v528, 0.01
    %v942 = vmul.f32 %v639, 0.01
    %v943 = vmul.f32 %v641, 0.01
    %v944 = vmul.f32 %v752, 0.01
    %v945 = vmul.f32 %v754, 0.01
    %v946 = vmul.f32 %v532, 0.01
    %v947 = vmul.f32 %v534, 0.01
    %v948 = vmul.f32 %v645, 0.01
    %v949 = vmul.f32 %v647, 0.01
    %v950 = vmul.f32 %v758, 0.01
    %v951 = vmul.f32 %v760, 0.01
    %v952 = vmul.f32 %v536, 0.01
    %v953 = vmul.f32 %v538, 0.01
    %v954 = vmul.f32 %v649, 0.01
    %v955 = vmul.f32 %v651, 0.01
    %v956 = vmul.f32 %v762, 0.01
    %v957 = vmul.f32 %v764, 0.01
    %v958 = vsel %vm766, %v462, %v862
    %v959 = vsel %vm767, %v464, %v863
    %v960 = vsel %vm768, %v575, %v864
    %v961 = vsel %vm769, %v577, %v865
    %v962 = vsel %vm770, %v688, %v866
    %v963 = vsel %vm771, %v690, %v867
    %v964 = vsel %vm772, %v466, %v868
    %v965 = vsel %vm773, %v468, %v869
    %v966 = vsel %vm774, %v579, %v870
    %v967 = vsel %vm775, %v581, %v871
    %v968 = vsel %vm776, %v692, %v872
    %v969 = vsel %vm777, %v694, %v873
    %v970 = vsel %vm778, %v472, %v874
    %v971 = vsel %vm779, %v474, %v875
    %v972 = vsel %vm780, %v585, %v876
    %v973 = vsel %vm781, %v587, %v877
    %v974 = vsel %vm782, %v698, %v878
    %v975 = vsel %vm783, %v700, %v879
    %v976 = vsel %vm784, %v476, %v880
    %v977 = vsel %vm785, %v478, %v881
    %v978 = vsel %vm786, %v589, %v882
    %v979 = vsel %vm787, %v591, %v883
    %v980 = vsel %vm788, %v702, %v884
    %v981 = vsel %vm789, %v704, %v885
    %v982 = vsel %vm790, %v482, %v886
    %v983 = vsel %vm791, %v484, %v887
    %v984 = vsel %vm792, %v595, %v888
    %v985 = vsel %vm793, %v597, %v889
    %v986 = vsel %vm794, %v708, %v890
    %v987 = vsel %vm795, %v710, %v891
    %v988 = vsel %vm796, %v486, %v892
    %v989 = vsel %vm797, %v488, %v893
    %v990 = vsel %vm798, %v599, %v894
    %v991 = vsel %vm799, %v601, %v895
    %v992 = vsel %vm800, %v712, %v896
    %v993 = vsel %vm801, %v714, %v897
    %v994 = vsel %vm802, %v492, %v898
    %v995 = vsel %vm803, %v494, %v899
    %v996 = vsel %vm804, %v605, %v900
    %v997 = vsel %vm805, %v607, %v901
    %v998 = vsel %vm806, %v718, %v902
    %v999 = vsel %vm807, %v720, %v903
    %v1000 = vsel %vm808, %v496, %v904
    %v1001 = vsel %vm809, %v498, %v905
    %v1002 = vsel %vm810, %v609, %v906
    %v1003 = vsel %vm811, %v611, %v907
    %v1004 = vsel %vm812, %v722, %v908
    %v1005 = vsel %vm813, %v724, %v909
    %v1006 = vsel %vm814, %v502, %v910
    %v1007 = vsel %vm815, %v504, %v911
    %v1008 = vsel %vm816, %v615, %v912
    %v1009 = vsel %vm817, %v617, %v913
    %v1010 = vsel %vm818, %v728, %v914
    %v1011 = vsel %vm819, %v730, %v915
    %v1012 = vsel %vm820, %v506, %v916
    %v1013 = vsel %vm821, %v508, %v917
    %v1014 = vsel %vm822, %v619, %v918
    %v1015 = vsel %vm823, %v621, %v919
    %v1016 = vsel %vm824, %v732, %v920
    %v1017 = vsel %vm825, %v734, %v921
    %v1018 = vsel %vm826, %v512, %v922
    %v1019 = vsel %vm827, %v514, %v923
    %v1020 = vsel %vm828, %v625, %v924
    %v1021 = vsel %vm829, %v627, %v925
    %v1022 = vsel %vm830, %v738, %v926
    %v1023 = vsel %vm831, %v740, %v927
    %v1024 = vsel %vm832, %v516, %v928
    %v1025 = vsel %vm833, %v518, %v929
    %v1026 = vsel %vm834, %v629, %v930
    %v1027 = vsel %vm835, %v631, %v931
    %v1028 = vsel %vm836, %v742, %v932
    %v1029 = vsel %vm837, %v744, %v933
    %v1030 = vsel %vm838, %v522, %v934
    %v1031 = vsel %vm839, %v524, %v935
    %v1032 = vsel %vm840, %v635, %v936
    %v1033 = vsel %vm841, %v637, %v937
    %v1034 = vsel %vm842, %v748, %v938
    %v1035 = vsel %vm843, %v750, %v939
    %v1036 = vsel %vm844, %v526, %v940
    %v1037 = vsel %vm845, %v528, %v941
    %v1038 = vsel %vm846, %v639, %v942
    %v1039 = vsel %vm847, %v641, %v943
    %v1040 = vsel %vm848, %v752, %v944
    %v1041 = vsel %vm849, %v754, %v945
    %v1042 = vsel %vm850, %v532, %v946
    %v1043 = vsel %vm851, %v534, %v947
    %v1044 = vsel %vm852, %v645, %v948
    %v1045 = vsel %vm853, %v647, %v949
    %v1046 = vsel %vm854, %v758, %v950
    %v1047 = vsel %vm855, %v760, %v951
    %v1048 = vsel %vm856, %v536, %v952
    %v1049 = vsel %vm857, %v538, %v953
    %v1050 = vsel %vm858, %v649, %v954
    %v1051 = vsel %vm859, %v651, %v955
    %v1052 = vsel %vm860, %v762, %v956
    %v1053 = vsel %vm861, %v764, %v957
    %v1054 = vpack.c.bf16 %v964, %v958
    %v1055 = vpack.c.bf16 %v965, %v959
    %v1056 = vpack.c.bf16 %v966, %v960
    %v1057 = vpack.c.bf16 %v967, %v961
    %v1058 = vpack.c.bf16 %v968, %v962
    %v1059 = vpack.c.bf16 %v969, %v963
    %v1060 = vpack.c.bf16 %v976, %v970
    %v1061 = vpack.c.bf16 %v977, %v971
    %v1062 = vpack.c.bf16 %v978, %v972
    %v1063 = vpack.c.bf16 %v979, %v973
    %v1064 = vpack.c.bf16 %v980, %v974
    %v1065 = vpack.c.bf16 %v981, %v975
    %v1066 = vpack.c.bf16 %v988, %v982
    %v1067 = vpack.c.bf16 %v989, %v983
    %v1068 = vpack.c.bf16 %v990, %v984
    %v1069 = vpack.c.bf16 %v991, %v985
    %v1070 = vpack.c.bf16 %v992, %v986
    %v1071 = vpack.c.bf16 %v993, %v987
    %v1072 = vpack.c.bf16 %v1000, %v994
    %v1073 = vpack.c.bf16 %v1001, %v995
    %v1074 = vpack.c.bf16 %v1002, %v996
    %v1075 = vpack.c.bf16 %v1003, %v997
    %v1076 = vpack.c.bf16 %v1004, %v998
    %v1077 = vpack.c.bf16 %v1005, %v999
    %v1078 = vpack.c.bf16 %v1012, %v1006
    %v1079 = vpack.c.bf16 %v1013, %v1007
    %v1080 = vpack.c.bf16 %v1014, %v1008
    %v1081 = vpack.c.bf16 %v1015, %v1009
    %v1082 = vpack.c.bf16 %v1016, %v1010
    %v1083 = vpack.c.bf16 %v1017, %v1011
    %v1084 = vpack.c.bf16 %v1024, %v1018
    %v1085 = vpack.c.bf16 %v1025, %v1019
    %v1086 = vpack.c.bf16 %v1026, %v1020
    %v1087 = vpack.c.bf16 %v1027, %v1021
    %v1088 = vpack.c.bf16 %v1028, %v1022
    %v1089 = vpack.c.bf16 %v1029, %v1023
    %v1090 = vpack.c.bf16 %v1036, %v1030
    %v1091 = vpack.c.bf16 %v1037, %v1031
    %v1092 = vpack.c.bf16 %v1038, %v1032
    %v1093 = vpack.c.bf16 %v1039, %v1033
    %v1094 = vpack.c.bf16 %v1040, %v1034
    %v1095 = vpack.c.bf16 %v1041, %v1035
    %v1096 = vpack.c.bf16 %v1048, %v1042
    %v1097 = vpack.c.bf16 %v1049, %v1043
    %v1098 = vpack.c.bf16 %v1050, %v1044
    %v1099 = vpack.c.bf16 %v1051, %v1045
    %v1100 = vpack.c.bf16 %v1052, %v1046
    %v1101 = vpack.c.bf16 %v1053, %v1047
    %v1102 = vld [vmem:[#allocation7] sm:$0xff]
    %v1103 = vld [vmem:[#allocation7 + $0x8] sm:$0xff]
    %v1104 = vld [vmem:[#allocation7 + $0x10] sm:$0xff]
    %v1105 = vld [vmem:[#allocation7 + $0x18] sm:$0xff]
    %v1106 = vld [vmem:[#allocation7 + $0x20] sm:$0xff]
    %v1107 = vld [vmem:[#allocation7 + $0x28] sm:$0xff]
    %v1108 = vld [vmem:[#allocation7 + $0x30] sm:$0xff]
    %v1109 = vld [vmem:[#allocation7 + $0x38] sm:$0xff]
    %v1110 = vld [vmem:[#allocation7 + $0x40] sm:$0xff]
    %v1111 = vld [vmem:[#allocation7 + $0x48] sm:$0xff]
    %v1112 = vld [vmem:[#allocation7 + $0x50] sm:$0xff]
    %v1113 = vld [vmem:[#allocation7 + $0x58] sm:$0xff]
    %v1114 = vld [vmem:[#allocation7 + $0x60] sm:$0xff]
    %v1115 = vld [vmem:[#allocation7 + $0x68] sm:$0xff]
    %v1116 = vld [vmem:[#allocation7 + $0x70] sm:$0xff]
    %v1117 = vld [vmem:[#allocation7 + $0x78] sm:$0xff]
    %v1118 = vld [vmem:[#allocation7 + $0x80] sm:$0xff]
    %v1119 = vld [vmem:[#allocation7 + $0x88] sm:$0xff]
    %v1120 = vld [vmem:[#allocation7 + $0x90] sm:$0xff]
    %v1121 = vld [vmem:[#allocation7 + $0x98] sm:$0xff]
    %v1122 = vld [vmem:[#allocation7 + $0xa0] sm:$0xff]
    %v1123 = vld [vmem:[#allocation7 + $0xa8] sm:$0xff]
    %v1124 = vld [vmem:[#allocation7 + $0xb0] sm:$0xff]
    %v1125 = vld [vmem:[#allocation7 + $0xb8] sm:$0xff]
    %v1126 = vld [vmem:[#allocation7 + $0xc0] sm:$0xff]
    %v1127 = vld [vmem:[#allocation7 + $0xc8] sm:$0xff]
    %v1128 = vld [vmem:[#allocation7 + $0xd0] sm:$0xff]
    %v1129 = vld [vmem:[#allocation7 + $0xd8] sm:$0xff]
    %v1130 = vld [vmem:[#allocation7 + $0xe0] sm:$0xff]
    %v1131 = vld [vmem:[#allocation7 + $0xe8] sm:$0xff]
    %v1132 = vld [vmem:[#allocation7 + $0xf0] sm:$0xff]
    %v1133 = vld [vmem:[#allocation7 + $0xf8] sm:$0xff]
    %v1134 = vld [vmem:[#allocation7 + $0x100] sm:$0xff]
    %v1135 = vld [vmem:[#allocation7 + $0x108] sm:$0xff]
    %v1136 = vld [vmem:[#allocation7 + $0x110] sm:$0xff]
    %v1137 = vld [vmem:[#allocation7 + $0x118] sm:$0xff]
    %v1138 = vld [vmem:[#allocation7 + $0x120] sm:$0xff]
    %v1139 = vld [vmem:[#allocation7 + $0x128] sm:$0xff]
    %v1140 = vld [vmem:[#allocation7 + $0x130] sm:$0xff]
    %v1141 = vld [vmem:[#allocation7 + $0x138] sm:$0xff]
    %v1142 = vld [vmem:[#allocation7 + $0x140] sm:$0xff]
    %v1143 = vld [vmem:[#allocation7 + $0x148] sm:$0xff]
    %v1144 = vld [vmem:[#allocation7 + $0x150] sm:$0xff]
    %v1145 = vld [vmem:[#allocation7 + $0x158] sm:$0xff]
    %v1146 = vld [vmem:[#allocation7 + $0x160] sm:$0xff]
    %v1147 = vld [vmem:[#allocation7 + $0x168] sm:$0xff]
    %v1148 = vld [vmem:[#allocation7 + $0x170] sm:$0xff]
    %v1149 = vld [vmem:[#allocation7 + $0x178] sm:$0xff]
    %v1150 = vld [vmem:[#allocation7 + $0x180] sm:$0xff]
    %v1151 = vld [vmem:[#allocation7 + $0x188] sm:$0xff]
    %v1152 = vld [vmem:[#allocation7 + $0x190] sm:$0xff]
    %v1153 = vld [vmem:[#allocation7 + $0x198] sm:$0xff]
    %v1154 = vld [vmem:[#allocation7 + $0x1a0] sm:$0xff]
    %v1155 = vld [vmem:[#allocation7 + $0x1a8] sm:$0xff]
    %v1156 = vld [vmem:[#allocation7 + $0x1b0] sm:$0xff]
    %v1157 = vld [vmem:[#allocation7 + $0x1b8] sm:$0xff]
    %v1158 = vld [vmem:[#allocation7 + $0x1c0] sm:$0xff]
    %v1159 = vld [vmem:[#allocation7 + $0x1c8] sm:$0xff]
    %v1160 = vld [vmem:[#allocation7 + $0x1d0] sm:$0xff]
    %v1161 = vld [vmem:[#allocation7 + $0x1d8] sm:$0xff]
    %v1162 = vld [vmem:[#allocation7 + $0x1e0] sm:$0xff]
    %v1163 = vld [vmem:[#allocation7 + $0x1e8] sm:$0xff]
    %v1164 = vld [vmem:[#allocation7 + $0x1f0] sm:$0xff]
    %v1165 = vld [vmem:[#allocation7 + $0x1f8] sm:$0xff]
    %v1166 = vld [vmem:[#allocation7 + $0x200] sm:$0xff]
    %v1167 = vld [vmem:[#allocation7 + $0x208] sm:$0xff]
    %v1168 = vld [vmem:[#allocation7 + $0x210] sm:$0xff]
    %v1169 = vld [vmem:[#allocation7 + $0x218] sm:$0xff]
    %v1170 = vld [vmem:[#allocation7 + $0x220] sm:$0xff]
    %v1171 = vld [vmem:[#allocation7 + $0x228] sm:$0xff]
    %v1172 = vld [vmem:[#allocation7 + $0x230] sm:$0xff]
    %v1173 = vld [vmem:[#allocation7 + $0x238] sm:$0xff]
    %v1174 = vld [vmem:[#allocation7 + $0x240] sm:$0xff]
    %v1175 = vld [vmem:[#allocation7 + $0x248] sm:$0xff]
    %v1176 = vld [vmem:[#allocation7 + $0x250] sm:$0xff]
    %v1177 = vld [vmem:[#allocation7 + $0x258] sm:$0xff]
    %v1178 = vld [vmem:[#allocation7 + $0x260] sm:$0xff]
    %v1179 = vld [vmem:[#allocation7 + $0x268] sm:$0xff]
    %v1180 = vld [vmem:[#allocation7 + $0x270] sm:$0xff]
    %v1181 = vld [vmem:[#allocation7 + $0x278] sm:$0xff]
    %v1182 = vld [vmem:[#allocation7 + $0x280] sm:$0xff]
    %v1183 = vld [vmem:[#allocation7 + $0x288] sm:$0xff]
    %v1184 = vld [vmem:[#allocation7 + $0x290] sm:$0xff]
    %v1185 = vld [vmem:[#allocation7 + $0x298] sm:$0xff]
    %v1186 = vld [vmem:[#allocation7 + $0x2a0] sm:$0xff]
    %v1187 = vld [vmem:[#allocation7 + $0x2a8] sm:$0xff]
    %v1188 = vld [vmem:[#allocation7 + $0x2b0] sm:$0xff]
    %v1189 = vld [vmem:[#allocation7 + $0x2b8] sm:$0xff]
    %v1190 = vld [vmem:[#allocation7 + $0x2c0] sm:$0xff]
    %v1191 = vld [vmem:[#allocation7 + $0x2c8] sm:$0xff]
    %v1192 = vld [vmem:[#allocation7 + $0x2d0] sm:$0xff]
    %v1193 = vld [vmem:[#allocation7 + $0x2d8] sm:$0xff]
    %v1194 = vld [vmem:[#allocation7 + $0x2e0] sm:$0xff]
    %v1195 = vld [vmem:[#allocation7 + $0x2e8] sm:$0xff]
    %v1196 = vld [vmem:[#allocation7 + $0x2f0] sm:$0xff]
    %v1197 = vld [vmem:[#allocation7 + $0x2f8] sm:$0xff]
    %v1198 = vld [vmem:[#allocation7 + $0x300] sm:$0xff]
    %v1199 = vld [vmem:[#allocation7 + $0x308] sm:$0xff]
    %v1200 = vld [vmem:[#allocation7 + $0x310] sm:$0xff]
    %v1201 = vld [vmem:[#allocation7 + $0x318] sm:$0xff]
    %v1202 = vld [vmem:[#allocation7 + $0x320] sm:$0xff]
    %v1203 = vld [vmem:[#allocation7 + $0x328] sm:$0xff]
    %v1204 = vld [vmem:[#allocation7 + $0x330] sm:$0xff]
    %v1205 = vld [vmem:[#allocation7 + $0x338] sm:$0xff]
    %v1206 = vld [vmem:[#allocation7 + $0x340] sm:$0xff]
    %v1207 = vld [vmem:[#allocation7 + $0x348] sm:$0xff]
    %v1208 = vld [vmem:[#allocation7 + $0x350] sm:$0xff]
    %v1209 = vld [vmem:[#allocation7 + $0x358] sm:$0xff]
    %v1210 = vld [vmem:[#allocation7 + $0x360] sm:$0xff]
    %v1211 = vld [vmem:[#allocation7 + $0x368] sm:$0xff]
    %v1212 = vld [vmem:[#allocation7 + $0x370] sm:$0xff]
    %v1213 = vld [vmem:[#allocation7 + $0x378] sm:$0xff]
    %v1214 = vld [vmem:[#allocation7 + $0x380] sm:$0xff]
    %v1215 = vld [vmem:[#allocation7 + $0x388] sm:$0xff]
    %v1216 = vld [vmem:[#allocation7 + $0x390] sm:$0xff]
    %v1217 = vld [vmem:[#allocation7 + $0x398] sm:$0xff]
    %v1218 = vld [vmem:[#allocation7 + $0x3a0] sm:$0xff]
    %v1219 = vld [vmem:[#allocation7 + $0x3a8] sm:$0xff]
    %v1220 = vld [vmem:[#allocation7 + $0x3b0] sm:$0xff]
    %v1221 = vld [vmem:[#allocation7 + $0x3b8] sm:$0xff]
    %v1222 = vld [vmem:[#allocation7 + $0x3c0] sm:$0xff]
    %v1223 = vld [vmem:[#allocation7 + $0x3c8] sm:$0xff]
    %v1224 = vld [vmem:[#allocation7 + $0x3d0] sm:$0xff]
    %v1225 = vld [vmem:[#allocation7 + $0x3d8] sm:$0xff]
    %v1226 = vld [vmem:[#allocation7 + $0x3e0] sm:$0xff]
    %v1227 = vld [vmem:[#allocation7 + $0x3e8] sm:$0xff]
    %v1228 = vld [vmem:[#allocation7 + $0x3f0] sm:$0xff]
    %v1229 = vld [vmem:[#allocation7 + $0x3f8] sm:$0xff]
    %v1230 = vld [vmem:[#allocation7 + $0x400] sm:$0xff]
    %v1231 = vld [vmem:[#allocation7 + $0x408] sm:$0xff]
    %v1232 = vld [vmem:[#allocation7 + $0x410] sm:$0xff]
    %v1233 = vld [vmem:[#allocation7 + $0x418] sm:$0xff]
    %v1234 = vld [vmem:[#allocation7 + $0x420] sm:$0xff]
    %v1235 = vld [vmem:[#allocation7 + $0x428] sm:$0xff]
    %v1236 = vld [vmem:[#allocation7 + $0x430] sm:$0xff]
    %v1237 = vld [vmem:[#allocation7 + $0x438] sm:$0xff]
    %v1238 = vld [vmem:[#allocation7 + $0x440] sm:$0xff]
    %v1239 = vld [vmem:[#allocation7 + $0x448] sm:$0xff]
    %v1240 = vld [vmem:[#allocation7 + $0x450] sm:$0xff]
    %v1241 = vld [vmem:[#allocation7 + $0x458] sm:$0xff]
    %v1242 = vld [vmem:[#allocation7 + $0x460] sm:$0xff]
    %v1243 = vld [vmem:[#allocation7 + $0x468] sm:$0xff]
    %v1244 = vld [vmem:[#allocation7 + $0x470] sm:$0xff]
    %v1245 = vld [vmem:[#allocation7 + $0x478] sm:$0xff]
    %v1246 = vld [vmem:[#allocation7 + $0x480] sm:$0xff]
    %v1247 = vld [vmem:[#allocation7 + $0x488] sm:$0xff]
    %v1248 = vld [vmem:[#allocation7 + $0x490] sm:$0xff]
    %v1249 = vld [vmem:[#allocation7 + $0x498] sm:$0xff]
    %v1250 = vld [vmem:[#allocation7 + $0x4a0] sm:$0xff]
    %v1251 = vld [vmem:[#allocation7 + $0x4a8] sm:$0xff]
    %v1252 = vld [vmem:[#allocation7 + $0x4b0] sm:$0xff]
    %v1253 = vld [vmem:[#allocation7 + $0x4b8] sm:$0xff]
    %v1254 = vld [vmem:[#allocation7 + $0x4c0] sm:$0xff]
    %v1255 = vld [vmem:[#allocation7 + $0x4c8] sm:$0xff]
    %v1256 = vld [vmem:[#allocation7 + $0x4d0] sm:$0xff]
    %v1257 = vld [vmem:[#allocation7 + $0x4d8] sm:$0xff]
    %v1258 = vld [vmem:[#allocation7 + $0x4e0] sm:$0xff]
    %v1259 = vld [vmem:[#allocation7 + $0x4e8] sm:$0xff]
    %v1260 = vld [vmem:[#allocation7 + $0x4f0] sm:$0xff]
    %v1261 = vld [vmem:[#allocation7 + $0x4f8] sm:$0xff]
    %v1262 = vld [vmem:[#allocation7 + $0x500] sm:$0xff]
    %v1263 = vld [vmem:[#allocation7 + $0x508] sm:$0xff]
    %v1264 = vld [vmem:[#allocation7 + $0x510] sm:$0xff]
    %v1265 = vld [vmem:[#allocation7 + $0x518] sm:$0xff]
    %v1266 = vld [vmem:[#allocation7 + $0x520] sm:$0xff]
    %v1267 = vld [vmem:[#allocation7 + $0x528] sm:$0xff]
    %v1268 = vld [vmem:[#allocation7 + $0x530] sm:$0xff]
    %v1269 = vld [vmem:[#allocation7 + $0x538] sm:$0xff]
    %v1270 = vld [vmem:[#allocation7 + $0x540] sm:$0xff]
    %v1271 = vld [vmem:[#allocation7 + $0x548] sm:$0xff]
    %v1272 = vld [vmem:[#allocation7 + $0x550] sm:$0xff]
    %v1273 = vld [vmem:[#allocation7 + $0x558] sm:$0xff]
    %v1274 = vld [vmem:[#allocation7 + $0x560] sm:$0xff]
    %v1275 = vld [vmem:[#allocation7 + $0x568] sm:$0xff]
    %v1276 = vld [vmem:[#allocation7 + $0x570] sm:$0xff]
    %v1277 = vld [vmem:[#allocation7 + $0x578] sm:$0xff]
    %v1278 = vld [vmem:[#allocation7 + $0x580] sm:$0xff]
    %v1279 = vld [vmem:[#allocation7 + $0x588] sm:$0xff]
    %v1280 = vld [vmem:[#allocation7 + $0x590] sm:$0xff]
    %v1281 = vld [vmem:[#allocation7 + $0x598] sm:$0xff]
    %v1282 = vld [vmem:[#allocation7 + $0x5a0] sm:$0xff]
    %v1283 = vld [vmem:[#allocation7 + $0x5a8] sm:$0xff]
    %v1284 = vld [vmem:[#allocation7 + $0x5b0] sm:$0xff]
    %v1285 = vld [vmem:[#allocation7 + $0x5b8] sm:$0xff]
    %v1286 = vld [vmem:[#allocation7 + $0x5c0] sm:$0xff]
    %v1287 = vld [vmem:[#allocation7 + $0x5c8] sm:$0xff]
    %v1288 = vld [vmem:[#allocation7 + $0x5d0] sm:$0xff]
    %v1289 = vld [vmem:[#allocation7 + $0x5d8] sm:$0xff]
    %v1290 = vld [vmem:[#allocation7 + $0x5e0] sm:$0xff]
    %v1291 = vld [vmem:[#allocation7 + $0x5e8] sm:$0xff]
    %v1292 = vld [vmem:[#allocation7 + $0x5f0] sm:$0xff]
    %v1293 = vld [vmem:[#allocation7 + $0x5f8] sm:$0xff]
    %v1294 = vld [vmem:[%s4] sm:$0xf]
    %v1296 = vlaneseq
    %v1297 = vshrl.u32 %v1296, 7
    %v1298 = vsub.s32 0, %v1297
    %v1299 = vrot.slane %v1294, %v1298
    %v1300 = vlaneseq
    %v1301 = vshrl.u32 %v1300, 7
    %v1302 = vsub.s32 1, %v1301
    %v1303 = vrot.slane %v1294, %v1302
    %v1304 = vlaneseq
    %v1305 = vshrl.u32 %v1304, 7
    %v1306 = vsub.s32 2, %v1305
    %v1307 = vrot.slane %v1294, %v1306
    %v1308 = vlaneseq
    %v1309 = vshrl.u32 %v1308, 7
    %v1310 = vsub.s32 3, %v1309
    %v1311 = vrot.slane %v1294, %v1310
    %v1508 = vunpack.c.l.b16 %v1102
    %v1509 = vunpack.c.h.b16 %v1102
    %v1510 = vunpack.c.l.b16 %v1103
    %v1511 = vunpack.c.h.b16 %v1103
    %v1512 = vunpack.c.l.b16 %v1104
    %v1513 = vunpack.c.h.b16 %v1104
    %v1514 = vunpack.c.l.b16 %v1105
    %v1515 = vunpack.c.h.b16 %v1105
    %v1516 = vunpack.c.l.b16 %v1106
    %v1517 = vunpack.c.h.b16 %v1106
    %v1518 = vunpack.c.l.b16 %v1107
    %v1519 = vunpack.c.h.b16 %v1107
    %v1520 = vunpack.c.l.b16 %v1108
    %v1521 = vunpack.c.h.b16 %v1108
    %v1522 = vunpack.c.l.b16 %v1109
    %v1523 = vunpack.c.h.b16 %v1109
    %v1524 = vunpack.c.l.b16 %v1110
    %v1525 = vunpack.c.h.b16 %v1110
    %v1526 = vunpack.c.l.b16 %v1111
    %v1527 = vunpack.c.h.b16 %v1111
    %v1528 = vunpack.c.l.b16 %v1112
    %v1529 = vunpack.c.h.b16 %v1112
    %v1530 = vunpack.c.l.b16 %v1113
    %v1531 = vunpack.c.h.b16 %v1113
    %v1532 = vunpack.c.l.b16 %v1114
    %v1533 = vunpack.c.h.b16 %v1114
    %v1534 = vunpack.c.l.b16 %v1115
    %v1535 = vunpack.c.h.b16 %v1115
    %v1536 = vunpack.c.l.b16 %v1116
    %v1537 = vunpack.c.h.b16 %v1116
    %v1538 = vunpack.c.l.b16 %v1117
    %v1539 = vunpack.c.h.b16 %v1117
    %v1540 = vunpack.c.l.b16 %v1118
    %v1541 = vunpack.c.h.b16 %v1118
    %v1542 = vunpack.c.l.b16 %v1119
    %v1543 = vunpack.c.h.b16 %v1119
    %v1544 = vunpack.c.l.b16 %v1120
    %v1545 = vunpack.c.h.b16 %v1120
    %v1546 = vunpack.c.l.b16 %v1121
    %v1547 = vunpack.c.h.b16 %v1121
    %v1548 = vunpack.c.l.b16 %v1122
    %v1549 = vunpack.c.h.b16 %v1122
    %v1550 = vunpack.c.l.b16 %v1123
    %v1551 = vunpack.c.h.b16 %v1123
    %v1552 = vunpack.c.l.b16 %v1124
    %v1553 = vunpack.c.h.b16 %v1124
    %v1554 = vunpack.c.l.b16 %v1125
    %v1555 = vunpack.c.h.b16 %v1125
    %v1556 = vunpack.c.l.b16 %v1126
    %v1557 = vunpack.c.h.b16 %v1126
    %v1558 = vunpack.c.l.b16 %v1127
    %v1559 = vunpack.c.h.b16 %v1127
    %v1560 = vunpack.c.l.b16 %v1128
    %v1561 = vunpack.c.h.b16 %v1128
    %v1562 = vunpack.c.l.b16 %v1129
    %v1563 = vunpack.c.h.b16 %v1129
    %v1564 = vunpack.c.l.b16 %v1130
    %v1565 = vunpack.c.h.b16 %v1130
    %v1566 = vunpack.c.l.b16 %v1131
    %v1567 = vunpack.c.h.b16 %v1131
    %v1568 = vunpack.c.l.b16 %v1132
    %v1569 = vunpack.c.h.b16 %v1132
    %v1570 = vunpack.c.l.b16 %v1133
    %v1571 = vunpack.c.h.b16 %v1133
    %v1572 = vunpack.c.l.b16 %v1134
    %v1573 = vunpack.c.h.b16 %v1134
    %v1574 = vunpack.c.l.b16 %v1135
    %v1575 = vunpack.c.h.b16 %v1135
    %v1576 = vunpack.c.l.b16 %v1136
    %v1577 = vunpack.c.h.b16 %v1136
    %v1578 = vunpack.c.l.b16 %v1137
    %v1579 = vunpack.c.h.b16 %v1137
    %v1580 = vunpack.c.l.b16 %v1138
    %v1581 = vunpack.c.h.b16 %v1138
    %v1582 = vunpack.c.l.b16 %v1139
    %v1583 = vunpack.c.h.b16 %v1139
    %v1584 = vunpack.c.l.b16 %v1140
    %v1585 = vunpack.c.h.b16 %v1140
    %v1586 = vunpack.c.l.b16 %v1141
    %v1587 = vunpack.c.h.b16 %v1141
    %v1588 = vunpack.c.l.b16 %v1142
    %v1589 = vunpack.c.h.b16 %v1142
    %v1590 = vunpack.c.l.b16 %v1143
    %v1591 = vunpack.c.h.b16 %v1143
    %v1592 = vunpack.c.l.b16 %v1144
    %v1593 = vunpack.c.h.b16 %v1144
    %v1594 = vunpack.c.l.b16 %v1145
    %v1595 = vunpack.c.h.b16 %v1145
    %v1596 = vunpack.c.l.b16 %v1146
    %v1597 = vunpack.c.h.b16 %v1146
    %v1598 = vunpack.c.l.b16 %v1147
    %v1599 = vunpack.c.h.b16 %v1147
    %v1600 = vunpack.c.l.b16 %v1148
    %v1601 = vunpack.c.h.b16 %v1148
    %v1602 = vunpack.c.l.b16 %v1149
    %v1603 = vunpack.c.h.b16 %v1149
    %v1604 = vunpack.c.l.b16 %v1150
    %v1605 = vunpack.c.h.b16 %v1150
    %v1606 = vunpack.c.l.b16 %v1151
    %v1607 = vunpack.c.h.b16 %v1151
    %v1608 = vunpack.c.l.b16 %v1152
    %v1609 = vunpack.c.h.b16 %v1152
    %v1610 = vunpack.c.l.b16 %v1153
    %v1611 = vunpack.c.h.b16 %v1153
    %v1612 = vunpack.c.l.b16 %v1154
    %v1613 = vunpack.c.h.b16 %v1154
    %v1614 = vunpack.c.l.b16 %v1155
    %v1615 = vunpack.c.h.b16 %v1155
    %v1616 = vunpack.c.l.b16 %v1156
    %v1617 = vunpack.c.h.b16 %v1156
    %v1618 = vunpack.c.l.b16 %v1157
    %v1619 = vunpack.c.h.b16 %v1157
    %v1620 = vunpack.c.l.b16 %v1158
    %v1621 = vunpack.c.h.b16 %v1158
    %v1622 = vunpack.c.l.b16 %v1159
    %v1623 = vunpack.c.h.b16 %v1159
    %v1624 = vunpack.c.l.b16 %v1160
    %v1625 = vunpack.c.h.b16 %v1160
    %v1626 = vunpack.c.l.b16 %v1161
    %v1627 = vunpack.c.h.b16 %v1161
    %v1628 = vunpack.c.l.b16 %v1162
    %v1629 = vunpack.c.h.b16 %v1162
    %v1630 = vunpack.c.l.b16 %v1163
    %v1631 = vunpack.c.h.b16 %v1163
    %v1632 = vunpack.c.l.b16 %v1164
    %v1633 = vunpack.c.h.b16 %v1164
    %v1634 = vunpack.c.l.b16 %v1165
    %v1635 = vunpack.c.h.b16 %v1165
    %v1636 = vunpack.c.l.b16 %v1166
    %v1637 = vunpack.c.h.b16 %v1166
    %v1638 = vunpack.c.l.b16 %v1167
    %v1639 = vunpack.c.h.b16 %v1167
    %v1640 = vunpack.c.l.b16 %v1168
    %v1641 = vunpack.c.h.b16 %v1168
    %v1642 = vunpack.c.l.b16 %v1169
    %v1643 = vunpack.c.h.b16 %v1169
    %v1644 = vunpack.c.l.b16 %v1170
    %v1645 = vunpack.c.h.b16 %v1170
    %v1646 = vunpack.c.l.b16 %v1171
    %v1647 = vunpack.c.h.b16 %v1171
    %v1648 = vunpack.c.l.b16 %v1172
    %v1649 = vunpack.c.h.b16 %v1172
    %v1650 = vunpack.c.l.b16 %v1173
    %v1651 = vunpack.c.h.b16 %v1173
    %v1652 = vunpack.c.l.b16 %v1174
    %v1653 = vunpack.c.h.b16 %v1174
    %v1654 = vunpack.c.l.b16 %v1175
    %v1655 = vunpack.c.h.b16 %v1175
    %v1656 = vunpack.c.l.b16 %v1176
    %v1657 = vunpack.c.h.b16 %v1176
    %v1658 = vunpack.c.l.b16 %v1177
    %v1659 = vunpack.c.h.b16 %v1177
    %v1660 = vunpack.c.l.b16 %v1178
    %v1661 = vunpack.c.h.b16 %v1178
    %v1662 = vunpack.c.l.b16 %v1179
    %v1663 = vunpack.c.h.b16 %v1179
    %v1664 = vunpack.c.l.b16 %v1180
    %v1665 = vunpack.c.h.b16 %v1180
    %v1666 = vunpack.c.l.b16 %v1181
    %v1667 = vunpack.c.h.b16 %v1181
    %v1668 = vunpack.c.l.b16 %v1182
    %v1669 = vunpack.c.h.b16 %v1182
    %v1670 = vunpack.c.l.b16 %v1183
    %v1671 = vunpack.c.h.b16 %v1183
    %v1672 = vunpack.c.l.b16 %v1184
    %v1673 = vunpack.c.h.b16 %v1184
    %v1674 = vunpack.c.l.b16 %v1185
    %v1675 = vunpack.c.h.b16 %v1185
    %v1676 = vunpack.c.l.b16 %v1186
    %v1677 = vunpack.c.h.b16 %v1186
    %v1678 = vunpack.c.l.b16 %v1187
    %v1679 = vunpack.c.h.b16 %v1187
    %v1680 = vunpack.c.l.b16 %v1188
    %v1681 = vunpack.c.h.b16 %v1188
    %v1682 = vunpack.c.l.b16 %v1189
    %v1683 = vunpack.c.h.b16 %v1189
    %v1684 = vunpack.c.l.b16 %v1190
    %v1685 = vunpack.c.h.b16 %v1190
    %v1686 = vunpack.c.l.b16 %v1191
    %v1687 = vunpack.c.h.b16 %v1191
    %v1688 = vunpack.c.l.b16 %v1192
    %v1689 = vunpack.c.h.b16 %v1192
    %v1690 = vunpack.c.l.b16 %v1193
    %v1691 = vunpack.c.h.b16 %v1193
    %v1692 = vunpack.c.l.b16 %v1194
    %v1693 = vunpack.c.h.b16 %v1194
    %v1694 = vunpack.c.l.b16 %v1195
    %v1695 = vunpack.c.h.b16 %v1195
    %v1696 = vunpack.c.l.b16 %v1196
    %v1697 = vunpack.c.h.b16 %v1196
    %v1698 = vunpack.c.l.b16 %v1197
    %v1699 = vunpack.c.h.b16 %v1197
    %v1700 = vunpack.c.l.b16 %v1198
    %v1701 = vunpack.c.h.b16 %v1198
    %v1702 = vunpack.c.l.b16 %v1199
    %v1703 = vunpack.c.h.b16 %v1199
    %v1704 = vunpack.c.l.b16 %v1200
    %v1705 = vunpack.c.h.b16 %v1200
    %v1706 = vunpack.c.l.b16 %v1201
    %v1707 = vunpack.c.h.b16 %v1201
    %v1708 = vunpack.c.l.b16 %v1202
    %v1709 = vunpack.c.h.b16 %v1202
    %v1710 = vunpack.c.l.b16 %v1203
    %v1711 = vunpack.c.h.b16 %v1203
    %v1712 = vunpack.c.l.b16 %v1204
    %v1713 = vunpack.c.h.b16 %v1204
    %v1714 = vunpack.c.l.b16 %v1205
    %v1715 = vunpack.c.h.b16 %v1205
    %v1716 = vunpack.c.l.b16 %v1206
    %v1717 = vunpack.c.h.b16 %v1206
    %v1718 = vunpack.c.l.b16 %v1207
    %v1719 = vunpack.c.h.b16 %v1207
    %v1720 = vunpack.c.l.b16 %v1208
    %v1721 = vunpack.c.h.b16 %v1208
    %v1722 = vunpack.c.l.b16 %v1209
    %v1723 = vunpack.c.h.b16 %v1209
    %v1724 = vunpack.c.l.b16 %v1210
    %v1725 = vunpack.c.h.b16 %v1210
    %v1726 = vunpack.c.l.b16 %v1211
    %v1727 = vunpack.c.h.b16 %v1211
    %v1728 = vunpack.c.l.b16 %v1212
    %v1729 = vunpack.c.h.b16 %v1212
    %v1730 = vunpack.c.l.b16 %v1213
    %v1731 = vunpack.c.h.b16 %v1213
    %v1732 = vunpack.c.l.b16 %v1214
    %v1733 = vunpack.c.h.b16 %v1214
    %v1734 = vunpack.c.l.b16 %v1215
    %v1735 = vunpack.c.h.b16 %v1215
    %v1736 = vunpack.c.l.b16 %v1216
    %v1737 = vunpack.c.h.b16 %v1216
    %v1738 = vunpack.c.l.b16 %v1217
    %v1739 = vunpack.c.h.b16 %v1217
    %v1740 = vunpack.c.l.b16 %v1218
    %v1741 = vunpack.c.h.b16 %v1218
    %v1742 = vunpack.c.l.b16 %v1219
    %v1743 = vunpack.c.h.b16 %v1219
    %v1744 = vunpack.c.l.b16 %v1220
    %v1745 = vunpack.c.h.b16 %v1220
    %v1746 = vunpack.c.l.b16 %v1221
    %v1747 = vunpack.c.h.b16 %v1221
    %v1748 = vunpack.c.l.b16 %v1222
    %v1749 = vunpack.c.h.b16 %v1222
    %v1750 = vunpack.c.l.b16 %v1223
    %v1751 = vunpack.c.h.b16 %v1223
    %v1752 = vunpack.c.l.b16 %v1224
    %v1753 = vunpack.c.h.b16 %v1224
    %v1754 = vunpack.c.l.b16 %v1225
    %v1755 = vunpack.c.h.b16 %v1225
    %v1756 = vunpack.c.l.b16 %v1226
    %v1757 = vunpack.c.h.b16 %v1226
    %v1758 = vunpack.c.l.b16 %v1227
    %v1759 = vunpack.c.h.b16 %v1227
    %v1760 = vunpack.c.l.b16 %v1228
    %v1761 = vunpack.c.h.b16 %v1228
    %v1762 = vunpack.c.l.b16 %v1229
    %v1763 = vunpack.c.h.b16 %v1229
    %v1764 = vunpack.c.l.b16 %v1230
    %v1765 = vunpack.c.h.b16 %v1230
    %v1766 = vunpack.c.l.b16 %v1231
    %v1767 = vunpack.c.h.b16 %v1231
    %v1768 = vunpack.c.l.b16 %v1232
    %v1769 = vunpack.c.h.b16 %v1232
    %v1770 = vunpack.c.l.b16 %v1233
    %v1771 = vunpack.c.h.b16 %v1233
    %v1772 = vunpack.c.l.b16 %v1234
    %v1773 = vunpack.c.h.b16 %v1234
    %v1774 = vunpack.c.l.b16 %v1235
    %v1775 = vunpack.c.h.b16 %v1235
    %v1776 = vunpack.c.l.b16 %v1236
    %v1777 = vunpack.c.h.b16 %v1236
    %v1778 = vunpack.c.l.b16 %v1237
    %v1779 = vunpack.c.h.b16 %v1237
    %v1780 = vunpack.c.l.b16 %v1238
    %v1781 = vunpack.c.h.b16 %v1238
    %v1782 = vunpack.c.l.b16 %v1239
    %v1783 = vunpack.c.h.b16 %v1239
    %v1784 = vunpack.c.l.b16 %v1240
    %v1785 = vunpack.c.h.b16 %v1240
    %v1786 = vunpack.c.l.b16 %v1241
    %v1787 = vunpack.c.h.b16 %v1241
    %v1788 = vunpack.c.l.b16 %v1242
    %v1789 = vunpack.c.h.b16 %v1242
    %v1790 = vunpack.c.l.b16 %v1243
    %v1791 = vunpack.c.h.b16 %v1243
    %v1792 = vunpack.c.l.b16 %v1244
    %v1793 = vunpack.c.h.b16 %v1244
    %v1794 = vunpack.c.l.b16 %v1245
    %v1795 = vunpack.c.h.b16 %v1245
    %v1796 = vunpack.c.l.b16 %v1246
    %v1797 = vunpack.c.h.b16 %v1246
    %v1798 = vunpack.c.l.b16 %v1247
    %v1799 = vunpack.c.h.b16 %v1247
    %v1800 = vunpack.c.l.b16 %v1248
    %v1801 = vunpack.c.h.b16 %v1248
    %v1802 = vunpack.c.l.b16 %v1249
    %v1803 = vunpack.c.h.b16 %v1249
    %v1804 = vunpack.c.l.b16 %v1250
    %v1805 = vunpack.c.h.b16 %v1250
    %v1806 = vunpack.c.l.b16 %v1251
    %v1807 = vunpack.c.h.b16 %v1251
    %v1808 = vunpack.c.l.b16 %v1252
    %v1809 = vunpack.c.h.b16 %v1252
    %v1810 = vunpack.c.l.b16 %v1253
    %v1811 = vunpack.c.h.b16 %v1253
    %v1812 = vunpack.c.l.b16 %v1254
    %v1813 = vunpack.c.h.b16 %v1254
    %v1814 = vunpack.c.l.b16 %v1255
    %v1815 = vunpack.c.h.b16 %v1255
    %v1816 = vunpack.c.l.b16 %v1256
    %v1817 = vunpack.c.h.b16 %v1256
    %v1818 = vunpack.c.l.b16 %v1257
    %v1819 = vunpack.c.h.b16 %v1257
    %v1820 = vunpack.c.l.b16 %v1258
    %v1821 = vunpack.c.h.b16 %v1258
    %v1822 = vunpack.c.l.b16 %v1259
    %v1823 = vunpack.c.h.b16 %v1259
    %v1824 = vunpack.c.l.b16 %v1260
    %v1825 = vunpack.c.h.b16 %v1260
    %v1826 = vunpack.c.l.b16 %v1261
    %v1827 = vunpack.c.h.b16 %v1261
    %v1828 = vunpack.c.l.b16 %v1262
    %v1829 = vunpack.c.h.b16 %v1262
    %v1830 = vunpack.c.l.b16 %v1263
    %v1831 = vunpack.c.h.b16 %v1263
    %v1832 = vunpack.c.l.b16 %v1264
    %v1833 = vunpack.c.h.b16 %v1264
    %v1834 = vunpack.c.l.b16 %v1265
    %v1835 = vunpack.c.h.b16 %v1265
    %v1836 = vunpack.c.l.b16 %v1266
    %v1837 = vunpack.c.h.b16 %v1266
    %v1838 = vunpack.c.l.b16 %v1267
    %v1839 = vunpack.c.h.b16 %v1267
    %v1840 = vunpack.c.l.b16 %v1268
    %v1841 = vunpack.c.h.b16 %v1268
    %v1842 = vunpack.c.l.b16 %v1269
    %v1843 = vunpack.c.h.b16 %v1269
    %v1844 = vunpack.c.l.b16 %v1270
    %v1845 = vunpack.c.h.b16 %v1270
    %v1846 = vunpack.c.l.b16 %v1271
    %v1847 = vunpack.c.h.b16 %v1271
    %v1848 = vunpack.c.l.b16 %v1272
    %v1849 = vunpack.c.h.b16 %v1272
    %v1850 = vunpack.c.l.b16 %v1273
    %v1851 = vunpack.c.h.b16 %v1273
    %v1852 = vunpack.c.l.b16 %v1274
    %v1853 = vunpack.c.h.b16 %v1274
    %v1854 = vunpack.c.l.b16 %v1275
    %v1855 = vunpack.c.h.b16 %v1275
    %v1856 = vunpack.c.l.b16 %v1276
    %v1857 = vunpack.c.h.b16 %v1276
    %v1858 = vunpack.c.l.b16 %v1277
    %v1859 = vunpack.c.h.b16 %v1277
    %v1860 = vunpack.c.l.b16 %v1278
    %v1861 = vunpack.c.h.b16 %v1278
    %v1862 = vunpack.c.l.b16 %v1279
    %v1863 = vunpack.c.h.b16 %v1279
    %v1864 = vunpack.c.l.b16 %v1280
    %v1865 = vunpack.c.h.b16 %v1280
    %v1866 = vunpack.c.l.b16 %v1281
    %v1867 = vunpack.c.h.b16 %v1281
    %v1868 = vunpack.c.l.b16 %v1282
    %v1869 = vunpack.c.h.b16 %v1282
    %v1870 = vunpack.c.l.b16 %v1283
    %v1871 = vunpack.c.h.b16 %v1283
    %v1872 = vunpack.c.l.b16 %v1284
    %v1873 = vunpack.c.h.b16 %v1284
    %v1874 = vunpack.c.l.b16 %v1285
    %v1875 = vunpack.c.h.b16 %v1285
    %v1876 = vunpack.c.l.b16 %v1286
    %v1877 = vunpack.c.h.b16 %v1286
    %v1878 = vunpack.c.l.b16 %v1287
    %v1879 = vunpack.c.h.b16 %v1287
    %v1880 = vunpack.c.l.b16 %v1288
    %v1881 = vunpack.c.h.b16 %v1288
    %v1882 = vunpack.c.l.b16 %v1289
    %v1883 = vunpack.c.h.b16 %v1289
    %v1884 = vunpack.c.l.b16 %v1290
    %v1885 = vunpack.c.h.b16 %v1290
    %v1886 = vunpack.c.l.b16 %v1291
    %v1887 = vunpack.c.h.b16 %v1291
    %v1888 = vunpack.c.l.b16 %v1292
    %v1889 = vunpack.c.h.b16 %v1292
    %v1890 = vunpack.c.l.b16 %v1293
    %v1891 = vunpack.c.h.b16 %v1293
    %v1892 = vpack.c.b16 %v1512, %v1508
    %v1893 = vpack.c.b16 %v1513, %v1509
    %v1894 = vpack.c.b16 %v1514, %v1510
    %v1895 = vpack.c.b16 %v1515, %v1511
    %v1896 = vpack.c.b16 %v1520, %v1516
    %v1897 = vpack.c.b16 %v1521, %v1517
    %v1898 = vpack.c.b16 %v1522, %v1518
    %v1899 = vpack.c.b16 %v1523, %v1519
    %v1900 = vpack.c.b16 %v1528, %v1524
    %v1901 = vpack.c.b16 %v1529, %v1525
    %v1902 = vpack.c.b16 %v1530, %v1526
    %v1903 = vpack.c.b16 %v1531, %v1527
    %v1904 = vpack.c.b16 %v1536, %v1532
    %v1905 = vpack.c.b16 %v1537, %v1533
    %v1906 = vpack.c.b16 %v1538, %v1534
    %v1907 = vpack.c.b16 %v1539, %v1535
    %v1908 = vpack.c.b16 %v1544, %v1540
    %v1909 = vpack.c.b16 %v1545, %v1541
    %v1910 = vpack.c.b16 %v1546, %v1542
    %v1911 = vpack.c.b16 %v1547, %v1543
    %v1912 = vpack.c.b16 %v1552, %v1548
    %v1913 = vpack.c.b16 %v1553, %v1549
    %v1914 = vpack.c.b16 %v1554, %v1550
    %v1915 = vpack.c.b16 %v1555, %v1551
    %v1916 = vpack.c.b16 %v1560, %v1556
    %v1917 = vpack.c.b16 %v1561, %v1557
    %v1918 = vpack.c.b16 %v1562, %v1558
    %v1919 = vpack.c.b16 %v1563, %v1559
    %v1920 = vpack.c.b16 %v1568, %v1564
    %v1921 = vpack.c.b16 %v1569, %v1565
    %v1922 = vpack.c.b16 %v1570, %v1566
    %v1923 = vpack.c.b16 %v1571, %v1567
    %v1924 = vpack.c.b16 %v1576, %v1572
    %v1925 = vpack.c.b16 %v1577, %v1573
    %v1926 = vpack.c.b16 %v1578, %v1574
    %v1927 = vpack.c.b16 %v1579, %v1575
    %v1928 = vpack.c.b16 %v1584, %v1580
    %v1929 = vpack.c.b16 %v1585, %v1581
    %v1930 = vpack.c.b16 %v1586, %v1582
    %v1931 = vpack.c.b16 %v1587, %v1583
    %v1932 = vpack.c.b16 %v1592, %v1588
    %v1933 = vpack.c.b16 %v1593, %v1589
    %v1934 = vpack.c.b16 %v1594, %v1590
    %v1935 = vpack.c.b16 %v1595, %v1591
    %v1936 = vpack.c.b16 %v1600, %v1596
    %v1937 = vpack.c.b16 %v1601, %v1597
    %v1938 = vpack.c.b16 %v1602, %v1598
    %v1939 = vpack.c.b16 %v1603, %v1599
    %v1940 = vpack.c.b16 %v1608, %v1604
    %v1941 = vpack.c.b16 %v1609, %v1605
    %v1942 = vpack.c.b16 %v1610, %v1606
    %v1943 = vpack.c.b16 %v1611, %v1607
    %v1944 = vpack.c.b16 %v1616, %v1612
    %v1945 = vpack.c.b16 %v1617, %v1613
    %v1946 = vpack.c.b16 %v1618, %v1614
    %v1947 = vpack.c.b16 %v1619, %v1615
    %v1948 = vpack.c.b16 %v1624, %v1620
    %v1949 = vpack.c.b16 %v1625, %v1621
    %v1950 = vpack.c.b16 %v1626, %v1622
    %v1951 = vpack.c.b16 %v1627, %v1623
    %v1952 = vpack.c.b16 %v1632, %v1628
    %v1953 = vpack.c.b16 %v1633, %v1629
    %v1954 = vpack.c.b16 %v1634, %v1630
    %v1955 = vpack.c.b16 %v1635, %v1631
    %v1956 = vpack.c.b16 %v1640, %v1636
    %v1957 = vpack.c.b16 %v1641, %v1637
    %v1958 = vpack.c.b16 %v1642, %v1638
    %v1959 = vpack.c.b16 %v1643, %v1639
    %v1960 = vpack.c.b16 %v1648, %v1644
    %v1961 = vpack.c.b16 %v1649, %v1645
    %v1962 = vpack.c.b16 %v1650, %v1646
    %v1963 = vpack.c.b16 %v1651, %v1647
    %v1964 = vpack.c.b16 %v1656, %v1652
    %v1965 = vpack.c.b16 %v1657, %v1653
    %v1966 = vpack.c.b16 %v1658, %v1654
    %v1967 = vpack.c.b16 %v1659, %v1655
    %v1968 = vpack.c.b16 %v1664, %v1660
    %v1969 = vpack.c.b16 %v1665, %v1661
    %v1970 = vpack.c.b16 %v1666, %v1662
    %v1971 = vpack.c.b16 %v1667, %v1663
    %v1972 = vpack.c.b16 %v1672, %v1668
    %v1973 = vpack.c.b16 %v1673, %v1669
    %v1974 = vpack.c.b16 %v1674, %v1670
    %v1975 = vpack.c.b16 %v1675, %v1671
    %v1976 = vpack.c.b16 %v1680, %v1676
    %v1977 = vpack.c.b16 %v1681, %v1677
    %v1978 = vpack.c.b16 %v1682, %v1678
    %v1979 = vpack.c.b16 %v1683, %v1679
    %v1980 = vpack.c.b16 %v1688, %v1684
    %v1981 = vpack.c.b16 %v1689, %v1685
    %v1982 = vpack.c.b16 %v1690, %v1686
    %v1983 = vpack.c.b16 %v1691, %v1687
    %v1984 = vpack.c.b16 %v1696, %v1692
    %v1985 = vpack.c.b16 %v1697, %v1693
    %v1986 = vpack.c.b16 %v1698, %v1694
    %v1987 = vpack.c.b16 %v1699, %v1695
    %v1988 = vpack.c.b16 %v1704, %v1700
    %v1989 = vpack.c.b16 %v1705, %v1701
    %v1990 = vpack.c.b16 %v1706, %v1702
    %v1991 = vpack.c.b16 %v1707, %v1703
    %v1992 = vpack.c.b16 %v1712, %v1708
    %v1993 = vpack.c.b16 %v1713, %v1709
    %v1994 = vpack.c.b16 %v1714, %v1710
    %v1995 = vpack.c.b16 %v1715, %v1711
    %v1996 = vpack.c.b16 %v1720, %v1716
    %v1997 = vpack.c.b16 %v1721, %v1717
    %v1998 = vpack.c.b16 %v1722, %v1718
    %v1999 = vpack.c.b16 %v1723, %v1719
    %v2000 = vpack.c.b16 %v1728, %v1724
    %v2001 = vpack.c.b16 %v1729, %v1725
    %v2002 = vpack.c.b16 %v1730, %v1726
    %v2003 = vpack.c.b16 %v1731, %v1727
    %v2004 = vpack.c.b16 %v1736, %v1732
    %v2005 = vpack.c.b16 %v1737, %v1733
    %v2006 = vpack.c.b16 %v1738, %v1734
    %v2007 = vpack.c.b16 %v1739, %v1735
    %v2008 = vpack.c.b16 %v1744, %v1740
    %v2009 = vpack.c.b16 %v1745, %v1741
    %v2010 = vpack.c.b16 %v1746, %v1742
    %v2011 = vpack.c.b16 %v1747, %v1743
    %v2012 = vpack.c.b16 %v1752, %v1748
    %v2013 = vpack.c.b16 %v1753, %v1749
    %v2014 = vpack.c.b16 %v1754, %v1750
    %v2015 = vpack.c.b16 %v1755, %v1751
    %v2016 = vpack.c.b16 %v1760, %v1756
    %v2017 = vpack.c.b16 %v1761, %v1757
    %v2018 = vpack.c.b16 %v1762, %v1758
    %v2019 = vpack.c.b16 %v1763, %v1759
    %v2020 = vpack.c.b16 %v1768, %v1764
    %v2021 = vpack.c.b16 %v1769, %v1765
    %v2022 = vpack.c.b16 %v1770, %v1766
    %v2023 = vpack.c.b16 %v1771, %v1767
    %v2024 = vpack.c.b16 %v1776, %v1772
    %v2025 = vpack.c.b16 %v1777, %v1773
    %v2026 = vpack.c.b16 %v1778, %v1774
    %v2027 = vpack.c.b16 %v1779, %v1775
    %v2028 = vpack.c.b16 %v1784, %v1780
    %v2029 = vpack.c.b16 %v1785, %v1781
    %v2030 = vpack.c.b16 %v1786, %v1782
    %v2031 = vpack.c.b16 %v1787, %v1783
    %v2032 = vpack.c.b16 %v1792, %v1788
    %v2033 = vpack.c.b16 %v1793, %v1789
    %v2034 = vpack.c.b16 %v1794, %v1790
    %v2035 = vpack.c.b16 %v1795, %v1791
    %v2036 = vpack.c.b16 %v1800, %v1796
    %v2037 = vpack.c.b16 %v1801, %v1797
    %v2038 = vpack.c.b16 %v1802, %v1798
    %v2039 = vpack.c.b16 %v1803, %v1799
    %v2040 = vpack.c.b16 %v1808, %v1804
    %v2041 = vpack.c.b16 %v1809, %v1805
    %v2042 = vpack.c.b16 %v1810, %v1806
    %v2043 = vpack.c.b16 %v1811, %v1807
    %v2044 = vpack.c.b16 %v1816, %v1812
    %v2045 = vpack.c.b16 %v1817, %v1813
    %v2046 = vpack.c.b16 %v1818, %v1814
    %v2047 = vpack.c.b16 %v1819, %v1815
    %v2048 = vpack.c.b16 %v1824, %v1820
    %v2049 = vpack.c.b16 %v1825, %v1821
    %v2050 = vpack.c.b16 %v1826, %v1822
    %v2051 = vpack.c.b16 %v1827, %v1823
    %v2052 = vpack.c.b16 %v1832, %v1828
    %v2053 = vpack.c.b16 %v1833, %v1829
    %v2054 = vpack.c.b16 %v1834, %v1830
    %v2055 = vpack.c.b16 %v1835, %v1831
    %v2056 = vpack.c.b16 %v1840, %v1836
    %v2057 = vpack.c.b16 %v1841, %v1837
    %v2058 = vpack.c.b16 %v1842, %v1838
    %v2059 = vpack.c.b16 %v1843, %v1839
    %v2060 = vpack.c.b16 %v1848, %v1844
    %v2061 = vpack.c.b16 %v1849, %v1845
    %v2062 = vpack.c.b16 %v1850, %v1846
    %v2063 = vpack.c.b16 %v1851, %v1847
    %v2064 = vpack.c.b16 %v1856, %v1852
    %v2065 = vpack.c.b16 %v1857, %v1853
    %v2066 = vpack.c.b16 %v1858, %v1854
    %v2067 = vpack.c.b16 %v1859, %v1855
    %v2068 = vpack.c.b16 %v1864, %v1860
    %v2069 = vpack.c.b16 %v1865, %v1861
    %v2070 = vpack.c.b16 %v1866, %v1862
    %v2071 = vpack.c.b16 %v1867, %v1863
    %v2072 = vpack.c.b16 %v1872, %v1868
    %v2073 = vpack.c.b16 %v1873, %v1869
    %v2074 = vpack.c.b16 %v1874, %v1870
    %v2075 = vpack.c.b16 %v1875, %v1871
    %v2076 = vpack.c.b16 %v1880, %v1876
    %v2077 = vpack.c.b16 %v1881, %v1877
    %v2078 = vpack.c.b16 %v1882, %v1878
    %v2079 = vpack.c.b16 %v1883, %v1879
    %v2080 = vpack.c.b16 %v1888, %v1884
    %v2081 = vpack.c.b16 %v1889, %v1885
    %v2082 = vpack.c.b16 %v1890, %v1886
    %v2083 = vpack.c.b16 %v1891, %v1887
    %2276 = vmatprep.subr.bf16.mxu0 %v1893
    %2277 = vmatpush1.bf16.msra.mxu0 %v1892
    %2278 = vmatprep.subr.bf16.mxu0 %v1897
    %2279 = vmatpush1.bf16.msra.mxu0 %v1896
    %2280 = vmatprep.subr.bf16.mxu0 %v1901
    %2281 = vmatpush1.bf16.msra.mxu0 %v1900
    %2282 = vmatprep.subr.bf16.mxu0 %v1905
    %2283 = vmatpush1.bf16.msra.mxu0 %v1904
    %2284 = vmatprep.subr.bf16.mxu0 %v1909
    %2285 = vmatpush1.bf16.msra.mxu0 %v1908
    %2286 = vmatprep.subr.bf16.mxu0 %v1913
    %2287 = vmatpush1.bf16.msra.mxu0 %v1912
    %2288 = vmatprep.subr.bf16.mxu0 %v1917
    %2289 = vmatpush1.bf16.msra.mxu0 %v1916
    %2290 = vmatprep.subr.bf16.mxu0 %v1921
    %2291 = vmatpush1.bf16.msra.mxu0 %v1920
    %2292 = vmatprep.subr.bf16.mxu0 %v1925
    %2293 = vmatpush1.bf16.msra.mxu0 %v1924
    %2294 = vmatprep.subr.bf16.mxu0 %v1929
    %2295 = vmatpush1.bf16.msra.mxu0 %v1928
    %2296 = vmatprep.subr.bf16.mxu0 %v1933
    %2297 = vmatpush1.bf16.msra.mxu0 %v1932
    %2298 = vmatprep.subr.bf16.mxu0 %v1937
    %2299 = vmatpush1.bf16.msra.mxu0 %v1936
    %2300 = vmatprep.subr.bf16.mxu0 %v1941
    %2301 = vmatpush1.bf16.msra.mxu0 %v1940
    %2302 = vmatprep.subr.bf16.mxu0 %v1945
    %2303 = vmatpush1.bf16.msra.mxu0 %v1944
    %2304 = vmatprep.subr.bf16.mxu0 %v1949
    %2305 = vmatpush1.bf16.msra.mxu0 %v1948
    %2306 = vmatprep.subr.bf16.mxu0 %v1953
    %2307 = vmatpush1.bf16.msra.mxu0 %v1952
    %2308 = vmatprep.mubr.bf16.mxu0 %v1055
    %2309 = vmatmul.mubr.bf16.gmra.mrb[0].mxu0 %v1054
    %v2310 = vpop.f32.mrb[0].mxu0
    %v2311 = vadd.f32 %v1299, %v2310
    %v2312 = vpop.f32.mrb[0].mxu0
    %v2313 = vadd.f32 %v1303, %v2312
    %v2314 = vpop.f32.mrb[0].mxu0
    %v2315 = vadd.f32 %v1299, %v2314
    %v2316 = vpop.f32.mrb[0].mxu0
    %v2317 = vadd.f32 %v1303, %v2316
    %2318 = vmatprep.mubr.bf16.mxu0 %v1061
    %2319 = vmatmul.mubr.bf16.gmra.mrb[0].mxu0 %v1060
    %v2320 = vpop.f32.mrb[0].mxu0
    %v2321 = vadd.f32 %v1299, %v2320
    %v2322 = vpop.f32.mrb[0].mxu0
    %v2323 = vadd.f32 %v1303, %v2322
    %v2324 = vpop.f32.mrb[0].mxu0
    %v2325 = vadd.f32 %v1299, %v2324
    %v2326 = vpop.f32.mrb[0].mxu0
    %v2327 = vadd.f32 %v1303, %v2326
    %2328 = vmatprep.mubr.bf16.mxu0 %v1067
    %2329 = vmatmul.mubr.bf16.gmra.mrb[0].mxu0 %v1066
    %v2330 = vpop.f32.mrb[0].mxu0
    %v2331 = vadd.f32 %v1299, %v2330
    %v2332 = vpop.f32.mrb[0].mxu0
    %v2333 = vadd.f32 %v1303, %v2332
    %v2334 = vpop.f32.mrb[0].mxu0
    %v2335 = vadd.f32 %v1299, %v2334
    %v2336 = vpop.f32.mrb[0].mxu0
    %v2337 = vadd.f32 %v1303, %v2336
    %2338 = vmatprep.mubr.bf16.mxu0 %v1073
    %2339 = vmatmul.mubr.bf16.gmra.mrb[0].mxu0 %v1072
    %v2340 = vpop.f32.mrb[0].mxu0
    %v2341 = vadd.f32 %v1299, %v2340
    %v2342 = vpop.f32.mrb[0].mxu0
    %v2343 = vadd.f32 %v1303, %v2342
    %v2344 = vpop.f32.mrb[0].mxu0
    %v2345 = vadd.f32 %v1299, %v2344
    %v2346 = vpop.f32.mrb[0].mxu0
    %v2347 = vadd.f32 %v1303, %v2346
    %2348 = vmatprep.mubr.bf16.mxu0 %v1079
    %2349 = vmatmul.mubr.bf16.gmra.mrb[0].mxu0 %v1078
    %v2350 = vpop.f32.mrb[0].mxu0
    %v2351 = vadd.f32 %v1299, %v2350
    %v2352 = vpop.f32.mrb[0].mxu0
    %v2353 = vadd.f32 %v1303, %v2352
    %v2354 = vpop.f32.mrb[0].mxu0
    %v2355 = vadd.f32 %v1299, %v2354
    %v2356 = vpop.f32.mrb[0].mxu0
    %v2357 = vadd.f32 %v1303, %v2356
    %2358 = vmatprep.mubr.bf16.mxu0 %v1085
    %2359 = vmatmul.mubr.bf16.gmra.mrb[0].mxu0 %v1084
    %v2360 = vpop.f32.mrb[0].mxu0
    %v2361 = vadd.f32 %v1299, %v2360
    %v2362 = vpop.f32.mrb[0].mxu0
    %v2363 = vadd.f32 %v1303, %v2362
    %v2364 = vpop.f32.mrb[0].mxu0
    %v2365 = vadd.f32 %v1299, %v2364
    %v2366 = vpop.f32.mrb[0].mxu0
    %v2367 = vadd.f32 %v1303, %v2366
    %2368 = vmatprep.mubr.bf16.mxu0 %v1091
    %2369 = vmatmul.mubr.bf16.gmra.mrb[0].mxu0 %v1090
    %v2370 = vpop.f32.mrb[0].mxu0
    %v2371 = vadd.f32 %v1299, %v2370
    %v2372 = vpop.f32.mrb[0].mxu0
    %v2373 = vadd.f32 %v1303, %v2372
    %v2374 = vpop.f32.mrb[0].mxu0
    %v2375 = vadd.f32 %v1299, %v2374
    %v2376 = vpop.f32.mrb[0].mxu0
    %v2377 = vadd.f32 %v1303, %v2376
    %2378 = vmatprep.mubr.bf16.mxu0 %v1097
    %2379 = vmatmul.mubr.bf16.gmra.mrb[0].mxu0 %v1096
    %v2380 = vpop.f32.mrb[0].mxu0
    %v2381 = vadd.f32 %v1299, %v2380
    %v2382 = vpop.f32.mrb[0].mxu0
    %v2383 = vadd.f32 %v1303, %v2382
    %v2384 = vpop.f32.mrb[0].mxu0
    %v2385 = vadd.f32 %v1299, %v2384
    %v2386 = vpop.f32.mrb[0].mxu0
    %v2387 = vadd.f32 %v1303, %v2386
    %2388 = vdwg.mxu0
    %2389 = vmatprep.subr.bf16.mxu0 %v1957
    %2390 = vmatpush1.bf16.msra.mxu0 %v1956
    %2391 = vmatprep.subr.bf16.mxu0 %v1961
    %2392 = vmatpush1.bf16.msra.mxu0 %v1960
    %2393 = vmatprep.subr.bf16.mxu0 %v1965
    %2394 = vmatpush1.bf16.msra.mxu0 %v1964
    %2395 = vmatprep.subr.bf16.mxu0 %v1969
    %2396 = vmatpush1.bf16.msra.mxu0 %v1968
    %2397 = vmatprep.subr.bf16.mxu0 %v1973
    %2398 = vmatpush1.bf16.msra.mxu0 %v1972
    %2399 = vmatprep.subr.bf16.mxu0 %v1977
    %2400 = vmatpush1.bf16.msra.mxu0 %v1976
    %2401 = vmatprep.subr.bf16.mxu0 %v1981
    %2402 = vmatpush1.bf16.msra.mxu0 %v1980
    %2403 = vmatprep.subr.bf16.mxu0 %v1985
    %2404 = vmatpush1.bf16.msra.mxu0 %v1984
    %2405 = vmatprep.subr.bf16.mxu0 %v1989
    %2406 = vmatpush1.bf16.msra.mxu0 %v1988
    %2407 = vmatprep.subr.bf16.mxu0 %v1993
    %2408 = vmatpush1.bf16.msra.mxu0 %v1992
    %2409 = vmatprep.subr.bf16.mxu0 %v1997
    %2410 = vmatpush1.bf16.msra.mxu0 %v1996
    %2411 = vmatprep.subr.bf16.mxu0 %v2001
    %2412 = vmatpush1.bf16.msra.mxu0 %v2000
    %2413 = vmatprep.subr.bf16.mxu0 %v2005
    %2414 = vmatpush1.bf16.msra.mxu0 %v2004
    %2415 = vmatprep.subr.bf16.mxu0 %v2009
    %2416 = vmatpush1.bf16.msra.mxu0 %v2008
    %2417 = vmatprep.subr.bf16.mxu0 %v2013
    %2418 = vmatpush1.bf16.msra.mxu0 %v2012
    %2419 = vmatprep.subr.bf16.mxu0 %v2017
    %2420 = vmatpush1.bf16.msra.mxu0 %v2016
    %2421 = vmatprep.mubr.bf16.mxu0 %v1057
    %2422 = vmatmul.mubr.bf16.gmra.mrb[0].mxu0 %v1056
    %v2423 = vpop.f32.mrb[0].mxu0
    %v2424 = vadd.f32 %v2311, %v2423
    %v2425 = vpop.f32.mrb[0].mxu0
    %v2426 = vadd.f32 %v2313, %v2425
    %v2427 = vpop.f32.mrb[0].mxu0
    %v2428 = vadd.f32 %v2315, %v2427
    %v2429 = vpop.f32.mrb[0].mxu0
    %v2430 = vadd.f32 %v2317, %v2429
    %2431 = vmatprep.mubr.bf16.mxu0 %v1063
    %2432 = vmatmul.mubr.bf16.gmra.mrb[0].mxu0 %v1062
    %v2433 = vpop.f32.mrb[0].mxu0
    %v2434 = vadd.f32 %v2321, %v2433
    %v2435 = vpop.f32.mrb[0].mxu0
    %v2436 = vadd.f32 %v2323, %v2435
    %v2437 = vpop.f32.mrb[0].mxu0
    %v2438 = vadd.f32 %v2325, %v2437
    %v2439 = vpop.f32.mrb[0].mxu0
    %v2440 = vadd.f32 %v2327, %v2439
    %2441 = vmatprep.mubr.bf16.mxu0 %v1069
    %2442 = vmatmul.mubr.bf16.gmra.mrb[0].mxu0 %v1068
    %v2443 = vpop.f32.mrb[0].mxu0
    %v2444 = vadd.f32 %v2331, %v2443
    %v2445 = vpop.f32.mrb[0].mxu0
    %v2446 = vadd.f32 %v2333, %v2445
    %v2447 = vpop.f32.mrb[0].mxu0
    %v2448 = vadd.f32 %v2335, %v2447
    %v2449 = vpop.f32.mrb[0].mxu0
    %v2450 = vadd.f32 %v2337, %v2449
    %2451 = vmatprep.mubr.bf16.mxu0 %v1075
    %2452 = vmatmul.mubr.bf16.gmra.mrb[0].mxu0 %v1074
    %v2453 = vpop.f32.mrb[0].mxu0
    %v2454 = vadd.f32 %v2341, %v2453
    %v2455 = vpop.f32.mrb[0].mxu0
    %v2456 = vadd.f32 %v2343, %v2455
    %v2457 = vpop.f32.mrb[0].mxu0
    %v2458 = vadd.f32 %v2345, %v2457
    %v2459 = vpop.f32.mrb[0].mxu0
    %v2460 = vadd.f32 %v2347, %v2459
    %2461 = vmatprep.mubr.bf16.mxu0 %v1081
    %2462 = vmatmul.mubr.bf16.gmra.mrb[0].mxu0 %v1080
    %v2463 = vpop.f32.mrb[0].mxu0
    %v2464 = vadd.f32 %v2351, %v2463
    %v2465 = vpop.f32.mrb[0].mxu0
    %v2466 = vadd.f32 %v2353, %v2465
    %v2467 = vpop.f32.mrb[0].mxu0
    %v2468 = vadd.f32 %v2355, %v2467
    %v2469 = vpop.f32.mrb[0].mxu0
    %v2470 = vadd.f32 %v2357, %v2469
    %2471 = vmatprep.mubr.bf16.mxu0 %v1087
    %2472 = vmatmul.mubr.bf16.gmra.mrb[0].mxu0 %v1086
    %v2473 = vpop.f32.mrb[0].mxu0
    %v2474 = vadd.f32 %v2361, %v2473
    %v2475 = vpop.f32.mrb[0].mxu0
    %v2476 = vadd.f32 %v2363, %v2475
    %v2477 = vpop.f32.mrb[0].mxu0
    %v2478 = vadd.f32 %v2365, %v2477
    %v2479 = vpop.f32.mrb[0].mxu0
    %v2480 = vadd.f32 %v2367, %v2479
    %2481 = vmatprep.mubr.bf16.mxu0 %v1093
    %2482 = vmatmul.mubr.bf16.gmra.mrb[0].mxu0 %v1092
    %v2483 = vpop.f32.mrb[0].mxu0
    %v2484 = vadd.f32 %v2371, %v2483
    %v2485 = vpop.f32.mrb[0].mxu0
    %v2486 = vadd.f32 %v2373, %v2485
    %v2487 = vpop.f32.mrb[0].mxu0
    %v2488 = vadd.f32 %v2375, %v2487
    %v2489 = vpop.f32.mrb[0].mxu0
    %v2490 = vadd.f32 %v2377, %v2489
    %2491 = vmatprep.mubr.bf16.mxu0 %v1099
    %2492 = vmatmul.mubr.bf16.gmra.mrb[0].mxu0 %v1098
    %v2493 = vpop.f32.mrb[0].mxu0
    %v2494 = vadd.f32 %v2381, %v2493
    %v2495 = vpop.f32.mrb[0].mxu0
    %v2496 = vadd.f32 %v2383, %v2495
    %v2497 = vpop.f32.mrb[0].mxu0
    %v2498 = vadd.f32 %v2385, %v2497
    %v2499 = vpop.f32.mrb[0].mxu0
    %v2500 = vadd.f32 %v2387, %v2499
    %2501 = vdwg.mxu0
    %2502 = vmatprep.subr.bf16.mxu0 %v2021
    %2503 = vmatpush1.bf16.msra.mxu0 %v2020
    %2504 = vmatprep.subr.bf16.mxu0 %v2025
    %2505 = vmatpush1.bf16.msra.mxu0 %v2024
    %2506 = vmatprep.subr.bf16.mxu0 %v2029
    %2507 = vmatpush1.bf16.msra.mxu0 %v2028
    %2508 = vmatprep.subr.bf16.mxu0 %v2033
    %2509 = vmatpush1.bf16.msra.mxu0 %v2032
    %2510 = vmatprep.subr.bf16.mxu0 %v2037
    %2511 = vmatpush1.bf16.msra.mxu0 %v2036
    %2512 = vmatprep.subr.bf16.mxu0 %v2041
    %2513 = vmatpush1.bf16.msra.mxu0 %v2040
    %2514 = vmatprep.subr.bf16.mxu0 %v2045
    %2515 = vmatpush1.bf16.msra.mxu0 %v2044
    %2516 = vmatprep.subr.bf16.mxu0 %v2049
    %2517 = vmatpush1.bf16.msra.mxu0 %v2048
    %2518 = vmatprep.subr.bf16.mxu0 %v2053
    %2519 = vmatpush1.bf16.msra.mxu0 %v2052
    %2520 = vmatprep.subr.bf16.mxu0 %v2057
    %2521 = vmatpush1.bf16.msra.mxu0 %v2056
    %2522 = vmatprep.subr.bf16.mxu0 %v2061
    %2523 = vmatpush1.bf16.msra.mxu0 %v2060
    %2524 = vmatprep.subr.bf16.mxu0 %v2065
    %2525 = vmatpush1.bf16.msra.mxu0 %v2064
    %2526 = vmatprep.subr.bf16.mxu0 %v2069
    %2527 = vmatpush1.bf16.msra.mxu0 %v2068
    %2528 = vmatprep.subr.bf16.mxu0 %v2073
    %2529 = vmatpush1.bf16.msra.mxu0 %v2072
    %2530 = vmatprep.subr.bf16.mxu0 %v2077
    %2531 = vmatpush1.bf16.msra.mxu0 %v2076
    %2532 = vmatprep.subr.bf16.mxu0 %v2081
    %2533 = vmatpush1.bf16.msra.mxu0 %v2080
    %2534 = vmatprep.mubr.bf16.mxu0 %v1059
    %2535 = vmatmul.mubr.bf16.gmra.mrb[0].mxu0 %v1058
    %v2536 = vpop.f32.mrb[0].mxu0
    %v2537 = vadd.f32 %v2424, %v2536
    %v2538 = vpop.f32.mrb[0].mxu0
    %v2539 = vadd.f32 %v2426, %v2538
    %v2540 = vpop.f32.mrb[0].mxu0
    %v2541 = vadd.f32 %v2428, %v2540
    %v2542 = vpop.f32.mrb[0].mxu0
    %v2543 = vadd.f32 %v2430, %v2542
    %2544 = vmatprep.mubr.bf16.mxu0 %v1065
    %2545 = vmatmul.mubr.bf16.gmra.mrb[0].mxu0 %v1064
    %v2546 = vpop.f32.mrb[0].mxu0
    %v2547 = vadd.f32 %v2434, %v2546
    %v2548 = vpop.f32.mrb[0].mxu0
    %v2549 = vadd.f32 %v2436, %v2548
    %v2550 = vpop.f32.mrb[0].mxu0
    %v2551 = vadd.f32 %v2438, %v2550
    %v2552 = vpop.f32.mrb[0].mxu0
    %v2553 = vadd.f32 %v2440, %v2552
    %2554 = vmatprep.mubr.bf16.mxu0 %v1071
    %2555 = vmatmul.mubr.bf16.gmra.mrb[0].mxu0 %v1070
    %v2556 = vpop.f32.mrb[0].mxu0
    %v2557 = vadd.f32 %v2444, %v2556
    %v2558 = vpop.f32.mrb[0].mxu0
    %v2559 = vadd.f32 %v2446, %v2558
    %v2560 = vpop.f32.mrb[0].mxu0
    %v2561 = vadd.f32 %v2448, %v2560
    %v2562 = vpop.f32.mrb[0].mxu0
    %v2563 = vadd.f32 %v2450, %v2562
    %2564 = vmatprep.mubr.bf16.mxu0 %v1077
    %2565 = vmatmul.mubr.bf16.gmra.mrb[0].mxu0 %v1076
    %v2566 = vpop.f32.mrb[0].mxu0
    %v2567 = vadd.f32 %v2454, %v2566
    %v2568 = vpop.f32.mrb[0].mxu0
    %v2569 = vadd.f32 %v2456, %v2568
    %v2570 = vpop.f32.mrb[0].mxu0
    %v2571 = vadd.f32 %v2458, %v2570
    %v2572 = vpop.f32.mrb[0].mxu0
    %v2573 = vadd.f32 %v2460, %v2572
    %2574 = vmatprep.mubr.bf16.mxu0 %v1083
    %2575 = vmatmul.mubr.bf16.gmra.mrb[0].mxu0 %v1082
    %v2576 = vpop.f32.mrb[0].mxu0
    %v2577 = vadd.f32 %v2464, %v2576
    %v2578 = vpop.f32.mrb[0].mxu0
    %v2579 = vadd.f32 %v2466, %v2578
    %v2580 = vpop.f32.mrb[0].mxu0
    %v2581 = vadd.f32 %v2468, %v2580
    %v2582 = vpop.f32.mrb[0].mxu0
    %v2583 = vadd.f32 %v2470, %v2582
    %2584 = vmatprep.mubr.bf16.mxu0 %v1089
    %2585 = vmatmul.mubr.bf16.gmra.mrb[0].mxu0 %v1088
    %v2586 = vpop.f32.mrb[0].mxu0
    %v2587 = vadd.f32 %v2474, %v2586
    %v2588 = vpop.f32.mrb[0].mxu0
    %v2589 = vadd.f32 %v2476, %v2588
    %v2590 = vpop.f32.mrb[0].mxu0
    %v2591 = vadd.f32 %v2478, %v2590
    %v2592 = vpop.f32.mrb[0].mxu0
    %v2593 = vadd.f32 %v2480, %v2592
    %2594 = vmatprep.mubr.bf16.mxu0 %v1095
    %2595 = vmatmul.mubr.bf16.gmra.mrb[0].mxu0 %v1094
    %v2596 = vpop.f32.mrb[0].mxu0
    %v2597 = vadd.f32 %v2484, %v2596
    %v2598 = vpop.f32.mrb[0].mxu0
    %v2599 = vadd.f32 %v2486, %v2598
    %v2600 = vpop.f32.mrb[0].mxu0
    %v2601 = vadd.f32 %v2488, %v2600
    %v2602 = vpop.f32.mrb[0].mxu0
    %v2603 = vadd.f32 %v2490, %v2602
    %2604 = vmatprep.mubr.bf16.mxu0 %v1101
    %2605 = vmatmul.mubr.bf16.gmra.mrb[0].mxu0 %v1100
    %v2606 = vpop.f32.mrb[0].mxu0
    %v2607 = vadd.f32 %v2494, %v2606
    %v2608 = vpop.f32.mrb[0].mxu0
    %v2609 = vadd.f32 %v2496, %v2608
    %v2610 = vpop.f32.mrb[0].mxu0
    %v2611 = vadd.f32 %v2498, %v2610
    %v2612 = vpop.f32.mrb[0].mxu0
    %v2613 = vadd.f32 %v2500, %v2612
    %2614 = vdwg.mxu0
    %2615 = vmatprep.subr.bf16.mxu0 %v1895
    %2616 = vmatpush1.bf16.msra.mxu0 %v1894
    %2617 = vmatprep.subr.bf16.mxu0 %v1899
    %2618 = vmatpush1.bf16.msra.mxu0 %v1898
    %2619 = vmatprep.subr.bf16.mxu0 %v1903
    %2620 = vmatpush1.bf16.msra.mxu0 %v1902
    %2621 = vmatprep.subr.bf16.mxu0 %v1907
    %2622 = vmatpush1.bf16.msra.mxu0 %v1906
    %2623 = vmatprep.subr.bf16.mxu0 %v1911
    %2624 = vmatpush1.bf16.msra.mxu0 %v1910
    %2625 = vmatprep.subr.bf16.mxu0 %v1915
    %2626 = vmatpush1.bf16.msra.mxu0 %v1914
    %2627 = vmatprep.subr.bf16.mxu0 %v1919
    %2628 = vmatpush1.bf16.msra.mxu0 %v1918
    %2629 = vmatprep.subr.bf16.mxu0 %v1923
    %2630 = vmatpush1.bf16.msra.mxu0 %v1922
    %2631 = vmatprep.subr.bf16.mxu0 %v1927
    %2632 = vmatpush1.bf16.msra.mxu0 %v1926
    %2633 = vmatprep.subr.bf16.mxu0 %v1931
    %2634 = vmatpush1.bf16.msra.mxu0 %v1930
    %2635 = vmatprep.subr.bf16.mxu0 %v1935
    %2636 = vmatpush1.bf16.msra.mxu0 %v1934
    %2637 = vmatprep.subr.bf16.mxu0 %v1939
    %2638 = vmatpush1.bf16.msra.mxu0 %v1938
    %2639 = vmatprep.subr.bf16.mxu0 %v1943
    %2640 = vmatpush1.bf16.msra.mxu0 %v1942
    %2641 = vmatprep.subr.bf16.mxu0 %v1947
    %2642 = vmatpush1.bf16.msra.mxu0 %v1946
    %2643 = vmatprep.subr.bf16.mxu0 %v1951
    %2644 = vmatpush1.bf16.msra.mxu0 %v1950
    %2645 = vmatprep.subr.bf16.mxu0 %v1955
    %2646 = vmatpush1.bf16.msra.mxu0 %v1954
    %2647 = vmatprep.mubr.bf16.mxu0 %v1055
    %2648 = vmatmul.mubr.bf16.gmra.mrb[0].mxu0 %v1054
    %v2649 = vpop.f32.mrb[0].mxu0
    %v2650 = vadd.f32 %v1307, %v2649
    %v2651 = vpop.f32.mrb[0].mxu0
    %v2652 = vadd.f32 %v1311, %v2651
    %v2653 = vpop.f32.mrb[0].mxu0
    %v2654 = vadd.f32 %v1307, %v2653
    %v2655 = vpop.f32.mrb[0].mxu0
    %v2656 = vadd.f32 %v1311, %v2655
    %2657 = vmatprep.mubr.bf16.mxu0 %v1061
    %2658 = vmatmul.mubr.bf16.gmra.mrb[0].mxu0 %v1060
    %v2659 = vpop.f32.mrb[0].mxu0
    %v2660 = vadd.f32 %v1307, %v2659
    %v2661 = vpop.f32.mrb[0].mxu0
    %v2662 = vadd.f32 %v1311, %v2661
    %v2663 = vpop.f32.mrb[0].mxu0
    %v2664 = vadd.f32 %v1307, %v2663
    %v2665 = vpop.f32.mrb[0].mxu0
    %v2666 = vadd.f32 %v1311, %v2665
    %2667 = vmatprep.mubr.bf16.mxu0 %v1067
    %2668 = vmatmul.mubr.bf16.gmra.mrb[0].mxu0 %v1066
    %v2669 = vpop.f32.mrb[0].mxu0
    %v2670 = vadd.f32 %v1307, %v2669
    %v2671 = vpop.f32.mrb[0].mxu0
    %v2672 = vadd.f32 %v1311, %v2671
    %v2673 = vpop.f32.mrb[0].mxu0
    %v2674 = vadd.f32 %v1307, %v2673
    %v2675 = vpop.f32.mrb[0].mxu0
    %v2676 = vadd.f32 %v1311, %v2675
    %2677 = vmatprep.mubr.bf16.mxu0 %v1073
    %2678 = vmatmul.mubr.bf16.gmra.mrb[0].mxu0 %v1072
    %v2679 = vpop.f32.mrb[0].mxu0
    %v2680 = vadd.f32 %v1307, %v2679
    %v2681 = vpop.f32.mrb[0].mxu0
    %v2682 = vadd.f32 %v1311, %v2681
    %v2683 = vpop.f32.mrb[0].mxu0
    %v2684 = vadd.f32 %v1307, %v2683
    %v2685 = vpop.f32.mrb[0].mxu0
    %v2686 = vadd.f32 %v1311, %v2685
    %2687 = vmatprep.mubr.bf16.mxu0 %v1079
    %2688 = vmatmul.mubr.bf16.gmra.mrb[0].mxu0 %v1078
    %v2689 = vpop.f32.mrb[0].mxu0
    %v2690 = vadd.f32 %v1307, %v2689
    %v2691 = vpop.f32.mrb[0].mxu0
    %v2692 = vadd.f32 %v1311, %v2691
    %v2693 = vpop.f32.mrb[0].mxu0
    %v2694 = vadd.f32 %v1307, %v2693
    %v2695 = vpop.f32.mrb[0].mxu0
    %v2696 = vadd.f32 %v1311, %v2695
    %2697 = vmatprep.mubr.bf16.mxu0 %v1085
    %2698 = vmatmul.mubr.bf16.gmra.mrb[0].mxu0 %v1084
    %v2699 = vpop.f32.mrb[0].mxu0
    %v2700 = vadd.f32 %v1307, %v2699
    %v2701 = vpop.f32.mrb[0].mxu0
    %v2702 = vadd.f32 %v1311, %v2701
    %v2703 = vpop.f32.mrb[0].mxu0
    %v2704 = vadd.f32 %v1307, %v2703
    %v2705 = vpop.f32.mrb[0].mxu0
    %v2706 = vadd.f32 %v1311, %v2705
    %2707 = vmatprep.mubr.bf16.mxu0 %v1091
    %2708 = vmatmul.mubr.bf16.gmra.mrb[0].mxu0 %v1090
    %v2709 = vpop.f32.mrb[0].mxu0
    %v2710 = vadd.f32 %v1307, %v2709
    %v2711 = vpop.f32.mrb[0].mxu0
    %v2712 = vadd.f32 %v1311, %v2711
    %v2713 = vpop.f32.mrb[0].mxu0
    %v2714 = vadd.f32 %v1307, %v2713
    %v2715 = vpop.f32.mrb[0].mxu0
    %v2716 = vadd.f32 %v1311, %v2715
    %2717 = vmatprep.mubr.bf16.mxu0 %v1097
    %2718 = vmatmul.mubr.bf16.gmra.mrb[0].mxu0 %v1096
    %v2719 = vpop.f32.mrb[0].mxu0
    %v2720 = vadd.f32 %v1307, %v2719
    %v2721 = vpop.f32.mrb[0].mxu0
    %v2722 = vadd.f32 %v1311, %v2721
    %v2723 = vpop.f32.mrb[0].mxu0
    %v2724 = vadd.f32 %v1307, %v2723
    %v2725 = vpop.f32.mrb[0].mxu0
    %v2726 = vadd.f32 %v1311, %v2725
    %2727 = vdwg.mxu0
    %2728 = vmatprep.subr.bf16.mxu0 %v1959
    %2729 = vmatpush1.bf16.msra.mxu0 %v1958
    %2730 = vmatprep.subr.bf16.mxu0 %v1963
    %2731 = vmatpush1.bf16.msra.mxu0 %v1962
    %2732 = vmatprep.subr.bf16.mxu0 %v1967
    %2733 = vmatpush1.bf16.msra.mxu0 %v1966
    %2734 = vmatprep.subr.bf16.mxu0 %v1971
    %2735 = vmatpush1.bf16.msra.mxu0 %v1970
    %2736 = vmatprep.subr.bf16.mxu0 %v1975
    %2737 = vmatpush1.bf16.msra.mxu0 %v1974
    %2738 = vmatprep.subr.bf16.mxu0 %v1979
    %2739 = vmatpush1.bf16.msra.mxu0 %v1978
    %2740 = vmatprep.subr.bf16.mxu0 %v1983
    %2741 = vmatpush1.bf16.msra.mxu0 %v1982
    %2742 = vmatprep.subr.bf16.mxu0 %v1987
    %2743 = vmatpush1.bf16.msra.mxu0 %v1986
    %2744 = vmatprep.subr.bf16.mxu0 %v1991
    %2745 = vmatpush1.bf16.msra.mxu0 %v1990
    %2746 = vmatprep.subr.bf16.mxu0 %v1995
    %2747 = vmatpush1.bf16.msra.mxu0 %v1994
    %2748 = vmatprep.subr.bf16.mxu0 %v1999
    %2749 = vmatpush1.bf16.msra.mxu0 %v1998
    %2750 = vmatprep.subr.bf16.mxu0 %v2003
    %2751 = vmatpush1.bf16.msra.mxu0 %v2002
    %2752 = vmatprep.subr.bf16.mxu0 %v2007
    %2753 = vmatpush1.bf16.msra.mxu0 %v2006
    %2754 = vmatprep.subr.bf16.mxu0 %v2011
    %2755 = vmatpush1.bf16.msra.mxu0 %v2010
    %2756 = vmatprep.subr.bf16.mxu0 %v2015
    %2757 = vmatpush1.bf16.msra.mxu0 %v2014
    %2758 = vmatprep.subr.bf16.mxu0 %v2019
    %2759 = vmatpush1.bf16.msra.mxu0 %v2018
    %2760 = vmatprep.mubr.bf16.mxu0 %v1057
    %2761 = vmatmul.mubr.bf16.gmra.mrb[0].mxu0 %v1056
    %v2762 = vpop.f32.mrb[0].mxu0
    %v2763 = vadd.f32 %v2650, %v2762
    %v2764 = vpop.f32.mrb[0].mxu0
    %v2765 = vadd.f32 %v2652, %v2764
    %v2766 = vpop.f32.mrb[0].mxu0
    %v2767 = vadd.f32 %v2654, %v2766
    %v2768 = vpop.f32.mrb[0].mxu0
    %v2769 = vadd.f32 %v2656, %v2768
    %2770 = vmatprep.mubr.bf16.mxu0 %v1063
    %2771 = vmatmul.mubr.bf16.gmra.mrb[0].mxu0 %v1062
    %v2772 = vpop.f32.mrb[0].mxu0
    %v2773 = vadd.f32 %v2660, %v2772
    %v2774 = vpop.f32.mrb[0].mxu0
    %v2775 = vadd.f32 %v2662, %v2774
    %v2776 = vpop.f32.mrb[0].mxu0
    %v2777 = vadd.f32 %v2664, %v2776
    %v2778 = vpop.f32.mrb[0].mxu0
    %v2779 = vadd.f32 %v2666, %v2778
    %2780 = vmatprep.mubr.bf16.mxu0 %v1069
    %2781 = vmatmul.mubr.bf16.gmra.mrb[0].mxu0 %v1068
    %v2782 = vpop.f32.mrb[0].mxu0
    %v2783 = vadd.f32 %v2670, %v2782
    %v2784 = vpop.f32.mrb[0].mxu0
    %v2785 = vadd.f32 %v2672, %v2784
    %v2786 = vpop.f32.mrb[0].mxu0
    %v2787 = vadd.f32 %v2674, %v2786
    %v2788 = vpop.f32.mrb[0].mxu0
    %v2789 = vadd.f32 %v2676, %v2788
    %2790 = vmatprep.mubr.bf16.mxu0 %v1075
    %2791 = vmatmul.mubr.bf16.gmra.mrb[0].mxu0 %v1074
    %v2792 = vpop.f32.mrb[0].mxu0
    %v2793 = vadd.f32 %v2680, %v2792
    %v2794 = vpop.f32.mrb[0].mxu0
    %v2795 = vadd.f32 %v2682, %v2794
    %v2796 = vpop.f32.mrb[0].mxu0
    %v2797 = vadd.f32 %v2684, %v2796
    %v2798 = vpop.f32.mrb[0].mxu0
    %v2799 = vadd.f32 %v2686, %v2798
    %2800 = vmatprep.mubr.bf16.mxu0 %v1081
    %2801 = vmatmul.mubr.bf16.gmra.mrb[0].mxu0 %v1080
    %v2802 = vpop.f32.mrb[0].mxu0
    %v2803 = vadd.f32 %v2690, %v2802
    %v2804 = vpop.f32.mrb[0].mxu0
    %v2805 = vadd.f32 %v2692, %v2804
    %v2806 = vpop.f32.mrb[0].mxu0
    %v2807 = vadd.f32 %v2694, %v2806
    %v2808 = vpop.f32.mrb[0].mxu0
    %v2809 = vadd.f32 %v2696, %v2808
    %2810 = vmatprep.mubr.bf16.mxu0 %v1087
    %2811 = vmatmul.mubr.bf16.gmra.mrb[0].mxu0 %v1086
    %v2812 = vpop.f32.mrb[0].mxu0
    %v2813 = vadd.f32 %v2700, %v2812
    %v2814 = vpop.f32.mrb[0].mxu0
    %v2815 = vadd.f32 %v2702, %v2814
    %v2816 = vpop.f32.mrb[0].mxu0
    %v2817 = vadd.f32 %v2704, %v2816
    %v2818 = vpop.f32.mrb[0].mxu0
    %v2819 = vadd.f32 %v2706, %v2818
    %2820 = vmatprep.mubr.bf16.mxu0 %v1093
    %2821 = vmatmul.mubr.bf16.gmra.mrb[0].mxu0 %v1092
    %v2822 = vpop.f32.mrb[0].mxu0
    %v2823 = vadd.f32 %v2710, %v2822
    %v2824 = vpop.f32.mrb[0].mxu0
    %v2825 = vadd.f32 %v2712, %v2824
    %v2826 = vpop.f32.mrb[0].mxu0
    %v2827 = vadd.f32 %v2714, %v2826
    %v2828 = vpop.f32.mrb[0].mxu0
    %v2829 = vadd.f32 %v2716, %v2828
    %2830 = vmatprep.mubr.bf16.mxu0 %v1099
    %2831 = vmatmul.mubr.bf16.gmra.mrb[0].mxu0 %v1098
    %v2832 = vpop.f32.mrb[0].mxu0
    %v2833 = vadd.f32 %v2720, %v2832
    %v2834 = vpop.f32.mrb[0].mxu0
    %v2835 = vadd.f32 %v2722, %v2834
    %v2836 = vpop.f32.mrb[0].mxu0
    %v2837 = vadd.f32 %v2724, %v2836
    %v2838 = vpop.f32.mrb[0].mxu0
    %v2839 = vadd.f32 %v2726, %v2838
    %2840 = vdwg.mxu0
    %2841 = vmatprep.subr.bf16.mxu0 %v2023
    %2842 = vmatpush1.bf16.msra.mxu0 %v2022
    %2843 = vmatprep.subr.bf16.mxu0 %v2027
    %2844 = vmatpush1.bf16.msra.mxu0 %v2026
    %2845 = vmatprep.subr.bf16.mxu0 %v2031
    %2846 = vmatpush1.bf16.msra.mxu0 %v2030
    %2847 = vmatprep.subr.bf16.mxu0 %v2035
    %2848 = vmatpush1.bf16.msra.mxu0 %v2034
    %2849 = vmatprep.subr.bf16.mxu0 %v2039
    %2850 = vmatpush1.bf16.msra.mxu0 %v2038
    %2851 = vmatprep.subr.bf16.mxu0 %v2043
    %2852 = vmatpush1.bf16.msra.mxu0 %v2042
    %2853 = vmatprep.subr.bf16.mxu0 %v2047
    %2854 = vmatpush1.bf16.msra.mxu0 %v2046
    %2855 = vmatprep.subr.bf16.mxu0 %v2051
    %2856 = vmatpush1.bf16.msra.mxu0 %v2050
    %2857 = vmatprep.subr.bf16.mxu0 %v2055
    %2858 = vmatpush1.bf16.msra.mxu0 %v2054
    %2859 = vmatprep.subr.bf16.mxu0 %v2059
    %2860 = vmatpush1.bf16.msra.mxu0 %v2058
    %2861 = vmatprep.subr.bf16.mxu0 %v2063
    %2862 = vmatpush1.bf16.msra.mxu0 %v2062
    %2863 = vmatprep.subr.bf16.mxu0 %v2067
    %2864 = vmatpush1.bf16.msra.mxu0 %v2066
    %2865 = vmatprep.subr.bf16.mxu0 %v2071
    %2866 = vmatpush1.bf16.msra.mxu0 %v2070
    %2867 = vmatprep.subr.bf16.mxu0 %v2075
    %2868 = vmatpush1.bf16.msra.mxu0 %v2074
    %2869 = vmatprep.subr.bf16.mxu0 %v2079
    %2870 = vmatpush1.bf16.msra.mxu0 %v2078
    %2871 = vmatprep.subr.bf16.mxu0 %v2083
    %2872 = vmatpush1.bf16.msra.mxu0 %v2082
    %2873 = vmatprep.mubr.bf16.mxu0 %v1059
    %2874 = vmatmul.mubr.bf16.gmra.mrb[0].mxu0 %v1058
    %v2875 = vpop.f32.mrb[0].mxu0
    %v2876 = vadd.f32 %v2763, %v2875
    %v2877 = vpop.f32.mrb[0].mxu0
    %v2878 = vadd.f32 %v2765, %v2877
    %v2879 = vpop.f32.mrb[0].mxu0
    %v2880 = vadd.f32 %v2767, %v2879
    %v2881 = vpop.f32.mrb[0].mxu0
    %v2882 = vadd.f32 %v2769, %v2881
    %2883 = vmatprep.mubr.bf16.mxu0 %v1065
    %2884 = vmatmul.mubr.bf16.gmra.mrb[0].mxu0 %v1064
    %v2885 = vpop.f32.mrb[0].mxu0
    %v2886 = vadd.f32 %v2773, %v2885
    %v2887 = vpop.f32.mrb[0].mxu0
    %v2888 = vadd.f32 %v2775, %v2887
    %v2889 = vpop.f32.mrb[0].mxu0
    %v2890 = vadd.f32 %v2777, %v2889
    %v2891 = vpop.f32.mrb[0].mxu0
    %v2892 = vadd.f32 %v2779, %v2891
    %2893 = vmatprep.mubr.bf16.mxu0 %v1071
    %2894 = vmatmul.mubr.bf16.gmra.mrb[0].mxu0 %v1070
    %v2895 = vpop.f32.mrb[0].mxu0
    %v2896 = vadd.f32 %v2783, %v2895
    %v2897 = vpop.f32.mrb[0].mxu0
    %v2898 = vadd.f32 %v2785, %v2897
    %v2899 = vpop.f32.mrb[0].mxu0
    %v2900 = vadd.f32 %v2787, %v2899
    %v2901 = vpop.f32.mrb[0].mxu0
    %v2902 = vadd.f32 %v2789, %v2901
    %2903 = vmatprep.mubr.bf16.mxu0 %v1077
    %2904 = vmatmul.mubr.bf16.gmra.mrb[0].mxu0 %v1076
    %v2905 = vpop.f32.mrb[0].mxu0
    %v2906 = vadd.f32 %v2793, %v2905
    %v2907 = vpop.f32.mrb[0].mxu0
    %v2908 = vadd.f32 %v2795, %v2907
    %v2909 = vpop.f32.mrb[0].mxu0
    %v2910 = vadd.f32 %v2797, %v2909
    %v2911 = vpop.f32.mrb[0].mxu0
    %v2912 = vadd.f32 %v2799, %v2911
    %2913 = vmatprep.mubr.bf16.mxu0 %v1083
    %2914 = vmatmul.mubr.bf16.gmra.mrb[0].mxu0 %v1082
    %v2915 = vpop.f32.mrb[0].mxu0
    %v2916 = vadd.f32 %v2803, %v2915
    %v2917 = vpop.f32.mrb[0].mxu0
    %v2918 = vadd.f32 %v2805, %v2917
    %v2919 = vpop.f32.mrb[0].mxu0
    %v2920 = vadd.f32 %v2807, %v2919
    %v2921 = vpop.f32.mrb[0].mxu0
    %v2922 = vadd.f32 %v2809, %v2921
    %2923 = vmatprep.mubr.bf16.mxu0 %v1089
    %2924 = vmatmul.mubr.bf16.gmra.mrb[0].mxu0 %v1088
    %v2925 = vpop.f32.mrb[0].mxu0
    %v2926 = vadd.f32 %v2813, %v2925
    %v2927 = vpop.f32.mrb[0].mxu0
    %v2928 = vadd.f32 %v2815, %v2927
    %v2929 = vpop.f32.mrb[0].mxu0
    %v2930 = vadd.f32 %v2817, %v2929
    %v2931 = vpop.f32.mrb[0].mxu0
    %v2932 = vadd.f32 %v2819, %v2931
    %2933 = vmatprep.mubr.bf16.mxu0 %v1095
    %2934 = vmatmul.mubr.bf16.gmra.mrb[0].mxu0 %v1094
    %v2935 = vpop.f32.mrb[0].mxu0
    %v2936 = vadd.f32 %v2823, %v2935
    %v2937 = vpop.f32.mrb[0].mxu0
    %v2938 = vadd.f32 %v2825, %v2937
    %v2939 = vpop.f32.mrb[0].mxu0
    %v2940 = vadd.f32 %v2827, %v2939
    %v2941 = vpop.f32.mrb[0].mxu0
    %v2942 = vadd.f32 %v2829, %v2941
    %2943 = vmatprep.mubr.bf16.mxu0 %v1101
    %2944 = vmatmul.mubr.bf16.gmra.mrb[0].mxu0 %v1100
    %v2945 = vpop.f32.mrb[0].mxu0
    %v2946 = vadd.f32 %v2833, %v2945
    %v2947 = vpop.f32.mrb[0].mxu0
    %v2948 = vadd.f32 %v2835, %v2947
    %v2949 = vpop.f32.mrb[0].mxu0
    %v2950 = vadd.f32 %v2837, %v2949
    %v2951 = vpop.f32.mrb[0].mxu0
    %v2952 = vadd.f32 %v2839, %v2951
    %2953 = vdwg.mxu0
    %vm2954 = vcmp.gt.f32.partialorder %v2537, 0.0
    %vm2955 = vcmp.gt.f32.partialorder %v2539, 0.0
    %vm2956 = vcmp.gt.f32.partialorder %v2876, 0.0
    %vm2957 = vcmp.gt.f32.partialorder %v2878, 0.0
    %vm2958 = vcmp.gt.f32.partialorder %v2541, 0.0
    %vm2959 = vcmp.gt.f32.partialorder %v2543, 0.0
    %vm2960 = vcmp.gt.f32.partialorder %v2880, 0.0
    %vm2961 = vcmp.gt.f32.partialorder %v2882, 0.0
    %vm2962 = vcmp.gt.f32.partialorder %v2547, 0.0
    %vm2963 = vcmp.gt.f32.partialorder %v2549, 0.0
    %vm2964 = vcmp.gt.f32.partialorder %v2886, 0.0
    %vm2965 = vcmp.gt.f32.partialorder %v2888, 0.0
    %vm2966 = vcmp.gt.f32.partialorder %v2551, 0.0
    %vm2967 = vcmp.gt.f32.partialorder %v2553, 0.0
    %vm2968 = vcmp.gt.f32.partialorder %v2890, 0.0
    %vm2969 = vcmp.gt.f32.partialorder %v2892, 0.0
    %vm2970 = vcmp.gt.f32.partialorder %v2557, 0.0
    %vm2971 = vcmp.gt.f32.partialorder %v2559, 0.0
    %vm2972 = vcmp.gt.f32.partialorder %v2896, 0.0
    %vm2973 = vcmp.gt.f32.partialorder %v2898, 0.0
    %vm2974 = vcmp.gt.f32.partialorder %v2561, 0.0
    %vm2975 = vcmp.gt.f32.partialorder %v2563, 0.0
    %vm2976 = vcmp.gt.f32.partialorder %v2900, 0.0
    %vm2977 = vcmp.gt.f32.partialorder %v2902, 0.0
    %vm2978 = vcmp.gt.f32.partialorder %v2567, 0.0
    %vm2979 = vcmp.gt.f32.partialorder %v2569, 0.0
    %vm2980 = vcmp.gt.f32.partialorder %v2906, 0.0
    %vm2981 = vcmp.gt.f32.partialorder %v2908, 0.0
    %vm2982 = vcmp.gt.f32.partialorder %v2571, 0.0
    %vm2983 = vcmp.gt.f32.partialorder %v2573, 0.0
    %vm2984 = vcmp.gt.f32.partialorder %v2910, 0.0
    %vm2985 = vcmp.gt.f32.partialorder %v2912, 0.0
    %vm2986 = vcmp.gt.f32.partialorder %v2577, 0.0
    %vm2987 = vcmp.gt.f32.partialorder %v2579, 0.0
    %vm2988 = vcmp.gt.f32.partialorder %v2916, 0.0
    %vm2989 = vcmp.gt.f32.partialorder %v2918, 0.0
    %vm2990 = vcmp.gt.f32.partialorder %v2581, 0.0
    %vm2991 = vcmp.gt.f32.partialorder %v2583, 0.0
    %vm2992 = vcmp.gt.f32.partialorder %v2920, 0.0
    %vm2993 = vcmp.gt.f32.partialorder %v2922, 0.0
    %vm2994 = vcmp.gt.f32.partialorder %v2587, 0.0
    %vm2995 = vcmp.gt.f32.partialorder %v2589, 0.0
    %vm2996 = vcmp.gt.f32.partialorder %v2926, 0.0
    %vm2997 = vcmp.gt.f32.partialorder %v2928, 0.0
    %vm2998 = vcmp.gt.f32.partialorder %v2591, 0.0
    %vm2999 = vcmp.gt.f32.partialorder %v2593, 0.0
    %vm3000 = vcmp.gt.f32.partialorder %v2930, 0.0
    %vm3001 = vcmp.gt.f32.partialorder %v2932, 0.0
    %vm3002 = vcmp.gt.f32.partialorder %v2597, 0.0
    %vm3003 = vcmp.gt.f32.partialorder %v2599, 0.0
    %vm3004 = vcmp.gt.f32.partialorder %v2936, 0.0
    %vm3005 = vcmp.gt.f32.partialorder %v2938, 0.0
    %vm3006 = vcmp.gt.f32.partialorder %v2601, 0.0
    %vm3007 = vcmp.gt.f32.partialorder %v2603, 0.0
    %vm3008 = vcmp.gt.f32.partialorder %v2940, 0.0
    %vm3009 = vcmp.gt.f32.partialorder %v2942, 0.0
    %vm3010 = vcmp.gt.f32.partialorder %v2607, 0.0
    %vm3011 = vcmp.gt.f32.partialorder %v2609, 0.0
    %vm3012 = vcmp.gt.f32.partialorder %v2946, 0.0
    %vm3013 = vcmp.gt.f32.partialorder %v2948, 0.0
    %vm3014 = vcmp.gt.f32.partialorder %v2611, 0.0
    %vm3015 = vcmp.gt.f32.partialorder %v2613, 0.0
    %vm3016 = vcmp.gt.f32.partialorder %v2950, 0.0
    %vm3017 = vcmp.gt.f32.partialorder %v2952, 0.0
    %v3018 = vmul.f32 %v2537, 0.01
    %v3019 = vmul.f32 %v2539, 0.01
    %v3020 = vmul.f32 %v2876, 0.01
    %v3021 = vmul.f32 %v2878, 0.01
    %v3022 = vmul.f32 %v2541, 0.01
    %v3023 = vmul.f32 %v2543, 0.01
    %v3024 = vmul.f32 %v2880, 0.01
    %v3025 = vmul.f32 %v2882, 0.01
    %v3026 = vmul.f32 %v2547, 0.01
    %v3027 = vmul.f32 %v2549, 0.01
    %v3028 = vmul.f32 %v2886, 0.01
    %v3029 = vmul.f32 %v2888, 0.01
    %v3030 = vmul.f32 %v2551, 0.01
    %v3031 = vmul.f32 %v2553, 0.01
    %v3032 = vmul.f32 %v2890, 0.01
    %v3033 = vmul.f32 %v2892, 0.01
    %v3034 = vmul.f32 %v2557, 0.01
    %v3035 = vmul.f32 %v2559, 0.01
    %v3036 = vmul.f32 %v2896, 0.01
    %v3037 = vmul.f32 %v2898, 0.01
    %v3038 = vmul.f32 %v2561, 0.01
    %v3039 = vmul.f32 %v2563, 0.01
    %v3040 = vmul.f32 %v2900, 0.01
    %v3041 = vmul.f32 %v2902, 0.01
    %v3042 = vmul.f32 %v2567, 0.01
    %v3043 = vmul.f32 %v2569, 0.01
    %v3044 = vmul.f32 %v2906, 0.01
    %v3045 = vmul.f32 %v2908, 0.01
    %v3046 = vmul.f32 %v2571, 0.01
    %v3047 = vmul.f32 %v2573, 0.01
    %v3048 = vmul.f32 %v2910, 0.01
    %v3049 = vmul.f32 %v2912, 0.01
    %v3050 = vmul.f32 %v2577, 0.01
    %v3051 = vmul.f32 %v2579, 0.01
    %v3052 = vmul.f32 %v2916, 0.01
    %v3053 = vmul.f32 %v2918, 0.01
    %v3054 = vmul.f32 %v2581, 0.01
    %v3055 = vmul.f32 %v2583, 0.01
    %v3056 = vmul.f32 %v2920, 0.01
    %v3057 = vmul.f32 %v2922, 0.01
    %v3058 = vmul.f32 %v2587, 0.01
    %v3059 = vmul.f32 %v2589, 0.01
    %v3060 = vmul.f32 %v2926, 0.01
    %v3061 = vmul.f32 %v2928, 0.01
    %v3062 = vmul.f32 %v2591, 0.01
    %v3063 = vmul.f32 %v2593, 0.01
    %v3064 = vmul.f32 %v2930, 0.01
    %v3065 = vmul.f32 %v2932, 0.01
    %v3066 = vmul.f32 %v2597, 0.01
    %v3067 = vmul.f32 %v2599, 0.01
    %v3068 = vmul.f32 %v2936, 0.01
    %v3069 = vmul.f32 %v2938, 0.01
    %v3070 = vmul.f32 %v2601, 0.01
    %v3071 = vmul.f32 %v2603, 0.01
    %v3072 = vmul.f32 %v2940, 0.01
    %v3073 = vmul.f32 %v2942, 0.01
    %v3074 = vmul.f32 %v2607, 0.01
    %v3075 = vmul.f32 %v2609, 0.01
    %v3076 = vmul.f32 %v2946, 0.01
    %v3077 = vmul.f32 %v2948, 0.01
    %v3078 = vmul.f32 %v2611, 0.01
    %v3079 = vmul.f32 %v2613, 0.01
    %v3080 = vmul.f32 %v2950, 0.01
    %v3081 = vmul.f32 %v2952, 0.01
    %v3082 = vsel %vm2954, %v2537, %v3018
    %v3083 = vsel %vm2955, %v2539, %v3019
    %v3084 = vsel %vm2956, %v2876, %v3020
    %v3085 = vsel %vm2957, %v2878, %v3021
    %v3086 = vsel %vm2958, %v2541, %v3022
    %v3087 = vsel %vm2959, %v2543, %v3023
    %v3088 = vsel %vm2960, %v2880, %v3024
    %v3089 = vsel %vm2961, %v2882, %v3025
    %v3090 = vsel %vm2962, %v2547, %v3026
    %v3091 = vsel %vm2963, %v2549, %v3027
    %v3092 = vsel %vm2964, %v2886, %v3028
    %v3093 = vsel %vm2965, %v2888, %v3029
    %v3094 = vsel %vm2966, %v2551, %v3030
    %v3095 = vsel %vm2967, %v2553, %v3031
    %v3096 = vsel %vm2968, %v2890, %v3032
    %v3097 = vsel %vm2969, %v2892, %v3033
    %v3098 = vsel %vm2970, %v2557, %v3034
    %v3099 = vsel %vm2971, %v2559, %v3035
    %v3100 = vsel %vm2972, %v2896, %v3036
    %v3101 = vsel %vm2973, %v2898, %v3037
    %v3102 = vsel %vm2974, %v2561, %v3038
    %v3103 = vsel %vm2975, %v2563, %v3039
    %v3104 = vsel %vm2976, %v2900, %v3040
    %v3105 = vsel %vm2977, %v2902, %v3041
    %v3106 = vsel %vm2978, %v2567, %v3042
    %v3107 = vsel %vm2979, %v2569, %v3043
    %v3108 = vsel %vm2980, %v2906, %v3044
    %v3109 = vsel %vm2981, %v2908, %v3045
    %v3110 = vsel %vm2982, %v2571, %v3046
    %v3111 = vsel %vm2983, %v2573, %v3047
    %v3112 = vsel %vm2984, %v2910, %v3048
    %v3113 = vsel %vm2985, %v2912, %v3049
    %v3114 = vsel %vm2986, %v2577, %v3050
    %v3115 = vsel %vm2987, %v2579, %v3051
    %v3116 = vsel %vm2988, %v2916, %v3052
    %v3117 = vsel %vm2989, %v2918, %v3053
    %v3118 = vsel %vm2990, %v2581, %v3054
    %v3119 = vsel %vm2991, %v2583, %v3055
    %v3120 = vsel %vm2992, %v2920, %v3056
    %v3121 = vsel %vm2993, %v2922, %v3057
    %v3122 = vsel %vm2994, %v2587, %v3058
    %v3123 = vsel %vm2995, %v2589, %v3059
    %v3124 = vsel %vm2996, %v2926, %v3060
    %v3125 = vsel %vm2997, %v2928, %v3061
    %v3126 = vsel %vm2998, %v2591, %v3062
    %v3127 = vsel %vm2999, %v2593, %v3063
    %v3128 = vsel %vm3000, %v2930, %v3064
    %v3129 = vsel %vm3001, %v2932, %v3065
    %v3130 = vsel %vm3002, %v2597, %v3066
    %v3131 = vsel %vm3003, %v2599, %v3067
    %v3132 = vsel %vm3004, %v2936, %v3068
    %v3133 = vsel %vm3005, %v2938, %v3069
    %v3134 = vsel %vm3006, %v2601, %v3070
    %v3135 = vsel %vm3007, %v2603, %v3071
    %v3136 = vsel %vm3008, %v2940, %v3072
    %v3137 = vsel %vm3009, %v2942, %v3073
    %v3138 = vsel %vm3010, %v2607, %v3074
    %v3139 = vsel %vm3011, %v2609, %v3075
    %v3140 = vsel %vm3012, %v2946, %v3076
    %v3141 = vsel %vm3013, %v2948, %v3077
    %v3142 = vsel %vm3014, %v2611, %v3078
    %v3143 = vsel %vm3015, %v2613, %v3079
    %v3144 = vsel %vm3016, %v2950, %v3080
    %v3145 = vsel %vm3017, %v2952, %v3081
    %v3146 = vpack.c.bf16 %v3086, %v3082
    %v3147 = vpack.c.bf16 %v3087, %v3083
    %v3148 = vpack.c.bf16 %v3088, %v3084
    %v3149 = vpack.c.bf16 %v3089, %v3085
    %v3150 = vpack.c.bf16 %v3094, %v3090
    %v3151 = vpack.c.bf16 %v3095, %v3091
    %v3152 = vpack.c.bf16 %v3096, %v3092
    %v3153 = vpack.c.bf16 %v3097, %v3093
    %v3154 = vpack.c.bf16 %v3102, %v3098
    %v3155 = vpack.c.bf16 %v3103, %v3099
    %v3156 = vpack.c.bf16 %v3104, %v3100
    %v3157 = vpack.c.bf16 %v3105, %v3101
    %v3158 = vpack.c.bf16 %v3110, %v3106
    %v3159 = vpack.c.bf16 %v3111, %v3107
    %v3160 = vpack.c.bf16 %v3112, %v3108
    %v3161 = vpack.c.bf16 %v3113, %v3109
    %v3162 = vpack.c.bf16 %v3118, %v3114
    %v3163 = vpack.c.bf16 %v3119, %v3115
    %v3164 = vpack.c.bf16 %v3120, %v3116
    %v3165 = vpack.c.bf16 %v3121, %v3117
    %v3166 = vpack.c.bf16 %v3126, %v3122
    %v3167 = vpack.c.bf16 %v3127, %v3123
    %v3168 = vpack.c.bf16 %v3128, %v3124
    %v3169 = vpack.c.bf16 %v3129, %v3125
    %v3170 = vpack.c.bf16 %v3134, %v3130
    %v3171 = vpack.c.bf16 %v3135, %v3131
    %v3172 = vpack.c.bf16 %v3136, %v3132
    %v3173 = vpack.c.bf16 %v3137, %v3133
    %v3174 = vpack.c.bf16 %v3142, %v3138
    %v3175 = vpack.c.bf16 %v3143, %v3139
    %v3176 = vpack.c.bf16 %v3144, %v3140
    %v3177 = vpack.c.bf16 %v3145, %v3141
    %v3178 = vld [vmem:[#allocation8] sm:$0xf]
    %v3179 = vld [vmem:[#allocation8 + $0x4] sm:$0xf]
    %v3180 = vld [vmem:[#allocation8 + $0x8] sm:$0xf]
    %v3181 = vld [vmem:[#allocation8 + $0xc] sm:$0xf]
    %v3182 = vld [vmem:[#allocation8 + $0x10] sm:$0xf]
    %v3183 = vld [vmem:[#allocation8 + $0x14] sm:$0xf]
    %v3184 = vld [vmem:[#allocation8 + $0x18] sm:$0xf]
    %v3185 = vld [vmem:[#allocation8 + $0x1c] sm:$0xf]
    %v3186 = vld [vmem:[#allocation8 + $0x20] sm:$0xf]
    %v3187 = vld [vmem:[#allocation8 + $0x24] sm:$0xf]
    %v3188 = vld [vmem:[#allocation8 + $0x28] sm:$0xf]
    %v3189 = vld [vmem:[#allocation8 + $0x2c] sm:$0xf]
    %v3190 = vld [vmem:[#allocation8 + $0x30] sm:$0xf]
    %v3191 = vld [vmem:[#allocation8 + $0x34] sm:$0xf]
    %v3192 = vld [vmem:[#allocation8 + $0x38] sm:$0xf]
    %v3193 = vld [vmem:[#allocation8 + $0x3c] sm:$0xf]
    %v3194 = vld [vmem:[#allocation8 + $0x40] sm:$0xf]
    %v3195 = vld [vmem:[#allocation8 + $0x44] sm:$0xf]
    %v3196 = vld [vmem:[#allocation8 + $0x48] sm:$0xf]
    %v3197 = vld [vmem:[#allocation8 + $0x4c] sm:$0xf]
    %v3198 = vld [vmem:[#allocation8 + $0x50] sm:$0xf]
    %v3199 = vld [vmem:[#allocation8 + $0x54] sm:$0xf]
    %v3200 = vld [vmem:[#allocation8 + $0x58] sm:$0xf]
    %v3201 = vld [vmem:[#allocation8 + $0x5c] sm:$0xf]
    %v3202 = vld [vmem:[#allocation8 + $0x60] sm:$0xf]
    %v3203 = vld [vmem:[#allocation8 + $0x64] sm:$0xf]
    %v3204 = vld [vmem:[#allocation8 + $0x68] sm:$0xf]
    %v3205 = vld [vmem:[#allocation8 + $0x6c] sm:$0xf]
    %v3206 = vld [vmem:[#allocation8 + $0x70] sm:$0xf]
    %v3207 = vld [vmem:[#allocation8 + $0x74] sm:$0xf]
    %v3208 = vld [vmem:[#allocation8 + $0x78] sm:$0xf]
    %v3209 = vld [vmem:[#allocation8 + $0x7c] sm:$0xf]
    %v3210 = vld [vmem:[#allocation8 + $0x80] sm:$0xf]
    %v3211 = vld [vmem:[#allocation8 + $0x84] sm:$0xf]
    %v3212 = vld [vmem:[#allocation8 + $0x88] sm:$0xf]
    %v3213 = vld [vmem:[#allocation8 + $0x8c] sm:$0xf]
    %v3214 = vld [vmem:[#allocation8 + $0x90] sm:$0xf]
    %v3215 = vld [vmem:[#allocation8 + $0x94] sm:$0xf]
    %v3216 = vld [vmem:[#allocation8 + $0x98] sm:$0xf]
    %v3217 = vld [vmem:[#allocation8 + $0x9c] sm:$0xf]
    %v3218 = vld [vmem:[#allocation8 + $0xa0] sm:$0xf]
    %v3219 = vld [vmem:[#allocation8 + $0xa4] sm:$0xf]
    %v3220 = vld [vmem:[#allocation8 + $0xa8] sm:$0xf]
    %v3221 = vld [vmem:[#allocation8 + $0xac] sm:$0xf]
    %v3222 = vld [vmem:[#allocation8 + $0xb0] sm:$0xf]
    %v3223 = vld [vmem:[#allocation8 + $0xb4] sm:$0xf]
    %v3224 = vld [vmem:[#allocation8 + $0xb8] sm:$0xf]
    %v3225 = vld [vmem:[#allocation8 + $0xbc] sm:$0xf]
    %v3226 = vld [vmem:[#allocation8 + $0xc0] sm:$0xf]
    %v3227 = vld [vmem:[#allocation8 + $0xc4] sm:$0xf]
    %v3228 = vld [vmem:[#allocation8 + $0xc8] sm:$0xf]
    %v3229 = vld [vmem:[#allocation8 + $0xcc] sm:$0xf]
    %v3230 = vld [vmem:[#allocation8 + $0xd0] sm:$0xf]
    %v3231 = vld [vmem:[#allocation8 + $0xd4] sm:$0xf]
    %v3232 = vld [vmem:[#allocation8 + $0xd8] sm:$0xf]
    %v3233 = vld [vmem:[#allocation8 + $0xdc] sm:$0xf]
    %v3234 = vld [vmem:[#allocation8 + $0xe0] sm:$0xf]
    %v3235 = vld [vmem:[#allocation8 + $0xe4] sm:$0xf]
    %v3236 = vld [vmem:[#allocation8 + $0xe8] sm:$0xf]
    %v3237 = vld [vmem:[#allocation8 + $0xec] sm:$0xf]
    %v3238 = vld [vmem:[#allocation8 + $0xf0] sm:$0xf]
    %v3239 = vld [vmem:[#allocation8 + $0xf4] sm:$0xf]
    %v3240 = vld [vmem:[#allocation8 + $0xf8] sm:$0xf]
    %v3241 = vld [vmem:[#allocation8 + $0xfc] sm:$0xf]
    %v3242 = vld [vmem:[%s6] sm:$0x1]
    %v3244 = vlaneseq
    %v3245 = vshrl.u32 %v3244, 7
    %v3246 = vsub.s32 0, %v3245
    %v3247 = vrot.slane %v3242, %v3246
    %v3313 = vunpack.c.l.b16 %v3178
    %v3314 = vunpack.c.l.b16 %v3179
    %v3315 = vunpack.c.l.b16 %v3180
    %v3316 = vunpack.c.l.b16 %v3181
    %v3317 = vunpack.c.l.b16 %v3182
    %v3318 = vunpack.c.l.b16 %v3183
    %v3319 = vunpack.c.l.b16 %v3184
    %v3320 = vunpack.c.l.b16 %v3185
    %v3321 = vunpack.c.l.b16 %v3186
    %v3322 = vunpack.c.l.b16 %v3187
    %v3323 = vunpack.c.l.b16 %v3188
    %v3324 = vunpack.c.l.b16 %v3189
    %v3325 = vunpack.c.l.b16 %v3190
    %v3326 = vunpack.c.l.b16 %v3191
    %v3327 = vunpack.c.l.b16 %v3192
    %v3328 = vunpack.c.l.b16 %v3193
    %v3329 = vunpack.c.l.b16 %v3194
    %v3330 = vunpack.c.l.b16 %v3195
    %v3331 = vunpack.c.l.b16 %v3196
    %v3332 = vunpack.c.l.b16 %v3197
    %v3333 = vunpack.c.l.b16 %v3198
    %v3334 = vunpack.c.l.b16 %v3199
    %v3335 = vunpack.c.l.b16 %v3200
    %v3336 = vunpack.c.l.b16 %v3201
    %v3337 = vunpack.c.l.b16 %v3202
    %v3338 = vunpack.c.l.b16 %v3203
    %v3339 = vunpack.c.l.b16 %v3204
    %v3340 = vunpack.c.l.b16 %v3205
    %v3341 = vunpack.c.l.b16 %v3206
    %v3342 = vunpack.c.l.b16 %v3207
    %v3343 = vunpack.c.l.b16 %v3208
    %v3344 = vunpack.c.l.b16 %v3209
    %v3345 = vunpack.c.l.b16 %v3210
    %v3346 = vunpack.c.l.b16 %v3211
    %v3347 = vunpack.c.l.b16 %v3212
    %v3348 = vunpack.c.l.b16 %v3213
    %v3349 = vunpack.c.l.b16 %v3214
    %v3350 = vunpack.c.l.b16 %v3215
    %v3351 = vunpack.c.l.b16 %v3216
    %v3352 = vunpack.c.l.b16 %v3217
    %v3353 = vunpack.c.l.b16 %v3218
    %v3354 = vunpack.c.l.b16 %v3219
    %v3355 = vunpack.c.l.b16 %v3220
    %v3356 = vunpack.c.l.b16 %v3221
    %v3357 = vunpack.c.l.b16 %v3222
    %v3358 = vunpack.c.l.b16 %v3223
    %v3359 = vunpack.c.l.b16 %v3224
    %v3360 = vunpack.c.l.b16 %v3225
    %v3361 = vunpack.c.l.b16 %v3226
    %v3362 = vunpack.c.l.b16 %v3227
    %v3363 = vunpack.c.l.b16 %v3228
    %v3364 = vunpack.c.l.b16 %v3229
    %v3365 = vunpack.c.l.b16 %v3230
    %v3366 = vunpack.c.l.b16 %v3231
    %v3367 = vunpack.c.l.b16 %v3232
    %v3368 = vunpack.c.l.b16 %v3233
    %v3369 = vunpack.c.l.b16 %v3234
    %v3370 = vunpack.c.l.b16 %v3235
    %v3371 = vunpack.c.l.b16 %v3236
    %v3372 = vunpack.c.l.b16 %v3237
    %v3373 = vunpack.c.l.b16 %v3238
    %v3374 = vunpack.c.l.b16 %v3239
    %v3375 = vunpack.c.l.b16 %v3240
    %v3376 = vunpack.c.l.b16 %v3241
    %v3377 = vpack.c.b16 %v3314, %v3313
    %v3378 = vpack.c.b16 %v3316, %v3315
    %v3379 = vpack.c.b16 %v3318, %v3317
    %v3380 = vpack.c.b16 %v3320, %v3319
    %v3381 = vpack.c.b16 %v3322, %v3321
    %v3382 = vpack.c.b16 %v3324, %v3323
    %v3383 = vpack.c.b16 %v3326, %v3325
    %v3384 = vpack.c.b16 %v3328, %v3327
    %v3385 = vpack.c.b16 %v3330, %v3329
    %v3386 = vpack.c.b16 %v3332, %v3331
    %v3387 = vpack.c.b16 %v3334, %v3333
    %v3388 = vpack.c.b16 %v3336, %v3335
    %v3389 = vpack.c.b16 %v3338, %v3337
    %v3390 = vpack.c.b16 %v3340, %v3339
    %v3391 = vpack.c.b16 %v3342, %v3341
    %v3392 = vpack.c.b16 %v3344, %v3343
    %v3393 = vpack.c.b16 %v3346, %v3345
    %v3394 = vpack.c.b16 %v3348, %v3347
    %v3395 = vpack.c.b16 %v3350, %v3349
    %v3396 = vpack.c.b16 %v3352, %v3351
    %v3397 = vpack.c.b16 %v3354, %v3353
    %v3398 = vpack.c.b16 %v3356, %v3355
    %v3399 = vpack.c.b16 %v3358, %v3357
    %v3400 = vpack.c.b16 %v3360, %v3359
    %v3401 = vpack.c.b16 %v3362, %v3361
    %v3402 = vpack.c.b16 %v3364, %v3363
    %v3403 = vpack.c.b16 %v3366, %v3365
    %v3404 = vpack.c.b16 %v3368, %v3367
    %v3405 = vpack.c.b16 %v3370, %v3369
    %v3406 = vpack.c.b16 %v3372, %v3371
    %v3407 = vpack.c.b16 %v3374, %v3373
    %v3408 = vpack.c.b16 %v3376, %v3375
    %3441 = vmatprep.subr.bf16.mxu0 0
    %3442 = vmatpush1.bf16.msra.mxu0 %v3377
    %3443 = vmatprep.subr.bf16.mxu0 0
    %3444 = vmatpush1.bf16.msra.mxu0 %v3378
    %3445 = vmatprep.subr.bf16.mxu0 0
    %3446 = vmatpush1.bf16.msra.mxu0 %v3379
    %3447 = vmatprep.subr.bf16.mxu0 0
    %3448 = vmatpush1.bf16.msra.mxu0 %v3380
    %3449 = vmatprep.subr.bf16.mxu0 0
    %3450 = vmatpush1.bf16.msra.mxu0 %v3381
    %3451 = vmatprep.subr.bf16.mxu0 0
    %3452 = vmatpush1.bf16.msra.mxu0 %v3382
    %3453 = vmatprep.subr.bf16.mxu0 0
    %3454 = vmatpush1.bf16.msra.mxu0 %v3383
    %3455 = vmatprep.subr.bf16.mxu0 0
    %3456 = vmatpush1.bf16.msra.mxu0 %v3384
    %3457 = vmatprep.subr.bf16.mxu0 0
    %3458 = vmatpush1.bf16.msra.mxu0 %v3385
    %3459 = vmatprep.subr.bf16.mxu0 0
    %3460 = vmatpush1.bf16.msra.mxu0 %v3386
    %3461 = vmatprep.subr.bf16.mxu0 0
    %3462 = vmatpush1.bf16.msra.mxu0 %v3387
    %3463 = vmatprep.subr.bf16.mxu0 0
    %3464 = vmatpush1.bf16.msra.mxu0 %v3388
    %3465 = vmatprep.subr.bf16.mxu0 0
    %3466 = vmatpush1.bf16.msra.mxu0 %v3389
    %3467 = vmatprep.subr.bf16.mxu0 0
    %3468 = vmatpush1.bf16.msra.mxu0 %v3390
    %3469 = vmatprep.subr.bf16.mxu0 0
    %3470 = vmatpush1.bf16.msra.mxu0 %v3391
    %3471 = vmatprep.subr.bf16.mxu0 0
    %3472 = vmatpush1.bf16.msra.mxu0 %v3392
    %3473 = vmatprep.mubr.bf16.mxu0 %v3147
    %3474 = vmatmul.mubr.bf16.gmra.mrb[0].mxu0 %v3146
    %v3475 = vpop.f32.mrb[0].mxu0
    %v3476 = vadd.f32 %v3247, %v3475
    %v3477 = vpop.f32.mrb[0].mxu0
    %v3478 = vpop.f32.mrb[0].mxu0
    %v3479 = vadd.f32 %v3247, %v3478
    %v3480 = vpop.f32.mrb[0].mxu0
    %3481 = vmatprep.mubr.bf16.mxu0 %v3151
    %3482 = vmatmul.mubr.bf16.gmra.mrb[0].mxu0 %v3150
    %v3483 = vpop.f32.mrb[0].mxu0
    %v3484 = vadd.f32 %v3247, %v3483
    %v3485 = vpop.f32.mrb[0].mxu0
    %v3486 = vpop.f32.mrb[0].mxu0
    %v3487 = vadd.f32 %v3247, %v3486
    %v3488 = vpop.f32.mrb[0].mxu0
    %3489 = vmatprep.mubr.bf16.mxu0 %v3155
    %3490 = vmatmul.mubr.bf16.gmra.mrb[0].mxu0 %v3154
    %v3491 = vpop.f32.mrb[0].mxu0
    %v3492 = vadd.f32 %v3247, %v3491
    %v3493 = vpop.f32.mrb[0].mxu0
    %v3494 = vpop.f32.mrb[0].mxu0
    %v3495 = vadd.f32 %v3247, %v3494
    %v3496 = vpop.f32.mrb[0].mxu0
    %3497 = vmatprep.mubr.bf16.mxu0 %v3159
    %3498 = vmatmul.mubr.bf16.gmra.mrb[0].mxu0 %v3158
    %v3499 = vpop.f32.mrb[0].mxu0
    %v3500 = vadd.f32 %v3247, %v3499
    %v3501 = vpop.f32.mrb[0].mxu0
    %v3502 = vpop.f32.mrb[0].mxu0
    %v3503 = vadd.f32 %v3247, %v3502
    %v3504 = vpop.f32.mrb[0].mxu0
    %3505 = vmatprep.mubr.bf16.mxu0 %v3163
    %3506 = vmatmul.mubr.bf16.gmra.mrb[0].mxu0 %v3162
    %v3507 = vpop.f32.mrb[0].mxu0
    %v3508 = vadd.f32 %v3247, %v3507
    %v3509 = vpop.f32.mrb[0].mxu0
    %v3510 = vpop.f32.mrb[0].mxu0
    %v3511 = vadd.f32 %v3247, %v3510
    %v3512 = vpop.f32.mrb[0].mxu0
    %3513 = vmatprep.mubr.bf16.mxu0 %v3167
    %3514 = vmatmul.mubr.bf16.gmra.mrb[0].mxu0 %v3166
    %v3515 = vpop.f32.mrb[0].mxu0
    %v3516 = vadd.f32 %v3247, %v3515
    %v3517 = vpop.f32.mrb[0].mxu0
    %v3518 = vpop.f32.mrb[0].mxu0
    %v3519 = vadd.f32 %v3247, %v3518
    %v3520 = vpop.f32.mrb[0].mxu0
    %3521 = vmatprep.mubr.bf16.mxu0 %v3171
    %3522 = vmatmul.mubr.bf16.gmra.mrb[0].mxu0 %v3170
    %v3523 = vpop.f32.mrb[0].mxu0
    %v3524 = vadd.f32 %v3247, %v3523
    %v3525 = vpop.f32.mrb[0].mxu0
    %v3526 = vpop.f32.mrb[0].mxu0
    %v3527 = vadd.f32 %v3247, %v3526
    %v3528 = vpop.f32.mrb[0].mxu0
    %3529 = vmatprep.mubr.bf16.mxu0 %v3175
    %3530 = vmatmul.mubr.bf16.gmra.mrb[0].mxu0 %v3174
    %v3531 = vpop.f32.mrb[0].mxu0
    %v3532 = vadd.f32 %v3247, %v3531
    %v3533 = vpop.f32.mrb[0].mxu0
    %v3534 = vpop.f32.mrb[0].mxu0
    %v3535 = vadd.f32 %v3247, %v3534
    %v3536 = vpop.f32.mrb[0].mxu0
    %3537 = vdwg.mxu0
    %3538 = vmatprep.subr.bf16.mxu0 0
    %3539 = vmatpush1.bf16.msra.mxu0 %v3393
    %3540 = vmatprep.subr.bf16.mxu0 0
    %3541 = vmatpush1.bf16.msra.mxu0 %v3394
    %3542 = vmatprep.subr.bf16.mxu0 0
    %3543 = vmatpush1.bf16.msra.mxu0 %v3395
    %3544 = vmatprep.subr.bf16.mxu0 0
    %3545 = vmatpush1.bf16.msra.mxu0 %v3396
    %3546 = vmatprep.subr.bf16.mxu0 0
    %3547 = vmatpush1.bf16.msra.mxu0 %v3397
    %3548 = vmatprep.subr.bf16.mxu0 0
    %3549 = vmatpush1.bf16.msra.mxu0 %v3398
    %3550 = vmatprep.subr.bf16.mxu0 0
    %3551 = vmatpush1.bf16.msra.mxu0 %v3399
    %3552 = vmatprep.subr.bf16.mxu0 0
    %3553 = vmatpush1.bf16.msra.mxu0 %v3400
    %3554 = vmatprep.subr.bf16.mxu0 0
    %3555 = vmatpush1.bf16.msra.mxu0 %v3401
    %3556 = vmatprep.subr.bf16.mxu0 0
    %3557 = vmatpush1.bf16.msra.mxu0 %v3402
    %3558 = vmatprep.subr.bf16.mxu0 0
    %3559 = vmatpush1.bf16.msra.mxu0 %v3403
    %3560 = vmatprep.subr.bf16.mxu0 0
    %3561 = vmatpush1.bf16.msra.mxu0 %v3404
    %3562 = vmatprep.subr.bf16.mxu0 0
    %3563 = vmatpush1.bf16.msra.mxu0 %v3405
    %3564 = vmatprep.subr.bf16.mxu0 0
    %3565 = vmatpush1.bf16.msra.mxu0 %v3406
    %3566 = vmatprep.subr.bf16.mxu0 0
    %3567 = vmatpush1.bf16.msra.mxu0 %v3407
    %3568 = vmatprep.subr.bf16.mxu0 0
    %3569 = vmatpush1.bf16.msra.mxu0 %v3408
    %3570 = vmatprep.mubr.bf16.mxu0 %v3149
    %3571 = vmatmul.mubr.bf16.gmra.mrb[0].mxu0 %v3148
    %v3572 = vpop.f32.mrb[0].mxu0
    %v3573 = vadd.f32 %v3476, %v3572
    %v3574 = vpop.f32.mrb[0].mxu0
    %v3575 = vpop.f32.mrb[0].mxu0
    %v3576 = vadd.f32 %v3479, %v3575
    %v3577 = vpop.f32.mrb[0].mxu0
    %3578 = vmatprep.mubr.bf16.mxu0 %v3153
    %3579 = vmatmul.mubr.bf16.gmra.mrb[0].mxu0 %v3152
    %v3580 = vpop.f32.mrb[0].mxu0
    %v3581 = vadd.f32 %v3484, %v3580
    %v3582 = vpop.f32.mrb[0].mxu0
    %v3583 = vpop.f32.mrb[0].mxu0
    %v3584 = vadd.f32 %v3487, %v3583
    %v3585 = vpop.f32.mrb[0].mxu0
    %3586 = vmatprep.mubr.bf16.mxu0 %v3157
    %3587 = vmatmul.mubr.bf16.gmra.mrb[0].mxu0 %v3156
    %v3588 = vpop.f32.mrb[0].mxu0
    %v3589 = vadd.f32 %v3492, %v3588
    %v3590 = vpop.f32.mrb[0].mxu0
    %v3591 = vpop.f32.mrb[0].mxu0
    %v3592 = vadd.f32 %v3495, %v3591
    %v3593 = vpop.f32.mrb[0].mxu0
    %3594 = vmatprep.mubr.bf16.mxu0 %v3161
    %3595 = vmatmul.mubr.bf16.gmra.mrb[0].mxu0 %v3160
    %v3596 = vpop.f32.mrb[0].mxu0
    %v3597 = vadd.f32 %v3500, %v3596
    %v3598 = vpop.f32.mrb[0].mxu0
    %v3599 = vpop.f32.mrb[0].mxu0
    %v3600 = vadd.f32 %v3503, %v3599
    %v3601 = vpop.f32.mrb[0].mxu0
    %3602 = vmatprep.mubr.bf16.mxu0 %v3165
    %3603 = vmatmul.mubr.bf16.gmra.mrb[0].mxu0 %v3164
    %v3604 = vpop.f32.mrb[0].mxu0
    %v3605 = vadd.f32 %v3508, %v3604
    %v3606 = vpop.f32.mrb[0].mxu0
    %v3607 = vpop.f32.mrb[0].mxu0
    %v3608 = vadd.f32 %v3511, %v3607
    %v3609 = vpop.f32.mrb[0].mxu0
    %3610 = vmatprep.mubr.bf16.mxu0 %v3169
    %3611 = vmatmul.mubr.bf16.gmra.mrb[0].mxu0 %v3168
    %v3612 = vpop.f32.mrb[0].mxu0
    %v3613 = vadd.f32 %v3516, %v3612
    %v3614 = vpop.f32.mrb[0].mxu0
    %v3615 = vpop.f32.mrb[0].mxu0
    %v3616 = vadd.f32 %v3519, %v3615
    %v3617 = vpop.f32.mrb[0].mxu0
    %3618 = vmatprep.mubr.bf16.mxu0 %v3173
    %3619 = vmatmul.mubr.bf16.gmra.mrb[0].mxu0 %v3172
    %v3620 = vpop.f32.mrb[0].mxu0
    %v3621 = vadd.f32 %v3524, %v3620
    %v3622 = vpop.f32.mrb[0].mxu0
    %v3623 = vpop.f32.mrb[0].mxu0
    %v3624 = vadd.f32 %v3527, %v3623
    %v3625 = vpop.f32.mrb[0].mxu0
    %3626 = vmatprep.mubr.bf16.mxu0 %v3177
    %3627 = vmatmul.mubr.bf16.gmra.mrb[0].mxu0 %v3176
    %v3628 = vpop.f32.mrb[0].mxu0
    %v3629 = vadd.f32 %v3532, %v3628
    %v3630 = vpop.f32.mrb[0].mxu0
    %v3631 = vpop.f32.mrb[0].mxu0
    %v3632 = vadd.f32 %v3535, %v3631
    %v3633 = vpop.f32.mrb[0].mxu0
    %3634 = vdwg.mxu0
    %3635 = vst [vmem:[#allocation10] sm:$0xff] %v3573
    %3636 = vst [vmem:[#allocation10 + $0x8] sm:$0xff] %v3576
    %3637 = vst [vmem:[#allocation10 + $0x10] sm:$0xff] %v3581
    %3638 = vst [vmem:[#allocation10 + $0x18] sm:$0xff] %v3584
    %3639 = vst [vmem:[#allocation10 + $0x20] sm:$0xff] %v3589
    %3640 = vst [vmem:[#allocation10 + $0x28] sm:$0xff] %v3592
    %3641 = vst [vmem:[#allocation10 + $0x30] sm:$0xff] %v3597
    %3642 = vst [vmem:[#allocation10 + $0x38] sm:$0xff] %v3600
    %3643 = vst [vmem:[#allocation10 + $0x40] sm:$0xff] %v3605
    %3644 = vst [vmem:[#allocation10 + $0x48] sm:$0xff] %v3608
    %3645 = vst [vmem:[#allocation10 + $0x50] sm:$0xff] %v3613
    %3646 = vst [vmem:[#allocation10 + $0x58] sm:$0xff] %v3616
    %3647 = vst [vmem:[#allocation10 + $0x60] sm:$0xff] %v3621
    %3648 = vst [vmem:[#allocation10 + $0x68] sm:$0xff] %v3624
    %3649 = vst [vmem:[#allocation10 + $0x70] sm:$0xff] %v3629
    %3650 = vst [vmem:[#allocation10 + $0x78] sm:$0xff] %v3632
    // Predicated region
    $region46: #{tpu_custom_call.1} parent=1 // pred_check
      _
    $region47: #{tpu_custom_call.1} parent=1 // pred_check_branch
      %3652 = sbr.rel (0) target = $region49
    $region48: #{tpu_custom_call.1} parent=1 // pred_region
      %s3654 = ssub.s32 2048, 2048
      %3655 = vsyncadd [#allocation4], %s3654
      %s3656 = sshll.u32 [#allocation10], 4
      %s3657 = int_to_ptr.vmem [resolvable:$true] %s3656
      %3662 = dma.vmem_to_hbm [thread:$0]  %s3657, 2048, %s7, [#allocation4], 128, 128, 8
    $region49: #{tpu_custom_call.1} parent=1 // pred_fallthru
      _
    // Predicated region
    $region50: #{tpu_custom_call.1} parent=1 // pred_check
      _
    $region51: #{tpu_custom_call.1} parent=1 // pred_check_branch
      %3664 = sbr.rel (0) target = $region53
    $region52: #{tpu_custom_call.1} parent=1 // pred_region
      %3665 = dma.done [#allocation4], 2048
    $region53: #{tpu_custom_call.1} parent=1 // pred_fallthru
      _
    %3666 = vsyncpa [#allocation3], 1
    %3667 = vsyncpa [#allocation6], 1
    %3668 = vsyncpa [#allocation9], 1
    %3669 = vsyncpa [#allocation4], 1

</llo_original>
